<compile_context>
chip_gen: v7x
topology: tpu7x:2x2x1
jax: 0.10.0
libtpu: 0.0.40
codegen_flags: <defaults>
</compile_context>

<pallas_src>
import jax
import jax.numpy as jnp
from jax.experimental import pallas as pl
from jax.experimental.pallas import tpu as pltpu


def _round_up(v, m):
    return (v + m - 1) // m * m


def _relu6(v):
    return jnp.minimum(jnp.maximum(v, 0.0), 6.0)


# ----------------------------------------------------------------------------
# Fused Pallas kernel: whole Inception-D block for one batch image.
# Inputs are column-parity planes in padded coordinates (rows/cols 0..H+1):
#   xE[r, s, c] = x_pad[r, 2s, c],  xO[r, s, c] = x_pad[r, 2s+1, c].
# ----------------------------------------------------------------------------
def _inception_d_kernel(xE_ref, xO_ref, w1_ref, s1_ref, wb1_ref, sb1_ref,
                        wb2a_ref, sb2a_ref, wb2b_ref, sb2b_ref, o_ref,
                        aE_ref, aO_ref, mE_ref, mO_ref):
    Hp, S, Cin = xE_ref.shape[1], xE_ref.shape[2], xE_ref.shape[3]
    H, Wo = Hp - 2, S - 1
    Ho = H // 2
    r1 = wb1_ref.shape[0] // 9
    r2 = wb2a_ref.shape[0] // 9
    o1, o2 = wb1_ref.shape[1], wb2b_ref.shape[1]
    Cp = o_ref.shape[3]

    # ---- helpers -----------------------------------------------------------
    def s2_taps(pE, pO):
        """9 taps (kh-major, kw-minor) of a 3x3 / stride-2 / pad-1 conv whose
        input is given as padded-coordinate column-parity planes (H+2, Wo+1, c).
        tap[kh,kw][p, q, :] == input_padded[2p + kh, 2q + kw, :]."""
        rE = pE.reshape(Hp // 2, 2, S, pE.shape[-1])   # leading-dim split: free
        rO = pO.reshape(Hp // 2, 2, S, pO.shape[-1])
        taps = []
        for kh in range(3):
            par, off = kh & 1, (1 if kh == 2 else 0)
            rowsE = rE[:, par][off:off + Ho]           # padded rows 2p + kh
            rowsO = rO[:, par][off:off + Ho]
            taps += [rowsE[:, 0:Wo, :],                # kw = 0 -> col 2q
                     rowsO[:, 0:Wo, :],                # kw = 1 -> col 2q + 1
                     rowsE[:, 1:Wo + 1, :]]            # kw = 2 -> col 2q + 2
        return taps

    def s1_taps(pE, pO, odd_cols):
        """9 taps of a 3x3 / stride-1 / pad-1 conv restricted to even
        (odd_cols=False) or odd (odd_cols=True) real output columns."""
        taps = []
        for kh in range(3):
            rE, rO = pE[kh:kh + H], pO[kh:kh + H]
            if odd_cols:     # real col 2t+1 reads padded cols 2t+1, 2t+2, 2t+3
                taps += [rO[:, 0:Wo, :], rE[:, 1:Wo + 1, :], rO[:, 1:Wo + 1, :]]
            else:            # real col 2t   reads padded cols 2t,   2t+1, 2t+2
                taps += [rE[:, 0:Wo, :], rO[:, 0:Wo, :], rE[:, 1:Wo + 1, :]]
        return taps

    def im2col(taps, rows):
        # Packed-K operand: one (rows*Wo, 9*cin) bf16 matrix per conv.
        ic = jnp.concatenate(taps, axis=-1)
        return ic.reshape(rows * Wo, ic.shape[-1]).astype(jnp.bfloat16)

    def conv(taps, rows, w_ref, s_ref):
        acc = jnp.dot(im2col(taps, rows), w_ref[...],
                      preferred_element_type=jnp.float32)
        return _relu6(acc + s_ref[...])                # f32 epilogue

    xE = xE_ref[0]        # (H+2, Wo+1, Cin) f32, even padded columns
    xO = xO_ref[0]        # (H+2, Wo+1, Cin) f32, odd padded columns

    # ---- branch 3 first (keeps the raw input's live range short):
    # 3x3 stride-2 max pool.  The wrapper filled the 1-pixel halo with a large
    # negative sentinel, so a straight running max over the 9 taps is exact.
    pool = None
    for t in s2_taps(xE, xO):
        pool = t if pool is None else jnp.maximum(pool, t)   # (Ho, Wo, Cin) f32

    # ---- fused 1x1 reductions (branch1 + branch2), interior positions only.
    xEi = xE[1:H + 1, 1:Wo + 1, :].reshape(H * Wo, Cin)
    xOi = xO[1:H + 1, 0:Wo, :].reshape(H * Wo, Cin)
    x1 = jnp.concatenate([xEi, xOi], axis=0).astype(jnp.bfloat16)
    y = _relu6(jnp.dot(x1, w1_ref[...], preferred_element_type=jnp.float32)
               + s1_ref[...])                                 # (2*H*Wo, r1+r2)
    # Scatter back into zero-padded parity planes (zero halo == conv padding).
    aE_ref[...] = jnp.zeros(aE_ref.shape, aE_ref.dtype)
    aO_ref[...] = jnp.zeros(aO_ref.shape, aO_ref.dtype)
    aE_ref[1:H + 1, 1:Wo + 1, :] = y[:H * Wo].reshape(H, Wo, r1 + r2)
    aO_ref[1:H + 1, 0:Wo, :] = y[H * Wo:].reshape(H, Wo, r1 + r2)
    aE, aO = aE_ref[...], aO_ref[...]

    # ---- branch 1: 3x3 stride-2 conv on the first r1 reduced channels.
    b1 = conv(s2_taps(aE[..., :r1], aO[..., :r1]), Ho, wb1_ref, sb1_ref)

    # ---- branch 2: 3x3 stride-1 conv (both output-column parities in ONE
    #      matmul), then 3x3 stride-2 conv.
    aE2, aO2 = aE[..., r1:], aO[..., r1:]
    icm = jnp.concatenate([im2col(s1_taps(aE2, aO2, False), H),
                           im2col(s1_taps(aE2, aO2, True), H)], axis=0)
    m = _relu6(jnp.dot(icm, wb2a_ref[...], preferred_element_type=jnp.float32)
               + sb2a_ref[...])                               # (2*H*Wo, r2)
    mE_ref[...] = jnp.zeros(mE_ref.shape, mE_ref.dtype)
    mO_ref[...] = jnp.zeros(mO_ref.shape, mO_ref.dtype)
    # even real output columns land on odd padded columns and vice versa.
    mO_ref[1:H + 1, 0:Wo, :] = m[:H * Wo].reshape(H, Wo, r2)
    mE_ref[1:H + 1, 1:Wo + 1, :] = m[H * Wo:].reshape(H, Wo, r2)
    b2 = conv(s2_taps(mE_ref[...], mO_ref[...]), Ho, wb2b_ref, sb2b_ref)

    # ---- single lane-dense store of the channel concat (padded to Cp lanes).
    pieces = [b1.reshape(Ho, Wo, o1), b2.reshape(Ho, Wo, o2), pool]
    pad_c = Cp - (o1 + o2 + Cin)
    if pad_c:
        pieces.append(jnp.zeros((Ho, Wo, pad_c), jnp.float32))
    o_ref[0] = jnp.concatenate(pieces, axis=-1).astype(o_ref.dtype)


# ----------------------------------------------------------------------------
# Wrapper
# ----------------------------------------------------------------------------
@jax.jit
def inception_block_module_d(x_nchw, params):
    N, Cin, H, W = x_nchw.shape
    # W % 16 keeps every in-kernel (rows, Wo, c) <-> (rows*Wo, c) reshape
    # layout-free (Wo is the sublane dim and must stay a multiple of 8).
    assert H % 2 == 0 and W % 16 == 0, "expect even H and W % 16 == 0"
    Ho, Wo = H // 2, W // 2

    # One fused XLA prep pass: NCHW -> NHWC, pad-by-1 with the max-pool
    # sentinel (never read by any matmul), column-parity split.
    x = jnp.transpose(x_nchw, (0, 2, 3, 1))
    xpad = jnp.pad(x, ((0, 0), (1, 1), (1, 1), (0, 0)), constant_values=-1e30)
    xsp = xpad.reshape(N, H + 2, Wo + 1, 2, Cin)
    xE, xO = xsp[:, :, :, 0, :], xsp[:, :, :, 1, :]

    w1, s1 = params["w1"], params["s1"]
    wb1, sb1 = params["wb1"], params["sb1"]
    wb2a, sb2a = params["wb2a"], params["sb2a"]
    wb2b, sb2b = params["wb2b"], params["sb2b"]
    rsum, r2 = w1.shape[1], wb2a.shape[1]
    o1, o2 = wb1.shape[1], wb2b.shape[1]
    Ctot = o1 + o2 + Cin
    Cp = _round_up(Ctot, 128)        # lane-dense output; tail stripped below

    full = lambda shape: pl.BlockSpec(shape, lambda n: (0,) * len(shape))

    out_padded = pl.pallas_call(
        _inception_d_kernel,
        out_shape=jax.ShapeDtypeStruct((N, Ho, Wo, Cp), jnp.float32),
        grid=(N,),
        in_specs=[
            pl.BlockSpec((1, H + 2, Wo + 1, Cin), lambda n: (n, 0, 0, 0)),
            pl.BlockSpec((1, H + 2, Wo + 1, Cin), lambda n: (n, 0, 0, 0)),
            full(w1.shape), full(s1.shape),
            full(wb1.shape), full(sb1.shape),
            full(wb2a.shape), full(sb2a.shape),
            full(wb2b.shape), full(sb2b.shape),
        ],
        out_specs=pl.BlockSpec((1, Ho, Wo, Cp), lambda n: (n, 0, 0, 0)),
        scratch_shapes=[
            pltpu.VMEM((H + 2, Wo + 1, rsum), jnp.float32),   # a planes (1x1 out)
            pltpu.VMEM((H + 2, Wo + 1, rsum), jnp.float32),
            pltpu.VMEM((H + 2, Wo + 1, r2), jnp.float32),     # m planes (b2 mid)
            pltpu.VMEM((H + 2, Wo + 1, r2), jnp.float32),
        ],
        compiler_params=pltpu.CompilerParams(
            dimension_semantics=("parallel",),   # 2 TCs on v7x; no-op on v5e/v6e
            vmem_limit_bytes=48 * 1024 * 1024),
    )(xE, xO, w1, s1, wb1, sb1, wb2a, sb2a, wb2b, sb2b)

    # Strip the lane padding while transposing back to the module's NCHW.
    return jnp.transpose(out_padded[..., :Ctot], (0, 3, 1, 2))


# ----------------------------------------------------------------------------
# Parameter init (deterministic, synthetic) — conv bias + eval-mode BN folded
# into (weight * scale, shift).  Weights stored bf16 (MXU-native), shifts f32.
# ----------------------------------------------------------------------------
def _init_conv_bn(key, cin, cout, k):
    k1, k2, k3, k4, k5, k6 = jax.random.split(key, 6)
    fan_in = k * k * cin
    w = jax.random.normal(k1, (k, k, cin, cout), jnp.float32) / jnp.sqrt(
        jnp.float32(fan_in))
    b = 0.1 * jax.random.normal(k2, (cout,), jnp.float32)
    gamma = 1.0 + 0.1 * jax.random.normal(k3, (cout,), jnp.float32)
    beta = 0.1 * jax.random.normal(k4, (cout,), jnp.float32)
    run_mean = 0.1 * jax.random.normal(k5, (cout,), jnp.float32)
    run_var = 1.0 + 0.1 * jax.random.uniform(k6, (cout,), jnp.float32)
    eps = 1e-5
    scale = gamma / jnp.sqrt(run_var + eps)
    shift = beta + (b - run_mean) * scale
    w2d = (w * scale).reshape(k * k * cin, cout).astype(jnp.bfloat16)
    return w2d, shift.reshape(1, cout)


def init_inception_d_params(key, in_channels, red_b1, out_b1, red_b2, out_b2):
    ks = jax.random.split(key, 5)
    w10, s10 = _init_conv_bn(ks[0], in_channels, red_b1, 1)
    wb1, sb1 = _init_conv_bn(ks[1], red_b1, out_b1, 3)
    w20, s20 = _init_conv_bn(ks[2], in_channels, red_b2, 1)
    wb2a, sb2a = _init_conv_bn(ks[3], red_b2, red_b2, 3)
    wb2b, sb2b = _init_conv_bn(ks[4], red_b2, out_b2, 3)
    return {
        # the two 1x1 reduction convs are fused into a single matmul
        "w1": jnp.concatenate([w10, w20], axis=1),
        "s1": jnp.concatenate([s10, s20], axis=1),
        "wb1": wb1, "sb1": sb1,
        "wb2a": wb2a, "sb2a": sb2a,
        "wb2b": wb2b, "sb2b": sb2b,
    }


# ----------------------------------------------------------------------------
# Pure-JAX reference (same folded weights) for a tolerance check.
# ----------------------------------------------------------------------------
def _conv_bn_relu6_ref(x_nhwc, w2d, shift, k, stride):
    cin = w2d.shape[0] // (k * k)
    w = w2d.astype(jnp.float32).reshape(k, k, cin, w2d.shape[1])
    pad = k // 2
    y = jax.lax.conv_general_dilated(
        x_nhwc, w, (stride, stride), [(pad, pad), (pad, pad)],
        dimension_numbers=("NHWC", "HWIO", "NHWC"),
        precision=jax.lax.Precision.HIGHEST)
    return jnp.minimum(jnp.maximum(y + shift.reshape(1, 1, 1, -1), 0.0), 6.0)


def _reference(x_nchw, params):
    x = jnp.transpose(x_nchw, (0, 2, 3, 1))
    r1 = params["wb1"].shape[0] // 9
    a = _conv_bn_relu6_ref(x, params["w1"], params["s1"], 1, 1)
    b1 = _conv_bn_relu6_ref(a[..., :r1], params["wb1"], params["sb1"], 3, 2)
    m = _conv_bn_relu6_ref(a[..., r1:], params["wb2a"], params["sb2a"], 3, 1)
    b2 = _conv_bn_relu6_ref(m, params["wb2b"], params["sb2b"], 3, 2)
    p = jax.lax.reduce_window(x, -jnp.inf, jax.lax.max,
                              (1, 3, 3, 1), (1, 2, 2, 1),
                              [(0, 0), (1, 1), (1, 1), (0, 0)])
    return jnp.transpose(jnp.concatenate([b1, b2, p], axis=-1), (0, 3, 1, 2))


if __name__ == "__main__":
    key = jax.random.PRNGKey(0)
    k_x, k_p = jax.random.split(key)

    N, C, H, W = 2, 4, 16, 16
    in_channels, red_b1, out_b1, red_b2, out_b2 = C, 8, 8, 8, 8

    x = jax.random.normal(k_x, (N, C, H, W), jnp.float32)
    params = init_inception_d_params(k_p, in_channels, red_b1, out_b1,
                                     red_b2, out_b2)

    out = jax.block_until_ready(inception_block_module_d(x, params))

    expected_shape = (N, out_b1 + out_b2 + in_channels, H // 2, W // 2)
    assert out.shape == expected_shape, (out.shape, expected_shape)
    assert bool(jnp.all(jnp.isfinite(out)))

    # Tolerance check against the pure-JAX reference (kernel uses bf16 MXU
    # operands with f32 accumulation -> small rounding differences expected).
    ref = jax.block_until_ready(_reference(x, params))
    max_err = float(jnp.max(jnp.abs(out - ref)))
    assert max_err < 0.2, f"max |kernel - reference| = {max_err}"

    print("KERNEL_OK")
</pallas_src>

<mosaic_0001>
module attributes {stable_mosaic.version = 11 : i64} {
  func.func @_inception_d_kernel(%arg0: i32, %arg1: memref<1x18x9x4xf32, #tpu.memory_space<vmem>>, %arg2: memref<1x18x9x4xf32, #tpu.memory_space<vmem>>, %arg3: memref<4x16xbf16, #tpu.memory_space<vmem>>, %arg4: memref<1x16xf32, #tpu.memory_space<vmem>>, %arg5: memref<72x8xbf16, #tpu.memory_space<vmem>>, %arg6: memref<1x8xf32, #tpu.memory_space<vmem>>, %arg7: memref<72x8xbf16, #tpu.memory_space<vmem>>, %arg8: memref<1x8xf32, #tpu.memory_space<vmem>>, %arg9: memref<72x8xbf16, #tpu.memory_space<vmem>>, %arg10: memref<1x8xf32, #tpu.memory_space<vmem>>, %arg11: memref<1x8x8x128xf32, #tpu.memory_space<vmem>>, %arg12: memref<18x9x16xf32, #tpu.memory_space<vmem>>, %arg13: memref<18x9x16xf32, #tpu.memory_space<vmem>>, %arg14: memref<18x9x8xf32, #tpu.memory_space<vmem>>, %arg15: memref<18x9x8xf32, #tpu.memory_space<vmem>>) attributes {dimension_semantics = [#tpu.dimension_semantics<parallel>], iteration_bounds = array<i64: 2>, scalar_prefetch = 0 : i64, scratch_operands = 4 : i64, tpu.core_type = #tpu.core_type<tc>, window_params = [{transform_indices = @transform_0, window_bounds = array<i64: 1, 18, 9, 4>}, {transform_indices = @transform_1, window_bounds = array<i64: 1, 18, 9, 4>}, {pipeline_mode = #tpu.pipeline_mode<synchronous>, transform_indices = @transform_2, window_bounds = array<i64: 4, 16>}, {pipeline_mode = #tpu.pipeline_mode<synchronous>, transform_indices = @transform_3, window_bounds = array<i64: 1, 16>}, {pipeline_mode = #tpu.pipeline_mode<synchronous>, transform_indices = @transform_4, window_bounds = array<i64: 72, 8>}, {pipeline_mode = #tpu.pipeline_mode<synchronous>, transform_indices = @transform_5, window_bounds = array<i64: 1, 8>}, {pipeline_mode = #tpu.pipeline_mode<synchronous>, transform_indices = @transform_6, window_bounds = array<i64: 72, 8>}, {pipeline_mode = #tpu.pipeline_mode<synchronous>, transform_indices = @transform_7, window_bounds = array<i64: 1, 8>}, {pipeline_mode = #tpu.pipeline_mode<synchronous>, transform_indices = @transform_8, window_bounds = array<i64: 72, 8>}, {pipeline_mode = #tpu.pipeline_mode<synchronous>, transform_indices = @transform_9, window_bounds = array<i64: 1, 8>}, {transform_indices = @transform_10, window_bounds = array<i64: 1, 8, 8, 128>}]} {
    %c0 = arith.constant 0 : index
    %c0_0 = arith.constant 0 : index
    %c0_1 = arith.constant 0 : index
    %c0_2 = arith.constant 0 : index
    %0 = vector.load %arg1[%c0, %c0_0, %c0_1, %c0_2] : memref<1x18x9x4xf32, #tpu.memory_space<vmem>>, vector<1x18x9x4xf32>
    %1 = vector.shape_cast %0 : vector<1x18x9x4xf32> to vector<18x9x4xf32>
    %c0_3 = arith.constant 0 : index
    %c0_4 = arith.constant 0 : index
    %c0_5 = arith.constant 0 : index
    %c0_6 = arith.constant 0 : index
    %2 = vector.load %arg2[%c0_3, %c0_4, %c0_5, %c0_6] : memref<1x18x9x4xf32, #tpu.memory_space<vmem>>, vector<1x18x9x4xf32>
    %3 = vector.shape_cast %2 : vector<1x18x9x4xf32> to vector<18x9x4xf32>
    %4 = vector.shape_cast %1 : vector<18x9x4xf32> to vector<9x2x9x4xf32>
    %5 = vector.shape_cast %3 : vector<18x9x4xf32> to vector<9x2x9x4xf32>
    %6 = vector.extract_strided_slice %4 {offsets = [0, 0, 0, 0], sizes = [9, 1, 9, 4], strides = [1, 1, 1, 1]} : vector<9x2x9x4xf32> to vector<9x1x9x4xf32>
    %7 = vector.shape_cast %6 : vector<9x1x9x4xf32> to vector<9x9x4xf32>
    %8 = vector.extract_strided_slice %7 {offsets = [0, 0, 0], sizes = [8, 9, 4], strides = [1, 1, 1]} : vector<9x9x4xf32> to vector<8x9x4xf32>
    %9 = vector.extract_strided_slice %5 {offsets = [0, 0, 0, 0], sizes = [9, 1, 9, 4], strides = [1, 1, 1, 1]} : vector<9x2x9x4xf32> to vector<9x1x9x4xf32>
    %10 = vector.shape_cast %9 : vector<9x1x9x4xf32> to vector<9x9x4xf32>
    %11 = vector.extract_strided_slice %10 {offsets = [0, 0, 0], sizes = [8, 9, 4], strides = [1, 1, 1]} : vector<9x9x4xf32> to vector<8x9x4xf32>
    %12 = vector.extract_strided_slice %8 {offsets = [0, 0, 0], sizes = [8, 8, 4], strides = [1, 1, 1]} : vector<8x9x4xf32> to vector<8x8x4xf32>
    %13 = vector.extract_strided_slice %11 {offsets = [0, 0, 0], sizes = [8, 8, 4], strides = [1, 1, 1]} : vector<8x9x4xf32> to vector<8x8x4xf32>
    %14 = vector.extract_strided_slice %8 {offsets = [0, 1, 0], sizes = [8, 8, 4], strides = [1, 1, 1]} : vector<8x9x4xf32> to vector<8x8x4xf32>
    %15 = vector.extract_strided_slice %4 {offsets = [0, 1, 0, 0], sizes = [9, 1, 9, 4], strides = [1, 1, 1, 1]} : vector<9x2x9x4xf32> to vector<9x1x9x4xf32>
    %16 = vector.shape_cast %15 : vector<9x1x9x4xf32> to vector<9x9x4xf32>
    %17 = vector.extract_strided_slice %16 {offsets = [0, 0, 0], sizes = [8, 9, 4], strides = [1, 1, 1]} : vector<9x9x4xf32> to vector<8x9x4xf32>
    %18 = vector.extract_strided_slice %5 {offsets = [0, 1, 0, 0], sizes = [9, 1, 9, 4], strides = [1, 1, 1, 1]} : vector<9x2x9x4xf32> to vector<9x1x9x4xf32>
    %19 = vector.shape_cast %18 : vector<9x1x9x4xf32> to vector<9x9x4xf32>
    %20 = vector.extract_strided_slice %19 {offsets = [0, 0, 0], sizes = [8, 9, 4], strides = [1, 1, 1]} : vector<9x9x4xf32> to vector<8x9x4xf32>
    %21 = vector.extract_strided_slice %17 {offsets = [0, 0, 0], sizes = [8, 8, 4], strides = [1, 1, 1]} : vector<8x9x4xf32> to vector<8x8x4xf32>
    %22 = vector.extract_strided_slice %20 {offsets = [0, 0, 0], sizes = [8, 8, 4], strides = [1, 1, 1]} : vector<8x9x4xf32> to vector<8x8x4xf32>
    %23 = vector.extract_strided_slice %17 {offsets = [0, 1, 0], sizes = [8, 8, 4], strides = [1, 1, 1]} : vector<8x9x4xf32> to vector<8x8x4xf32>
    %24 = vector.extract_strided_slice %4 {offsets = [0, 0, 0, 0], sizes = [9, 1, 9, 4], strides = [1, 1, 1, 1]} : vector<9x2x9x4xf32> to vector<9x1x9x4xf32>
    %25 = vector.shape_cast %24 : vector<9x1x9x4xf32> to vector<9x9x4xf32>
    %26 = vector.extract_strided_slice %25 {offsets = [1, 0, 0], sizes = [8, 9, 4], strides = [1, 1, 1]} : vector<9x9x4xf32> to vector<8x9x4xf32>
    %27 = vector.extract_strided_slice %5 {offsets = [0, 0, 0, 0], sizes = [9, 1, 9, 4], strides = [1, 1, 1, 1]} : vector<9x2x9x4xf32> to vector<9x1x9x4xf32>
    %28 = vector.shape_cast %27 : vector<9x1x9x4xf32> to vector<9x9x4xf32>
    %29 = vector.extract_strided_slice %28 {offsets = [1, 0, 0], sizes = [8, 9, 4], strides = [1, 1, 1]} : vector<9x9x4xf32> to vector<8x9x4xf32>
    %30 = vector.extract_strided_slice %26 {offsets = [0, 0, 0], sizes = [8, 8, 4], strides = [1, 1, 1]} : vector<8x9x4xf32> to vector<8x8x4xf32>
    %31 = vector.extract_strided_slice %29 {offsets = [0, 0, 0], sizes = [8, 8, 4], strides = [1, 1, 1]} : vector<8x9x4xf32> to vector<8x8x4xf32>
    %32 = vector.extract_strided_slice %26 {offsets = [0, 1, 0], sizes = [8, 8, 4], strides = [1, 1, 1]} : vector<8x9x4xf32> to vector<8x8x4xf32>
    %33 = arith.maximumf %12, %13 : vector<8x8x4xf32>
    %34 = arith.maximumf %33, %14 : vector<8x8x4xf32>
    %35 = arith.maximumf %34, %21 : vector<8x8x4xf32>
    %36 = arith.maximumf %35, %22 : vector<8x8x4xf32>
    %37 = arith.maximumf %36, %23 : vector<8x8x4xf32>
    %38 = arith.maximumf %37, %30 : vector<8x8x4xf32>
    %39 = arith.maximumf %38, %31 : vector<8x8x4xf32>
    %40 = arith.maximumf %39, %32 : vector<8x8x4xf32>
    %41 = vector.extract_strided_slice %1 {offsets = [1, 1, 0], sizes = [16, 8, 4], strides = [1, 1, 1]} : vector<18x9x4xf32> to vector<16x8x4xf32>
    %42 = vector.shape_cast %41 : vector<16x8x4xf32> to vector<128x4xf32>
    %43 = vector.extract_strided_slice %3 {offsets = [1, 0, 0], sizes = [16, 8, 4], strides = [1, 1, 1]} : vector<18x9x4xf32> to vector<16x8x4xf32>
    %44 = vector.shape_cast %43 : vector<16x8x4xf32> to vector<128x4xf32>
    %45 = tpu.concatenate %42, %44 in 0 : vector<128x4xf32>, vector<128x4xf32> -> vector<256x4xf32>
    %46 = arith.truncf %45 : vector<256x4xf32> to vector<256x4xbf16>
    %c0_7 = arith.constant 0 : index
    %c0_8 = arith.constant 0 : index
    %47 = vector.load %arg3[%c0_7, %c0_8] : memref<4x16xbf16, #tpu.memory_space<vmem>>, vector<4x16xbf16>
    %cst = arith.constant dense<0.000000e+00> : vector<256x16xf32>
    %48 = tpu.matmul %46, %47, %cst {dimension_numbers = #tpu.dot_dimension_numbers<[1], [0], [0], [1], [0, 0, 1, 1], [], []>} : vector<256x4xbf16>, vector<4x16xbf16>, vector<256x16xf32> -> vector<256x16xf32>
    %c0_9 = arith.constant 0 : index
    %c0_10 = arith.constant 0 : index
    %49 = vector.load %arg4[%c0_9, %c0_10] : memref<1x16xf32, #tpu.memory_space<vmem>>, vector<1x16xf32>
    %50 = vector.broadcast %49 : vector<1x16xf32> to vector<256x16xf32>
    %51 = arith.addf %48, %50 : vector<256x16xf32>
    %cst_11 = arith.constant 0.000000e+00 : f32
    %52 = vector.broadcast %cst_11 : f32 to vector<256x16xf32>
    %53 = arith.maximumf %51, %52 : vector<256x16xf32>
    %cst_12 = arith.constant 6.000000e+00 : f32
    %54 = vector.broadcast %cst_12 : f32 to vector<256x16xf32>
    %55 = arith.minimumf %53, %54 : vector<256x16xf32>
    %cst_13 = arith.constant 0.000000e+00 : f32
    %56 = vector.broadcast %cst_13 : f32 to vector<18x9x16xf32>
    %c0_14 = arith.constant 0 : index
    %c0_15 = arith.constant 0 : index
    %c0_16 = arith.constant 0 : index
    %57 = vector.load %arg12[%c0_14, %c0_15, %c0_16] : memref<18x9x16xf32, #tpu.memory_space<vmem>>, vector<18x9x16xf32>
    tpu.vector_store %arg12[%c0_14, %c0_15, %c0_16], %56 {strides = array<i32>} : memref<18x9x16xf32, #tpu.memory_space<vmem>>, vector<18x9x16xf32>,
    %cst_17 = arith.constant 0.000000e+00 : f32
    %58 = vector.broadcast %cst_17 : f32 to vector<18x9x16xf32>
    %c0_18 = arith.constant 0 : index
    %c0_19 = arith.constant 0 : index
    %c0_20 = arith.constant 0 : index
    %59 = vector.load %arg13[%c0_18, %c0_19, %c0_20] : memref<18x9x16xf32, #tpu.memory_space<vmem>>, vector<18x9x16xf32>
    tpu.vector_store %arg13[%c0_18, %c0_19, %c0_20], %58 {strides = array<i32>} : memref<18x9x16xf32, #tpu.memory_space<vmem>>, vector<18x9x16xf32>,
    %60 = vector.extract_strided_slice %55 {offsets = [0, 0], sizes = [128, 16], strides = [1, 1]} : vector<256x16xf32> to vector<128x16xf32>
    %61 = vector.shape_cast %60 : vector<128x16xf32> to vector<16x8x16xf32>
    %c1 = arith.constant 1 : index
    %c1_21 = arith.constant 1 : index
    %c0_22 = arith.constant 0 : index
    %62 = vector.load %arg12[%c1, %c1_21, %c0_22] : memref<18x9x16xf32, #tpu.memory_space<vmem>>, vector<16x8x16xf32>
    tpu.vector_store %arg12[%c1, %c1_21, %c0_22], %61 {strides = array<i32>} : memref<18x9x16xf32, #tpu.memory_space<vmem>>, vector<16x8x16xf32>,
    %63 = vector.extract_strided_slice %55 {offsets = [128, 0], sizes = [128, 16], strides = [1, 1]} : vector<256x16xf32> to vector<128x16xf32>
    %64 = vector.shape_cast %63 : vector<128x16xf32> to vector<16x8x16xf32>
    %c1_23 = arith.constant 1 : index
    %c0_24 = arith.constant 0 : index
    %c0_25 = arith.constant 0 : index
    %65 = vector.load %arg13[%c1_23, %c0_24, %c0_25] : memref<18x9x16xf32, #tpu.memory_space<vmem>>, vector<16x8x16xf32>
    tpu.vector_store %arg13[%c1_23, %c0_24, %c0_25], %64 {strides = array<i32>} : memref<18x9x16xf32, #tpu.memory_space<vmem>>, vector<16x8x16xf32>,
    %c0_26 = arith.constant 0 : index
    %c0_27 = arith.constant 0 : index
    %c0_28 = arith.constant 0 : index
    %66 = vector.load %arg12[%c0_26, %c0_27, %c0_28] : memref<18x9x16xf32, #tpu.memory_space<vmem>>, vector<18x9x16xf32>
    %c0_29 = arith.constant 0 : index
    %c0_30 = arith.constant 0 : index
    %c0_31 = arith.constant 0 : index
    %67 = vector.load %arg13[%c0_29, %c0_30, %c0_31] : memref<18x9x16xf32, #tpu.memory_space<vmem>>, vector<18x9x16xf32>
    %68 = vector.extract_strided_slice %66 {offsets = [0, 0, 0], sizes = [18, 9, 8], strides = [1, 1, 1]} : vector<18x9x16xf32> to vector<18x9x8xf32>
    %69 = vector.extract_strided_slice %67 {offsets = [0, 0, 0], sizes = [18, 9, 8], strides = [1, 1, 1]} : vector<18x9x16xf32> to vector<18x9x8xf32>
    %70 = vector.shape_cast %68 : vector<18x9x8xf32> to vector<9x2x9x8xf32>
    %71 = vector.shape_cast %69 : vector<18x9x8xf32> to vector<9x2x9x8xf32>
    %72 = vector.extract_strided_slice %70 {offsets = [0, 0, 0, 0], sizes = [9, 1, 9, 8], strides = [1, 1, 1, 1]} : vector<9x2x9x8xf32> to vector<9x1x9x8xf32>
    %73 = vector.shape_cast %72 : vector<9x1x9x8xf32> to vector<9x9x8xf32>
    %74 = vector.extract_strided_slice %73 {offsets = [0, 0, 0], sizes = [8, 9, 8], strides = [1, 1, 1]} : vector<9x9x8xf32> to vector<8x9x8xf32>
    %75 = vector.extract_strided_slice %71 {offsets = [0, 0, 0, 0], sizes = [9, 1, 9, 8], strides = [1, 1, 1, 1]} : vector<9x2x9x8xf32> to vector<9x1x9x8xf32>
    %76 = vector.shape_cast %75 : vector<9x1x9x8xf32> to vector<9x9x8xf32>
    %77 = vector.extract_strided_slice %76 {offsets = [0, 0, 0], sizes = [8, 9, 8], strides = [1, 1, 1]} : vector<9x9x8xf32> to vector<8x9x8xf32>
    %78 = vector.extract_strided_slice %74 {offsets = [0, 0, 0], sizes = [8, 8, 8], strides = [1, 1, 1]} : vector<8x9x8xf32> to vector<8x8x8xf32>
    %79 = vector.extract_strided_slice %77 {offsets = [0, 0, 0], sizes = [8, 8, 8], strides = [1, 1, 1]} : vector<8x9x8xf32> to vector<8x8x8xf32>
    %80 = vector.extract_strided_slice %74 {offsets = [0, 1, 0], sizes = [8, 8, 8], strides = [1, 1, 1]} : vector<8x9x8xf32> to vector<8x8x8xf32>
    %81 = vector.extract_strided_slice %70 {offsets = [0, 1, 0, 0], sizes = [9, 1, 9, 8], strides = [1, 1, 1, 1]} : vector<9x2x9x8xf32> to vector<9x1x9x8xf32>
    %82 = vector.shape_cast %81 : vector<9x1x9x8xf32> to vector<9x9x8xf32>
    %83 = vector.extract_strided_slice %82 {offsets = [0, 0, 0], sizes = [8, 9, 8], strides = [1, 1, 1]} : vector<9x9x8xf32> to vector<8x9x8xf32>
    %84 = vector.extract_strided_slice %71 {offsets = [0, 1, 0, 0], sizes = [9, 1, 9, 8], strides = [1, 1, 1, 1]} : vector<9x2x9x8xf32> to vector<9x1x9x8xf32>
    %85 = vector.shape_cast %84 : vector<9x1x9x8xf32> to vector<9x9x8xf32>
    %86 = vector.extract_strided_slice %85 {offsets = [0, 0, 0], sizes = [8, 9, 8], strides = [1, 1, 1]} : vector<9x9x8xf32> to vector<8x9x8xf32>
    %87 = vector.extract_strided_slice %83 {offsets = [0, 0, 0], sizes = [8, 8, 8], strides = [1, 1, 1]} : vector<8x9x8xf32> to vector<8x8x8xf32>
    %88 = vector.extract_strided_slice %86 {offsets = [0, 0, 0], sizes = [8, 8, 8], strides = [1, 1, 1]} : vector<8x9x8xf32> to vector<8x8x8xf32>
    %89 = vector.extract_strided_slice %83 {offsets = [0, 1, 0], sizes = [8, 8, 8], strides = [1, 1, 1]} : vector<8x9x8xf32> to vector<8x8x8xf32>
    %90 = vector.extract_strided_slice %70 {offsets = [0, 0, 0, 0], sizes = [9, 1, 9, 8], strides = [1, 1, 1, 1]} : vector<9x2x9x8xf32> to vector<9x1x9x8xf32>
    %91 = vector.shape_cast %90 : vector<9x1x9x8xf32> to vector<9x9x8xf32>
    %92 = vector.extract_strided_slice %91 {offsets = [1, 0, 0], sizes = [8, 9, 8], strides = [1, 1, 1]} : vector<9x9x8xf32> to vector<8x9x8xf32>
    %93 = vector.extract_strided_slice %71 {offsets = [0, 0, 0, 0], sizes = [9, 1, 9, 8], strides = [1, 1, 1, 1]} : vector<9x2x9x8xf32> to vector<9x1x9x8xf32>
    %94 = vector.shape_cast %93 : vector<9x1x9x8xf32> to vector<9x9x8xf32>
    %95 = vector.extract_strided_slice %94 {offsets = [1, 0, 0], sizes = [8, 9, 8], strides = [1, 1, 1]} : vector<9x9x8xf32> to vector<8x9x8xf32>
    %96 = vector.extract_strided_slice %92 {offsets = [0, 0, 0], sizes = [8, 8, 8], strides = [1, 1, 1]} : vector<8x9x8xf32> to vector<8x8x8xf32>
    %97 = vector.extract_strided_slice %95 {offsets = [0, 0, 0], sizes = [8, 8, 8], strides = [1, 1, 1]} : vector<8x9x8xf32> to vector<8x8x8xf32>
    %98 = vector.extract_strided_slice %92 {offsets = [0, 1, 0], sizes = [8, 8, 8], strides = [1, 1, 1]} : vector<8x9x8xf32> to vector<8x8x8xf32>
    %99 = tpu.concatenate %78, %79, %80, %87, %88, %89, %96, %97, %98 in 2 : vector<8x8x8xf32>, vector<8x8x8xf32>, vector<8x8x8xf32>, vector<8x8x8xf32>, vector<8x8x8xf32>, vector<8x8x8xf32>, vector<8x8x8xf32>, vector<8x8x8xf32>, vector<8x8x8xf32> -> vector<8x8x72xf32>
    %100 = vector.shape_cast %99 : vector<8x8x72xf32> to vector<64x72xf32>
    %101 = arith.truncf %100 : vector<64x72xf32> to vector<64x72xbf16>
    %c0_32 = arith.constant 0 : index
    %c0_33 = arith.constant 0 : index
    %102 = vector.load %arg5[%c0_32, %c0_33] : memref<72x8xbf16, #tpu.memory_space<vmem>>, vector<72x8xbf16>
    %cst_34 = arith.constant dense<0.000000e+00> : vector<64x8xf32>
    %103 = tpu.matmul %101, %102, %cst_34 {dimension_numbers = #tpu.dot_dimension_numbers<[1], [0], [0], [1], [0, 0, 1, 1], [], []>} : vector<64x72xbf16>, vector<72x8xbf16>, vector<64x8xf32> -> vector<64x8xf32>
    %c0_35 = arith.constant 0 : index
    %c0_36 = arith.constant 0 : index
    %104 = vector.load %arg6[%c0_35, %c0_36] : memref<1x8xf32, #tpu.memory_space<vmem>>, vector<1x8xf32>
    %105 = vector.broadcast %104 : vector<1x8xf32> to vector<64x8xf32>
    %106 = arith.addf %103, %105 : vector<64x8xf32>
    %cst_37 = arith.constant 0.000000e+00 : f32
    %107 = vector.broadcast %cst_37 : f32 to vector<64x8xf32>
    %108 = arith.maximumf %106, %107 : vector<64x8xf32>
    %cst_38 = arith.constant 6.000000e+00 : f32
    %109 = vector.broadcast %cst_38 : f32 to vector<64x8xf32>
    %110 = arith.minimumf %108, %109 : vector<64x8xf32>
    %111 = vector.extract_strided_slice %66 {offsets = [0, 0, 8], sizes = [18, 9, 8], strides = [1, 1, 1]} : vector<18x9x16xf32> to vector<18x9x8xf32>
    %112 = vector.extract_strided_slice %67 {offsets = [0, 0, 8], sizes = [18, 9, 8], strides = [1, 1, 1]} : vector<18x9x16xf32> to vector<18x9x8xf32>
    %113 = vector.extract_strided_slice %111 {offsets = [0, 0, 0], sizes = [16, 9, 8], strides = [1, 1, 1]} : vector<18x9x8xf32> to vector<16x9x8xf32>
    %114 = vector.extract_strided_slice %112 {offsets = [0, 0, 0], sizes = [16, 9, 8], strides = [1, 1, 1]} : vector<18x9x8xf32> to vector<16x9x8xf32>
    %115 = vector.extract_strided_slice %113 {offsets = [0, 0, 0], sizes = [16, 8, 8], strides = [1, 1, 1]} : vector<16x9x8xf32> to vector<16x8x8xf32>
    %116 = vector.extract_strided_slice %114 {offsets = [0, 0, 0], sizes = [16, 8, 8], strides = [1, 1, 1]} : vector<16x9x8xf32> to vector<16x8x8xf32>
    %117 = vector.extract_strided_slice %113 {offsets = [0, 1, 0], sizes = [16, 8, 8], strides = [1, 1, 1]} : vector<16x9x8xf32> to vector<16x8x8xf32>
    %118 = vector.extract_strided_slice %111 {offsets = [1, 0, 0], sizes = [16, 9, 8], strides = [1, 1, 1]} : vector<18x9x8xf32> to vector<16x9x8xf32>
    %119 = vector.extract_strided_slice %112 {offsets = [1, 0, 0], sizes = [16, 9, 8], strides = [1, 1, 1]} : vector<18x9x8xf32> to vector<16x9x8xf32>
    %120 = vector.extract_strided_slice %118 {offsets = [0, 0, 0], sizes = [16, 8, 8], strides = [1, 1, 1]} : vector<16x9x8xf32> to vector<16x8x8xf32>
    %121 = vector.extract_strided_slice %119 {offsets = [0, 0, 0], sizes = [16, 8, 8], strides = [1, 1, 1]} : vector<16x9x8xf32> to vector<16x8x8xf32>
    %122 = vector.extract_strided_slice %118 {offsets = [0, 1, 0], sizes = [16, 8, 8], strides = [1, 1, 1]} : vector<16x9x8xf32> to vector<16x8x8xf32>
    %123 = vector.extract_strided_slice %111 {offsets = [2, 0, 0], sizes = [16, 9, 8], strides = [1, 1, 1]} : vector<18x9x8xf32> to vector<16x9x8xf32>
    %124 = vector.extract_strided_slice %112 {offsets = [2, 0, 0], sizes = [16, 9, 8], strides = [1, 1, 1]} : vector<18x9x8xf32> to vector<16x9x8xf32>
    %125 = vector.extract_strided_slice %123 {offsets = [0, 0, 0], sizes = [16, 8, 8], strides = [1, 1, 1]} : vector<16x9x8xf32> to vector<16x8x8xf32>
    %126 = vector.extract_strided_slice %124 {offsets = [0, 0, 0], sizes = [16, 8, 8], strides = [1, 1, 1]} : vector<16x9x8xf32> to vector<16x8x8xf32>
    %127 = vector.extract_strided_slice %123 {offsets = [0, 1, 0], sizes = [16, 8, 8], strides = [1, 1, 1]} : vector<16x9x8xf32> to vector<16x8x8xf32>
    %128 = tpu.concatenate %115, %116, %117, %120, %121, %122, %125, %126, %127 in 2 : vector<16x8x8xf32>, vector<16x8x8xf32>, vector<16x8x8xf32>, vector<16x8x8xf32>, vector<16x8x8xf32>, vector<16x8x8xf32>, vector<16x8x8xf32>, vector<16x8x8xf32>, vector<16x8x8xf32> -> vector<16x8x72xf32>
    %129 = vector.shape_cast %128 : vector<16x8x72xf32> to vector<128x72xf32>
    %130 = arith.truncf %129 : vector<128x72xf32> to vector<128x72xbf16>
    %131 = vector.extract_strided_slice %111 {offsets = [0, 0, 0], sizes = [16, 9, 8], strides = [1, 1, 1]} : vector<18x9x8xf32> to vector<16x9x8xf32>
    %132 = vector.extract_strided_slice %112 {offsets = [0, 0, 0], sizes = [16, 9, 8], strides = [1, 1, 1]} : vector<18x9x8xf32> to vector<16x9x8xf32>
    %133 = vector.extract_strided_slice %132 {offsets = [0, 0, 0], sizes = [16, 8, 8], strides = [1, 1, 1]} : vector<16x9x8xf32> to vector<16x8x8xf32>
    %134 = vector.extract_strided_slice %131 {offsets = [0, 1, 0], sizes = [16, 8, 8], strides = [1, 1, 1]} : vector<16x9x8xf32> to vector<16x8x8xf32>
    %135 = vector.extract_strided_slice %132 {offsets = [0, 1, 0], sizes = [16, 8, 8], strides = [1, 1, 1]} : vector<16x9x8xf32> to vector<16x8x8xf32>
    %136 = vector.extract_strided_slice %111 {offsets = [1, 0, 0], sizes = [16, 9, 8], strides = [1, 1, 1]} : vector<18x9x8xf32> to vector<16x9x8xf32>
    %137 = vector.extract_strided_slice %112 {offsets = [1, 0, 0], sizes = [16, 9, 8], strides = [1, 1, 1]} : vector<18x9x8xf32> to vector<16x9x8xf32>
    %138 = vector.extract_strided_slice %137 {offsets = [0, 0, 0], sizes = [16, 8, 8], strides = [1, 1, 1]} : vector<16x9x8xf32> to vector<16x8x8xf32>
    %139 = vector.extract_strided_slice %136 {offsets = [0, 1, 0], sizes = [16, 8, 8], strides = [1, 1, 1]} : vector<16x9x8xf32> to vector<16x8x8xf32>
    %140 = vector.extract_strided_slice %137 {offsets = [0, 1, 0], sizes = [16, 8, 8], strides = [1, 1, 1]} : vector<16x9x8xf32> to vector<16x8x8xf32>
    %141 = vector.extract_strided_slice %111 {offsets = [2, 0, 0], sizes = [16, 9, 8], strides = [1, 1, 1]} : vector<18x9x8xf32> to vector<16x9x8xf32>
    %142 = vector.extract_strided_slice %112 {offsets = [2, 0, 0], sizes = [16, 9, 8], strides = [1, 1, 1]} : vector<18x9x8xf32> to vector<16x9x8xf32>
    %143 = vector.extract_strided_slice %142 {offsets = [0, 0, 0], sizes = [16, 8, 8], strides = [1, 1, 1]} : vector<16x9x8xf32> to vector<16x8x8xf32>
    %144 = vector.extract_strided_slice %141 {offsets = [0, 1, 0], sizes = [16, 8, 8], strides = [1, 1, 1]} : vector<16x9x8xf32> to vector<16x8x8xf32>
    %145 = vector.extract_strided_slice %142 {offsets = [0, 1, 0], sizes = [16, 8, 8], strides = [1, 1, 1]} : vector<16x9x8xf32> to vector<16x8x8xf32>
    %146 = tpu.concatenate %133, %134, %135, %138, %139, %140, %143, %144, %145 in 2 : vector<16x8x8xf32>, vector<16x8x8xf32>, vector<16x8x8xf32>, vector<16x8x8xf32>, vector<16x8x8xf32>, vector<16x8x8xf32>, vector<16x8x8xf32>, vector<16x8x8xf32>, vector<16x8x8xf32> -> vector<16x8x72xf32>
    %147 = vector.shape_cast %146 : vector<16x8x72xf32> to vector<128x72xf32>
    %148 = arith.truncf %147 : vector<128x72xf32> to vector<128x72xbf16>
    %149 = tpu.concatenate %130, %148 in 0 : vector<128x72xbf16>, vector<128x72xbf16> -> vector<256x72xbf16>
    %c0_39 = arith.constant 0 : index
    %c0_40 = arith.constant 0 : index
    %150 = vector.load %arg7[%c0_39, %c0_40] : memref<72x8xbf16, #tpu.memory_space<vmem>>, vector<72x8xbf16>
    %cst_41 = arith.constant dense<0.000000e+00> : vector<256x8xf32>
    %151 = tpu.matmul %149, %150, %cst_41 {dimension_numbers = #tpu.dot_dimension_numbers<[1], [0], [0], [1], [0, 0, 1, 1], [], []>} : vector<256x72xbf16>, vector<72x8xbf16>, vector<256x8xf32> -> vector<256x8xf32>
    %c0_42 = arith.constant 0 : index
    %c0_43 = arith.constant 0 : index
    %152 = vector.load %arg8[%c0_42, %c0_43] : memref<1x8xf32, #tpu.memory_space<vmem>>, vector<1x8xf32>
    %153 = vector.broadcast %152 : vector<1x8xf32> to vector<256x8xf32>
    %154 = arith.addf %151, %153 : vector<256x8xf32>
    %cst_44 = arith.constant 0.000000e+00 : f32
    %155 = vector.broadcast %cst_44 : f32 to vector<256x8xf32>
    %156 = arith.maximumf %154, %155 : vector<256x8xf32>
    %cst_45 = arith.constant 6.000000e+00 : f32
    %157 = vector.broadcast %cst_45 : f32 to vector<256x8xf32>
    %158 = arith.minimumf %156, %157 : vector<256x8xf32>
    %cst_46 = arith.constant 0.000000e+00 : f32
    %159 = vector.broadcast %cst_46 : f32 to vector<18x9x8xf32>
    %c0_47 = arith.constant 0 : index
    %c0_48 = arith.constant 0 : index
    %c0_49 = arith.constant 0 : index
    %160 = vector.load %arg14[%c0_47, %c0_48, %c0_49] : memref<18x9x8xf32, #tpu.memory_space<vmem>>, vector<18x9x8xf32>
    tpu.vector_store %arg14[%c0_47, %c0_48, %c0_49], %159 {strides = array<i32>} : memref<18x9x8xf32, #tpu.memory_space<vmem>>, vector<18x9x8xf32>,
    %cst_50 = arith.constant 0.000000e+00 : f32
    %161 = vector.broadcast %cst_50 : f32 to vector<18x9x8xf32>
    %c0_51 = arith.constant 0 : index
    %c0_52 = arith.constant 0 : index
    %c0_53 = arith.constant 0 : index
    %162 = vector.load %arg15[%c0_51, %c0_52, %c0_53] : memref<18x9x8xf32, #tpu.memory_space<vmem>>, vector<18x9x8xf32>
    tpu.vector_store %arg15[%c0_51, %c0_52, %c0_53], %161 {strides = array<i32>} : memref<18x9x8xf32, #tpu.memory_space<vmem>>, vector<18x9x8xf32>,
    %163 = vector.extract_strided_slice %158 {offsets = [0, 0], sizes = [128, 8], strides = [1, 1]} : vector<256x8xf32> to vector<128x8xf32>
    %164 = vector.shape_cast %163 : vector<128x8xf32> to vector<16x8x8xf32>
    %c1_54 = arith.constant 1 : index
    %c0_55 = arith.constant 0 : index
    %c0_56 = arith.constant 0 : index
    %165 = vector.load %arg15[%c1_54, %c0_55, %c0_56] : memref<18x9x8xf32, #tpu.memory_space<vmem>>, vector<16x8x8xf32>
    tpu.vector_store %arg15[%c1_54, %c0_55, %c0_56], %164 {strides = array<i32>} : memref<18x9x8xf32, #tpu.memory_space<vmem>>, vector<16x8x8xf32>,
    %166 = vector.extract_strided_slice %158 {offsets = [128, 0], sizes = [128, 8], strides = [1, 1]} : vector<256x8xf32> to vector<128x8xf32>
    %167 = vector.shape_cast %166 : vector<128x8xf32> to vector<16x8x8xf32>
    %c1_57 = arith.constant 1 : index
    %c1_58 = arith.constant 1 : index
    %c0_59 = arith.constant 0 : index
    %168 = vector.load %arg14[%c1_57, %c1_58, %c0_59] : memref<18x9x8xf32, #tpu.memory_space<vmem>>, vector<16x8x8xf32>
    tpu.vector_store %arg14[%c1_57, %c1_58, %c0_59], %167 {strides = array<i32>} : memref<18x9x8xf32, #tpu.memory_space<vmem>>, vector<16x8x8xf32>,
    %c0_60 = arith.constant 0 : index
    %c0_61 = arith.constant 0 : index
    %c0_62 = arith.constant 0 : index
    %169 = vector.load %arg14[%c0_60, %c0_61, %c0_62] : memref<18x9x8xf32, #tpu.memory_space<vmem>>, vector<18x9x8xf32>
    %c0_63 = arith.constant 0 : index
    %c0_64 = arith.constant 0 : index
    %c0_65 = arith.constant 0 : index
    %170 = vector.load %arg15[%c0_63, %c0_64, %c0_65] : memref<18x9x8xf32, #tpu.memory_space<vmem>>, vector<18x9x8xf32>
    %171 = vector.shape_cast %169 : vector<18x9x8xf32> to vector<9x2x9x8xf32>
    %172 = vector.shape_cast %170 : vector<18x9x8xf32> to vector<9x2x9x8xf32>
    %173 = vector.extract_strided_slice %171 {offsets = [0, 0, 0, 0], sizes = [9, 1, 9, 8], strides = [1, 1, 1, 1]} : vector<9x2x9x8xf32> to vector<9x1x9x8xf32>
    %174 = vector.shape_cast %173 : vector<9x1x9x8xf32> to vector<9x9x8xf32>
    %175 = vector.extract_strided_slice %174 {offsets = [0, 0, 0], sizes = [8, 9, 8], strides = [1, 1, 1]} : vector<9x9x8xf32> to vector<8x9x8xf32>
    %176 = vector.extract_strided_slice %172 {offsets = [0, 0, 0, 0], sizes = [9, 1, 9, 8], strides = [1, 1, 1, 1]} : vector<9x2x9x8xf32> to vector<9x1x9x8xf32>
    %177 = vector.shape_cast %176 : vector<9x1x9x8xf32> to vector<9x9x8xf32>
    %178 = vector.extract_strided_slice %177 {offsets = [0, 0, 0], sizes = [8, 9, 8], strides = [1, 1, 1]} : vector<9x9x8xf32> to vector<8x9x8xf32>
    %179 = vector.extract_strided_slice %175 {offsets = [0, 0, 0], sizes = [8, 8, 8], strides = [1, 1, 1]} : vector<8x9x8xf32> to vector<8x8x8xf32>
    %180 = vector.extract_strided_slice %178 {offsets = [0, 0, 0], sizes = [8, 8, 8], strides = [1, 1, 1]} : vector<8x9x8xf32> to vector<8x8x8xf32>
    %181 = vector.extract_strided_slice %175 {offsets = [0, 1, 0], sizes = [8, 8, 8], strides = [1, 1, 1]} : vector<8x9x8xf32> to vector<8x8x8xf32>
    %182 = vector.extract_strided_slice %171 {offsets = [0, 1, 0, 0], sizes = [9, 1, 9, 8], strides = [1, 1, 1, 1]} : vector<9x2x9x8xf32> to vector<9x1x9x8xf32>
    %183 = vector.shape_cast %182 : vector<9x1x9x8xf32> to vector<9x9x8xf32>
    %184 = vector.extract_strided_slice %183 {offsets = [0, 0, 0], sizes = [8, 9, 8], strides = [1, 1, 1]} : vector<9x9x8xf32> to vector<8x9x8xf32>
    %185 = vector.extract_strided_slice %172 {offsets = [0, 1, 0, 0], sizes = [9, 1, 9, 8], strides = [1, 1, 1, 1]} : vector<9x2x9x8xf32> to vector<9x1x9x8xf32>
    %186 = vector.shape_cast %185 : vector<9x1x9x8xf32> to vector<9x9x8xf32>
    %187 = vector.extract_strided_slice %186 {offsets = [0, 0, 0], sizes = [8, 9, 8], strides = [1, 1, 1]} : vector<9x9x8xf32> to vector<8x9x8xf32>
    %188 = vector.extract_strided_slice %184 {offsets = [0, 0, 0], sizes = [8, 8, 8], strides = [1, 1, 1]} : vector<8x9x8xf32> to vector<8x8x8xf32>
    %189 = vector.extract_strided_slice %187 {offsets = [0, 0, 0], sizes = [8, 8, 8], strides = [1, 1, 1]} : vector<8x9x8xf32> to vector<8x8x8xf32>
    %190 = vector.extract_strided_slice %184 {offsets = [0, 1, 0], sizes = [8, 8, 8], strides = [1, 1, 1]} : vector<8x9x8xf32> to vector<8x8x8xf32>
    %191 = vector.extract_strided_slice %171 {offsets = [0, 0, 0, 0], sizes = [9, 1, 9, 8], strides = [1, 1, 1, 1]} : vector<9x2x9x8xf32> to vector<9x1x9x8xf32>
    %192 = vector.shape_cast %191 : vector<9x1x9x8xf32> to vector<9x9x8xf32>
    %193 = vector.extract_strided_slice %192 {offsets = [1, 0, 0], sizes = [8, 9, 8], strides = [1, 1, 1]} : vector<9x9x8xf32> to vector<8x9x8xf32>
    %194 = vector.extract_strided_slice %172 {offsets = [0, 0, 0, 0], sizes = [9, 1, 9, 8], strides = [1, 1, 1, 1]} : vector<9x2x9x8xf32> to vector<9x1x9x8xf32>
    %195 = vector.shape_cast %194 : vector<9x1x9x8xf32> to vector<9x9x8xf32>
    %196 = vector.extract_strided_slice %195 {offsets = [1, 0, 0], sizes = [8, 9, 8], strides = [1, 1, 1]} : vector<9x9x8xf32> to vector<8x9x8xf32>
    %197 = vector.extract_strided_slice %193 {offsets = [0, 0, 0], sizes = [8, 8, 8], strides = [1, 1, 1]} : vector<8x9x8xf32> to vector<8x8x8xf32>
    %198 = vector.extract_strided_slice %196 {offsets = [0, 0, 0], sizes = [8, 8, 8], strides = [1, 1, 1]} : vector<8x9x8xf32> to vector<8x8x8xf32>
    %199 = vector.extract_strided_slice %193 {offsets = [0, 1, 0], sizes = [8, 8, 8], strides = [1, 1, 1]} : vector<8x9x8xf32> to vector<8x8x8xf32>
    %200 = tpu.concatenate %179, %180, %181, %188, %189, %190, %197, %198, %199 in 2 : vector<8x8x8xf32>, vector<8x8x8xf32>, vector<8x8x8xf32>, vector<8x8x8xf32>, vector<8x8x8xf32>, vector<8x8x8xf32>, vector<8x8x8xf32>, vector<8x8x8xf32>, vector<8x8x8xf32> -> vector<8x8x72xf32>
    %201 = vector.shape_cast %200 : vector<8x8x72xf32> to vector<64x72xf32>
    %202 = arith.truncf %201 : vector<64x72xf32> to vector<64x72xbf16>
    %c0_66 = arith.constant 0 : index
    %c0_67 = arith.constant 0 : index
    %203 = vector.load %arg9[%c0_66, %c0_67] : memref<72x8xbf16, #tpu.memory_space<vmem>>, vector<72x8xbf16>
    %cst_68 = arith.constant dense<0.000000e+00> : vector<64x8xf32>
    %204 = tpu.matmul %202, %203, %cst_68 {dimension_numbers = #tpu.dot_dimension_numbers<[1], [0], [0], [1], [0, 0, 1, 1], [], []>} : vector<64x72xbf16>, vector<72x8xbf16>, vector<64x8xf32> -> vector<64x8xf32>
    %c0_69 = arith.constant 0 : index
    %c0_70 = arith.constant 0 : index
    %205 = vector.load %arg10[%c0_69, %c0_70] : memref<1x8xf32, #tpu.memory_space<vmem>>, vector<1x8xf32>
    %206 = vector.broadcast %205 : vector<1x8xf32> to vector<64x8xf32>
    %207 = arith.addf %204, %206 : vector<64x8xf32>
    %cst_71 = arith.constant 0.000000e+00 : f32
    %208 = vector.broadcast %cst_71 : f32 to vector<64x8xf32>
    %209 = arith.maximumf %207, %208 : vector<64x8xf32>
    %cst_72 = arith.constant 6.000000e+00 : f32
    %210 = vector.broadcast %cst_72 : f32 to vector<64x8xf32>
    %211 = arith.minimumf %209, %210 : vector<64x8xf32>
    %212 = vector.shape_cast %110 : vector<64x8xf32> to vector<8x8x8xf32>
    %213 = vector.shape_cast %211 : vector<64x8xf32> to vector<8x8x8xf32>
    %cst_73 = arith.constant 0.000000e+00 : f32
    %214 = vector.broadcast %cst_73 : f32 to vector<8x8x108xf32>
    %215 = tpu.concatenate %212, %213, %40, %214 in 2 : vector<8x8x8xf32>, vector<8x8x8xf32>, vector<8x8x4xf32>, vector<8x8x108xf32> -> vector<8x8x128xf32>
    %c0_74 = arith.constant 0 : index
    %c0_75 = arith.constant 0 : index
    %c0_76 = arith.constant 0 : index
    %c0_77 = arith.constant 0 : index
    %216 = vector.load %arg11[%c0_74, %c0_75, %c0_76, %c0_77] : memref<1x8x8x128xf32, #tpu.memory_space<vmem>>, vector<1x8x8x128xf32>
    %217 = vector.shape_cast %216 : vector<1x8x8x128xf32> to vector<8x8x128xf32>
    %218 = vector.shape_cast %215 : vector<8x8x128xf32> to vector<1x8x8x128xf32>
    tpu.vector_store %arg11[%c0_74, %c0_75, %c0_76, %c0_77], %218 {strides = array<i32>} : memref<1x8x8x128xf32, #tpu.memory_space<vmem>>, vector<1x8x8x128xf32>,
    return
  }
  func.func @transform_0(%arg0: i32) -> (i32, i32, i32, i32) {
    %c0_i32 = arith.constant 0 : i32
    %c0_i32_0 = arith.constant 0 : i32
    %c0_i32_1 = arith.constant 0 : i32
    %c0_i32_2 = arith.constant 0 : i32
    return %arg0, %c0_i32, %c0_i32_0, %c0_i32_1 : i32, i32, i32, i32
  }
  func.func @transform_1(%arg0: i32) -> (i32, i32, i32, i32) {
    %c0_i32 = arith.constant 0 : i32
    %c0_i32_0 = arith.constant 0 : i32
    %c0_i32_1 = arith.constant 0 : i32
    %c0_i32_2 = arith.constant 0 : i32
    return %arg0, %c0_i32, %c0_i32_0, %c0_i32_1 : i32, i32, i32, i32
  }
  func.func @transform_2(%arg0: i32) -> (i32, i32) {
    %c0_i32 = arith.constant 0 : i32
    %c0_i32_0 = arith.constant 0 : i32
    %c0_i32_1 = arith.constant 0 : i32
    return %c0_i32, %c0_i32_0 : i32, i32
  }
  func.func @transform_3(%arg0: i32) -> (i32, i32) {
    %c0_i32 = arith.constant 0 : i32
    %c0_i32_0 = arith.constant 0 : i32
    %c0_i32_1 = arith.constant 0 : i32
    return %c0_i32, %c0_i32_0 : i32, i32
  }
  func.func @transform_4(%arg0: i32) -> (i32, i32) {
    %c0_i32 = arith.constant 0 : i32
    %c0_i32_0 = arith.constant 0 : i32
    %c0_i32_1 = arith.constant 0 : i32
    return %c0_i32, %c0_i32_0 : i32, i32
  }
  func.func @transform_5(%arg0: i32) -> (i32, i32) {
    %c0_i32 = arith.constant 0 : i32
    %c0_i32_0 = arith.constant 0 : i32
    %c0_i32_1 = arith.constant 0 : i32
    return %c0_i32, %c0_i32_0 : i32, i32
  }
  func.func @transform_6(%arg0: i32) -> (i32, i32) {
    %c0_i32 = arith.constant 0 : i32
    %c0_i32_0 = arith.constant 0 : i32
    %c0_i32_1 = arith.constant 0 : i32
    return %c0_i32, %c0_i32_0 : i32, i32
  }
  func.func @transform_7(%arg0: i32) -> (i32, i32) {
    %c0_i32 = arith.constant 0 : i32
    %c0_i32_0 = arith.constant 0 : i32
    %c0_i32_1 = arith.constant 0 : i32
    return %c0_i32, %c0_i32_0 : i32, i32
  }
  func.func @transform_8(%arg0: i32) -> (i32, i32) {
    %c0_i32 = arith.constant 0 : i32
    %c0_i32_0 = arith.constant 0 : i32
    %c0_i32_1 = arith.constant 0 : i32
    return %c0_i32, %c0_i32_0 : i32, i32
  }
  func.func @transform_9(%arg0: i32) -> (i32, i32) {
    %c0_i32 = arith.constant 0 : i32
    %c0_i32_0 = arith.constant 0 : i32
    %c0_i32_1 = arith.constant 0 : i32
    return %c0_i32, %c0_i32_0 : i32, i32
  }
  func.func @transform_10(%arg0: i32) -> (i32, i32, i32, i32) {
    %c0_i32 = arith.constant 0 : i32
    %c0_i32_0 = arith.constant 0 : i32
    %c0_i32_1 = arith.constant 0 : i32
    %c0_i32_2 = arith.constant 0 : i32
    return %arg0, %c0_i32, %c0_i32_0, %c0_i32_1 : i32, i32, i32, i32
  }
}

</mosaic_0001>

<llo_original>
// kernel: inception_block_module_d.1
$region0: #{inception_block_module_d.1}
  #allocation0 [shape = 'u32[]', space=smem, size = 0x4, offset = 0x4, fixed_abs, tag = 'smem constant byte address 0x4 - core index']
  #allocation1 [shape = 'u32[144,128]{1,0:T(1,128)}', space=vmem, size = 0x12000, scoped, tag = 'internal scratch']
  #allocation2 [shape = 'f32[18,9,16]{2,1,0:T(8,128)}', space=vmem, size = 0x24000, scoped, tag = 'scratch operand']
  #allocation3 [shape = 'f32[18,9,16]{2,1,0:T(8,128)}', space=vmem, size = 0x24000, scoped, tag = 'scratch operand']
  #allocation4 [shape = 'f32[18,9,8]{2,1,0:T(8,128)}', space=vmem, size = 0x24000, scoped, tag = 'scratch operand']
  #allocation5 [shape = 'f32[18,9,8]{2,1,0:T(8,128)}', space=vmem, size = 0x24000, scoped, tag = 'scratch operand']
  %s0 = inlined_call_operand.vmem [shape: f32[2,18,9,4], index: 0, kind: input, shape index: {}]
  %s1 = inlined_call_operand.vmem [shape: f32[2,18,9,4], index: 1, kind: input, shape index: {}]
  %s2 = inlined_call_operand.vmem [shape: bf16[4,16], index: 2, kind: input, shape index: {}]
  %s3 = inlined_call_operand.vmem [shape: f32[1,16], index: 3, kind: input, shape index: {}]
  %s4 = inlined_call_operand.vmem [shape: bf16[72,8], index: 4, kind: input, shape index: {}]
  %s5 = inlined_call_operand.vmem [shape: f32[1,8], index: 5, kind: input, shape index: {}]
  %s6 = inlined_call_operand.vmem [shape: bf16[72,8], index: 6, kind: input, shape index: {}]
  %s7 = inlined_call_operand.vmem [shape: f32[1,8], index: 7, kind: input, shape index: {}]
  %s8 = inlined_call_operand.vmem [shape: bf16[72,8], index: 8, kind: input, shape index: {}]
  %s9 = inlined_call_operand.vmem [shape: f32[1,8], index: 9, kind: input, shape index: {}]
  %s10 = inlined_call_operand.vmem [shape: f32[2,8,8,128], index: 10, kind: output, shape index: {}]
  %s11 = sld [smem:[#allocation0]]
  $region73: #{inception_block_module_d.1} parent=0
    _
  %s13 = ssub.s32 1, %s11
  %s14 = scalar_select 0, %s13, %s11
  loop: start=0, step=1, limit=4
  $region2: #{inception_block_module_d.1} parent=0 // loop_pre_header
    _
  $region3: #{inception_block_module_d.1} parent=0 // loop_header
    %s16 = sphi 0, %s20
    %p17 = scmp.ge.s32.totalorder %s16, 4
    %s26 = sphi 0, %s28
    %s29 = sphi 0, %s26
    %s30 = sphi 0, %s29
    %s46 = sphi 0, %s30
    %s52 = sphi 0, %s54
    %s55 = sphi 0, %s52
    %s56 = sphi 0, %s55
    %s72 = sphi 0, %s56
    %s76 = sphi 0, %s76
    %s78 = sphi 0, %s76
    %s79 = sphi 0, %s78
    %s93 = sphi 0, %s79
    %s97 = sphi 0, %s97
    %s99 = sphi 0, %s97
    %s100 = sphi 0, %s99
    %s114 = sphi 0, %s100
    %s118 = sphi 0, %s118
    %s120 = sphi 0, %s118
    %s121 = sphi 0, %s120
    %s135 = sphi 0, %s121
    %s139 = sphi 0, %s139
    %s141 = sphi 0, %s139
    %s142 = sphi 0, %s141
    %s156 = sphi 0, %s142
    %s160 = sphi 0, %s160
    %s162 = sphi 0, %s160
    %s163 = sphi 0, %s162
    %s177 = sphi 0, %s163
    %s181 = sphi 0, %s181
    %s183 = sphi 0, %s181
    %s184 = sphi 0, %s183
    %s198 = sphi 0, %s184
    %s202 = sphi 0, %s202
    %s204 = sphi 0, %s202
    %s205 = sphi 0, %s204
    %s219 = sphi 0, %s205
    %s223 = sphi 0, %s223
    %s225 = sphi 0, %s223
    %s226 = sphi 0, %s225
    %s240 = sphi 0, %s226
    %s246 = sphi 0, %s248
    %s249 = sphi 0, %s246
    %s250 = sphi 0, %s249
    %s266 = sphi 0, %s250
  $region4: #{inception_block_module_d.1} parent=0 // loop_header_branch
    %19 = sbr.rel (%p17) target = $region8
  $region5: #{inception_block_module_d.1} parent=0 // loop_body
    %s21 = ssub.s32 %s16, 1
    %s22 = ssub.s32 %s16, 2
    %s23 = sadd.s32 %s16, 1
    %s24 = ssub.s32 %s16, %s23
    %p25 = scmp.eq.s32.totalorder %s24, 0
    %s27 = sadd.s32 %s26, 1
    %s28 = scalar_select %p25, %s26, %s27
    %p31 = pneg %p25
    %p32 = scmp.eq.s32.totalorder %s16, 1
    %p33 = por %p31, %p32
    %p34 = scmp.ne.s32.totalorder %s26, %s29
    %p35 = scmp.eq.s32.totalorder %s16, 0
    %p36 = por %p34, %p35
    %p37 = scmp.ne.s32.totalorder %s26, %s29
    %p38 = scmp.eq.s32.totalorder %s21, 1
    %p39 = por %p37, %p38
    %p40 = scmp.ne.s32.totalorder %s29, %s30
    %p41 = scmp.eq.s32.totalorder %s21, 0
    %p42 = por %p40, %p41
    %p43 = scmp.ne.s32.totalorder %s29, %s30
    %p44 = scmp.eq.s32.totalorder %s22, 1
    %p45 = por %p43, %p44
    %p47 = scmp.ne.s32.totalorder %s30, %s46
    %p48 = scmp.eq.s32.totalorder %s22, 0
    %p49 = por %p47, %p48
    %s50 = ssub.s32 %s16, %s23
    %p51 = scmp.eq.s32.totalorder %s50, 0
    %s53 = sadd.s32 %s52, 1
    %s54 = scalar_select %p51, %s52, %s53
    %p57 = pneg %p51
    %p58 = scmp.eq.s32.totalorder %s16, 1
    %p59 = por %p57, %p58
    %p60 = scmp.ne.s32.totalorder %s52, %s55
    %p61 = scmp.eq.s32.totalorder %s16, 0
    %p62 = por %p60, %p61
    %p63 = scmp.ne.s32.totalorder %s52, %s55
    %p64 = scmp.eq.s32.totalorder %s21, 1
    %p65 = por %p63, %p64
    %p66 = scmp.ne.s32.totalorder %s55, %s56
    %p67 = scmp.eq.s32.totalorder %s21, 0
    %p68 = por %p66, %p67
    %p69 = scmp.ne.s32.totalorder %s55, %s56
    %p70 = scmp.eq.s32.totalorder %s22, 1
    %p71 = por %p69, %p70
    %p73 = scmp.ne.s32.totalorder %s56, %s72
    %p74 = scmp.eq.s32.totalorder %s22, 0
    %p75 = por %p73, %p74
    %s77 = sadd.s32 %s76, 1
    %p80 = scmp.eq.s32.totalorder %s16, 1
    %p81 = scmp.ne.s32.totalorder %s76, %s78
    %p82 = scmp.eq.s32.totalorder %s16, 0
    %p83 = por %p81, %p82
    %p84 = scmp.ne.s32.totalorder %s76, %s78
    %p85 = scmp.eq.s32.totalorder %s21, 1
    %p86 = por %p84, %p85
    %p87 = scmp.ne.s32.totalorder %s78, %s79
    %p88 = scmp.eq.s32.totalorder %s21, 0
    %p89 = por %p87, %p88
    %p90 = scmp.ne.s32.totalorder %s78, %s79
    %p91 = scmp.eq.s32.totalorder %s22, 1
    %p92 = por %p90, %p91
    %p94 = scmp.ne.s32.totalorder %s79, %s93
    %p95 = scmp.eq.s32.totalorder %s22, 0
    %p96 = por %p94, %p95
    %s98 = sadd.s32 %s97, 1
    %p101 = scmp.eq.s32.totalorder %s16, 1
    %p102 = scmp.ne.s32.totalorder %s97, %s99
    %p103 = scmp.eq.s32.totalorder %s16, 0
    %p104 = por %p102, %p103
    %p105 = scmp.ne.s32.totalorder %s97, %s99
    %p106 = scmp.eq.s32.totalorder %s21, 1
    %p107 = por %p105, %p106
    %p108 = scmp.ne.s32.totalorder %s99, %s100
    %p109 = scmp.eq.s32.totalorder %s21, 0
    %p110 = por %p108, %p109
    %p111 = scmp.ne.s32.totalorder %s99, %s100
    %p112 = scmp.eq.s32.totalorder %s22, 1
    %p113 = por %p111, %p112
    %p115 = scmp.ne.s32.totalorder %s100, %s114
    %p116 = scmp.eq.s32.totalorder %s22, 0
    %p117 = por %p115, %p116
    %s119 = sadd.s32 %s118, 1
    %p122 = scmp.eq.s32.totalorder %s16, 1
    %p123 = scmp.ne.s32.totalorder %s118, %s120
    %p124 = scmp.eq.s32.totalorder %s16, 0
    %p125 = por %p123, %p124
    %p126 = scmp.ne.s32.totalorder %s118, %s120
    %p127 = scmp.eq.s32.totalorder %s21, 1
    %p128 = por %p126, %p127
    %p129 = scmp.ne.s32.totalorder %s120, %s121
    %p130 = scmp.eq.s32.totalorder %s21, 0
    %p131 = por %p129, %p130
    %p132 = scmp.ne.s32.totalorder %s120, %s121
    %p133 = scmp.eq.s32.totalorder %s22, 1
    %p134 = por %p132, %p133
    %p136 = scmp.ne.s32.totalorder %s121, %s135
    %p137 = scmp.eq.s32.totalorder %s22, 0
    %p138 = por %p136, %p137
    %s140 = sadd.s32 %s139, 1
    %p143 = scmp.eq.s32.totalorder %s16, 1
    %p144 = scmp.ne.s32.totalorder %s139, %s141
    %p145 = scmp.eq.s32.totalorder %s16, 0
    %p146 = por %p144, %p145
    %p147 = scmp.ne.s32.totalorder %s139, %s141
    %p148 = scmp.eq.s32.totalorder %s21, 1
    %p149 = por %p147, %p148
    %p150 = scmp.ne.s32.totalorder %s141, %s142
    %p151 = scmp.eq.s32.totalorder %s21, 0
    %p152 = por %p150, %p151
    %p153 = scmp.ne.s32.totalorder %s141, %s142
    %p154 = scmp.eq.s32.totalorder %s22, 1
    %p155 = por %p153, %p154
    %p157 = scmp.ne.s32.totalorder %s142, %s156
    %p158 = scmp.eq.s32.totalorder %s22, 0
    %p159 = por %p157, %p158
    %s161 = sadd.s32 %s160, 1
    %p164 = scmp.eq.s32.totalorder %s16, 1
    %p165 = scmp.ne.s32.totalorder %s160, %s162
    %p166 = scmp.eq.s32.totalorder %s16, 0
    %p167 = por %p165, %p166
    %p168 = scmp.ne.s32.totalorder %s160, %s162
    %p169 = scmp.eq.s32.totalorder %s21, 1
    %p170 = por %p168, %p169
    %p171 = scmp.ne.s32.totalorder %s162, %s163
    %p172 = scmp.eq.s32.totalorder %s21, 0
    %p173 = por %p171, %p172
    %p174 = scmp.ne.s32.totalorder %s162, %s163
    %p175 = scmp.eq.s32.totalorder %s22, 1
    %p176 = por %p174, %p175
    %p178 = scmp.ne.s32.totalorder %s163, %s177
    %p179 = scmp.eq.s32.totalorder %s22, 0
    %p180 = por %p178, %p179
    %s182 = sadd.s32 %s181, 1
    %p185 = scmp.eq.s32.totalorder %s16, 1
    %p186 = scmp.ne.s32.totalorder %s181, %s183
    %p187 = scmp.eq.s32.totalorder %s16, 0
    %p188 = por %p186, %p187
    %p189 = scmp.ne.s32.totalorder %s181, %s183
    %p190 = scmp.eq.s32.totalorder %s21, 1
    %p191 = por %p189, %p190
    %p192 = scmp.ne.s32.totalorder %s183, %s184
    %p193 = scmp.eq.s32.totalorder %s21, 0
    %p194 = por %p192, %p193
    %p195 = scmp.ne.s32.totalorder %s183, %s184
    %p196 = scmp.eq.s32.totalorder %s22, 1
    %p197 = por %p195, %p196
    %p199 = scmp.ne.s32.totalorder %s184, %s198
    %p200 = scmp.eq.s32.totalorder %s22, 0
    %p201 = por %p199, %p200
    %s203 = sadd.s32 %s202, 1
    %p206 = scmp.eq.s32.totalorder %s16, 1
    %p207 = scmp.ne.s32.totalorder %s202, %s204
    %p208 = scmp.eq.s32.totalorder %s16, 0
    %p209 = por %p207, %p208
    %p210 = scmp.ne.s32.totalorder %s202, %s204
    %p211 = scmp.eq.s32.totalorder %s21, 1
    %p212 = por %p210, %p211
    %p213 = scmp.ne.s32.totalorder %s204, %s205
    %p214 = scmp.eq.s32.totalorder %s21, 0
    %p215 = por %p213, %p214
    %p216 = scmp.ne.s32.totalorder %s204, %s205
    %p217 = scmp.eq.s32.totalorder %s22, 1
    %p218 = por %p216, %p217
    %p220 = scmp.ne.s32.totalorder %s205, %s219
    %p221 = scmp.eq.s32.totalorder %s22, 0
    %p222 = por %p220, %p221
    %s224 = sadd.s32 %s223, 1
    %p227 = scmp.eq.s32.totalorder %s16, 1
    %p228 = scmp.ne.s32.totalorder %s223, %s225
    %p229 = scmp.eq.s32.totalorder %s16, 0
    %p230 = por %p228, %p229
    %p231 = scmp.ne.s32.totalorder %s223, %s225
    %p232 = scmp.eq.s32.totalorder %s21, 1
    %p233 = por %p231, %p232
    %p234 = scmp.ne.s32.totalorder %s225, %s226
    %p235 = scmp.eq.s32.totalorder %s21, 0
    %p236 = por %p234, %p235
    %p237 = scmp.ne.s32.totalorder %s225, %s226
    %p238 = scmp.eq.s32.totalorder %s22, 1
    %p239 = por %p237, %p238
    %p241 = scmp.ne.s32.totalorder %s226, %s240
    %p242 = scmp.eq.s32.totalorder %s22, 0
    %p243 = por %p241, %p242
    %s244 = ssub.s32 %s16, %s23
    %p245 = scmp.eq.s32.totalorder %s244, 0
    %s247 = sadd.s32 %s246, 1
    %s248 = scalar_select %p245, %s246, %s247
    %p251 = pneg %p245
    %p252 = scmp.eq.s32.totalorder %s16, 1
    %p253 = por %p251, %p252
    %p254 = scmp.ne.s32.totalorder %s246, %s249
    %p255 = scmp.eq.s32.totalorder %s16, 0
    %p256 = por %p254, %p255
    %p257 = scmp.ne.s32.totalorder %s246, %s249
    %p258 = scmp.eq.s32.totalorder %s21, 1
    %p259 = por %p257, %p258
    %p260 = scmp.ne.s32.totalorder %s249, %s250
    %p261 = scmp.eq.s32.totalorder %s21, 0
    %p262 = por %p260, %p261
    %p263 = scmp.ne.s32.totalorder %s249, %s250
    %p264 = scmp.eq.s32.totalorder %s22, 1
    %p265 = por %p263, %p264
    %p267 = scmp.ne.s32.totalorder %s250, %s266
    %p268 = scmp.eq.s32.totalorder %s22, 0
    %p269 = por %p267, %p268
    %p270 = scmp.le.s32.totalorder 1, %s16
    %p271 = scmp.lt.s32.totalorder %s16, 3
    %p272 = pnand %p270, %p271
    %p273 = pneg %p272
    // Predicated region
    $region9: #{inception_block_module_d.1} parent=5 // pred_check
      _
    $region10: #{inception_block_module_d.1} parent=5 // pred_check_branch
      %275 = sbr.rel (%p272) target = $region12
    $region11: #{inception_block_module_d.1} parent=5 // pred_region
      %s276 = ssub.s32 %s16, 1
      // Predicated region
      $region13: #{inception_block_module_d.1} parent=11 // pred_check
        %p277 = pneg %p89
      $region14: #{inception_block_module_d.1} parent=11 // pred_check_branch
        %279 = sbr.rel (%p277) target = $region16
      $region15: #{inception_block_module_d.1} parent=11 // pred_region
        _
      $region16: #{inception_block_module_d.1} parent=11 // pred_fallthru
        _
      // Predicated region
      $region17: #{inception_block_module_d.1} parent=11 // pred_check
        %p280 = pneg %p110
      $region18: #{inception_block_module_d.1} parent=11 // pred_check_branch
        %282 = sbr.rel (%p280) target = $region20
      $region19: #{inception_block_module_d.1} parent=11 // pred_region
        _
      $region20: #{inception_block_module_d.1} parent=11 // pred_fallthru
        _
      // Predicated region
      $region21: #{inception_block_module_d.1} parent=11 // pred_check
        %p283 = pneg %p131
      $region22: #{inception_block_module_d.1} parent=11 // pred_check_branch
        %285 = sbr.rel (%p283) target = $region24
      $region23: #{inception_block_module_d.1} parent=11 // pred_region
        _
      $region24: #{inception_block_module_d.1} parent=11 // pred_fallthru
        _
      // Predicated region
      $region25: #{inception_block_module_d.1} parent=11 // pred_check
        %p286 = pneg %p152
      $region26: #{inception_block_module_d.1} parent=11 // pred_check_branch
        %288 = sbr.rel (%p286) target = $region28
      $region27: #{inception_block_module_d.1} parent=11 // pred_region
        _
      $region28: #{inception_block_module_d.1} parent=11 // pred_fallthru
        _
      // Predicated region
      $region29: #{inception_block_module_d.1} parent=11 // pred_check
        %p289 = pneg %p173
      $region30: #{inception_block_module_d.1} parent=11 // pred_check_branch
        %291 = sbr.rel (%p289) target = $region32
      $region31: #{inception_block_module_d.1} parent=11 // pred_region
        _
      $region32: #{inception_block_module_d.1} parent=11 // pred_fallthru
        _
      // Predicated region
      $region33: #{inception_block_module_d.1} parent=11 // pred_check
        %p292 = pneg %p194
      $region34: #{inception_block_module_d.1} parent=11 // pred_check_branch
        %294 = sbr.rel (%p292) target = $region36
      $region35: #{inception_block_module_d.1} parent=11 // pred_region
        _
      $region36: #{inception_block_module_d.1} parent=11 // pred_fallthru
        _
      // Predicated region
      $region37: #{inception_block_module_d.1} parent=11 // pred_check
        %p295 = pneg %p215
      $region38: #{inception_block_module_d.1} parent=11 // pred_check_branch
        %297 = sbr.rel (%p295) target = $region40
      $region39: #{inception_block_module_d.1} parent=11 // pred_region
        _
      $region40: #{inception_block_module_d.1} parent=11 // pred_fallthru
        _
      // Predicated region
      $region41: #{inception_block_module_d.1} parent=11 // pred_check
        %p298 = pneg %p236
      $region42: #{inception_block_module_d.1} parent=11 // pred_check_branch
        %300 = sbr.rel (%p298) target = $region44
      $region43: #{inception_block_module_d.1} parent=11 // pred_region
        _
      $region44: #{inception_block_module_d.1} parent=11 // pred_fallthru
        _
    $region12: #{inception_block_module_d.1} parent=5 // pred_fallthru
      _
    %p301 = scmp.lt.s32.totalorder %s16, 2
    // Predicated region
    $region45: #{inception_block_module_d.1} parent=5 // pred_check
      %p302 = pneg %p301
    $region46: #{inception_block_module_d.1} parent=5 // pred_check_branch
      %304 = sbr.rel (%p302) target = $region48
    $region47: #{inception_block_module_d.1} parent=5 // pred_region
      // Predicated region
      $region49: #{inception_block_module_d.1} parent=47 // pred_check
        %p305 = pneg %p36
      $region50: #{inception_block_module_d.1} parent=47 // pred_check_branch
        %307 = sbr.rel (%p305) target = $region52
      $region51: #{inception_block_module_d.1} parent=47 // pred_region
        %p308 = scmp.lt.s32.totalorder %s16, 1
        %s309 = scalar_select %p308, %s16, 1
        %s310 = smul.addr %s309, 36
        %s311 = smul.addr %s310, 8
        %s312 = scalar_lea.vmem %s0, %s311
      $region52: #{inception_block_module_d.1} parent=47 // pred_fallthru
        _
      // Predicated region
      $region53: #{inception_block_module_d.1} parent=47 // pred_check
        %p313 = pneg %p62
      $region54: #{inception_block_module_d.1} parent=47 // pred_check_branch
        %315 = sbr.rel (%p313) target = $region56
      $region55: #{inception_block_module_d.1} parent=47 // pred_region
        %p316 = scmp.lt.s32.totalorder %s16, 1
        %s317 = scalar_select %p316, %s16, 1
        %s318 = smul.addr %s317, 36
        %s319 = smul.addr %s318, 8
        %s320 = scalar_lea.vmem %s1, %s319
      $region56: #{inception_block_module_d.1} parent=47 // pred_fallthru
        _
    $region48: #{inception_block_module_d.1} parent=5 // pred_fallthru
      _
    %p321 = scmp.le.s32.totalorder 1, %s16
    %p322 = scmp.lt.s32.totalorder %s16, 3
    %p323 = pnand %p321, %p322
    %p324 = pneg %p323
    // Predicated region
    $region57: #{inception_block_module_d.1} parent=5 // pred_check
      _
    $region58: #{inception_block_module_d.1} parent=5 // pred_check_branch
      %326 = sbr.rel (%p323) target = $region60
    $region59: #{inception_block_module_d.1} parent=5 // pred_region
      %s327 = ssub.s32 %s16, 1
      %p328 = scmp.lt.s32.totalorder %s21, 1
      %s329 = scalar_select %p328, %s21, 1
      %s330 = smul.addr %s329, 36
      %s331 = smul.addr %s330, 8
      %s332 = scalar_lea.vmem %s0, %s331
      %p333 = pneg %p42
      %p334 = pneg %p39
      %p335 = scmp.lt.s32.totalorder %s21, 1
      %s336 = scalar_select %p335, %s21, 1
      %s337 = smul.addr %s336, 36
      %s338 = smul.addr %s337, 8
      %s339 = scalar_lea.vmem %s1, %s338
      %p340 = pneg %p68
      %p341 = pneg %p65
      %p342 = pneg %p89
      %p343 = pneg %p86
      %p344 = pneg %p110
      %p345 = pneg %p107
      %p346 = pneg %p131
      %p347 = pneg %p128
      %p348 = pneg %p152
      %p349 = pneg %p149
      %p350 = pneg %p173
      %p351 = pneg %p170
      %p352 = pneg %p194
      %p353 = pneg %p191
      %p354 = pneg %p215
      %p355 = pneg %p212
      %p356 = pneg %p236
      %p357 = pneg %p233
      %p358 = pneg %p262
      %p359 = pneg %p259
      %p360 = scmp.lt.s32.totalorder %s21, 1
      %s361 = scalar_select %p360, %s21, 1
      %s362 = smul.addr %s361, 8
      %s363 = smul.addr %s362, 8
      %s364 = scalar_lea.vmem %s10, %s363
      %p365 = scmp.lt.s32.totalorder %s21, 1
      %s366 = scalar_select %p365, %s21, 1
      %s367 = smul.addr %s366, 36
      %s368 = smul.addr %s367, 8
      %s369 = scalar_lea.vmem %s0, %s368
      %p370 = scmp.lt.s32.totalorder %s21, 1
      %s371 = scalar_select %p370, %s21, 1
      %s372 = smul.addr %s371, 36
      %s373 = smul.addr %s372, 8
      %s374 = scalar_lea.vmem %s1, %s373
      %p375 = scmp.lt.s32.totalorder %s21, 1
      %s376 = scalar_select %p375, %s21, 1
      %s377 = smul.addr %s376, 8
      %s378 = smul.addr %s377, 8
      %s379 = scalar_lea.vmem %s10, %s378
      %v381 = vld [vmem:[%s369] sm:$0xff]
      %v382 = vld [vmem:[%s369 + $0x8] sm:$0x1]
      %v383 = vld [vmem:[%s369 + $0x10] sm:$0xff]
      %v384 = vld [vmem:[%s369 + $0x18] sm:$0x1]
      %v385 = vld [vmem:[%s369 + $0x20] sm:$0xff]
      %v386 = vld [vmem:[%s369 + $0x28] sm:$0x1]
      %v387 = vld [vmem:[%s369 + $0x30] sm:$0xff]
      %v388 = vld [vmem:[%s369 + $0x38] sm:$0x1]
      %v389 = vld [vmem:[%s369 + $0x40] sm:$0xff]
      %v390 = vld [vmem:[%s369 + $0x48] sm:$0x1]
      %v391 = vld [vmem:[%s369 + $0x50] sm:$0xff]
      %v392 = vld [vmem:[%s369 + $0x58] sm:$0x1]
      %v393 = vld [vmem:[%s369 + $0x60] sm:$0xff]
      %v394 = vld [vmem:[%s369 + $0x68] sm:$0x1]
      %v395 = vld [vmem:[%s369 + $0x70] sm:$0xff]
      %v396 = vld [vmem:[%s369 + $0x78] sm:$0x1]
      %v397 = vld [vmem:[%s369 + $0x80] sm:$0xff]
      %v398 = vld [vmem:[%s369 + $0x88] sm:$0x1]
      %v399 = vld [vmem:[%s369 + $0x90] sm:$0xff]
      %v400 = vld [vmem:[%s369 + $0x98] sm:$0x1]
      %v401 = vld [vmem:[%s369 + $0xa0] sm:$0xff]
      %v402 = vld [vmem:[%s369 + $0xa8] sm:$0x1]
      %v403 = vld [vmem:[%s369 + $0xb0] sm:$0xff]
      %v404 = vld [vmem:[%s369 + $0xb8] sm:$0x1]
      %v405 = vld [vmem:[%s369 + $0xc0] sm:$0xff]
      %v406 = vld [vmem:[%s369 + $0xc8] sm:$0x1]
      %v407 = vld [vmem:[%s369 + $0xd0] sm:$0xff]
      %v408 = vld [vmem:[%s369 + $0xd8] sm:$0x1]
      %v409 = vld [vmem:[%s369 + $0xe0] sm:$0xff]
      %v410 = vld [vmem:[%s369 + $0xe8] sm:$0x1]
      %v411 = vld [vmem:[%s369 + $0xf0] sm:$0xff]
      %v412 = vld [vmem:[%s369 + $0xf8] sm:$0x1]
      %v413 = vld [vmem:[%s369 + $0x100] sm:$0xff]
      %v414 = vld [vmem:[%s369 + $0x108] sm:$0x1]
      %v415 = vld [vmem:[%s374] sm:$0xff]
      %v416 = vld [vmem:[%s374 + $0x10] sm:$0xff]
      %v417 = vld [vmem:[%s374 + $0x20] sm:$0xff]
      %v418 = vld [vmem:[%s374 + $0x30] sm:$0xff]
      %v419 = vld [vmem:[%s374 + $0x40] sm:$0xff]
      %v420 = vld [vmem:[%s374 + $0x50] sm:$0xff]
      %v421 = vld [vmem:[%s374 + $0x60] sm:$0xff]
      %v422 = vld [vmem:[%s374 + $0x70] sm:$0xff]
      %v423 = vld [vmem:[%s374 + $0x80] sm:$0xff]
      %v424 = vld [vmem:[%s374 + $0x90] sm:$0xff]
      %v425 = vld [vmem:[%s374 + $0xa0] sm:$0xff]
      %v426 = vld [vmem:[%s374 + $0xb0] sm:$0xff]
      %v427 = vld [vmem:[%s374 + $0xc0] sm:$0xff]
      %v428 = vld [vmem:[%s374 + $0xd0] sm:$0xff]
      %v429 = vld [vmem:[%s374 + $0xe0] sm:$0xff]
      %v430 = vld [vmem:[%s374 + $0xf0] sm:$0xff]
      %v431 = vld [vmem:[%s374 + $0x100] sm:$0xff]
      %v432 = vmax.f32 %v381, %v415
      %v433 = vmax.f32 %v385, %v417
      %v434 = vmax.f32 %v389, %v419
      %v435 = vmax.f32 %v393, %v421
      %v436 = vmax.f32 %v397, %v423
      %v437 = vmax.f32 %v401, %v425
      %v438 = vmax.f32 %v405, %v427
      %v439 = vmax.f32 %v409, %v429
      %vm456 = vcmask 1046528
      %v457 = vrot.slane %v381, 1
      %v458 = vrot.slane %v382, 1
      %v459 = vsel %vm456, %v457, %v458
      %v460 = vrot.slane %v385, 1
      %v461 = vrot.slane %v386, 1
      %v462 = vsel %vm456, %v460, %v461
      %v463 = vrot.slane %v389, 1
      %v464 = vrot.slane %v390, 1
      %v465 = vsel %vm456, %v463, %v464
      %v466 = vrot.slane %v393, 1
      %v467 = vrot.slane %v394, 1
      %v468 = vsel %vm456, %v466, %v467
      %v469 = vrot.slane %v397, 1
      %v470 = vrot.slane %v398, 1
      %v471 = vsel %vm456, %v469, %v470
      %v472 = vrot.slane %v401, 1
      %v473 = vrot.slane %v402, 1
      %v474 = vsel %vm456, %v472, %v473
      %v475 = vrot.slane %v405, 1
      %v476 = vrot.slane %v406, 1
      %v477 = vsel %vm456, %v475, %v476
      %v478 = vrot.slane %v409, 1
      %v479 = vrot.slane %v410, 1
      %v480 = vsel %vm456, %v478, %v479
      %v489 = vmax.f32 %v432, %v459
      %v490 = vmax.f32 %v433, %v462
      %v491 = vmax.f32 %v434, %v465
      %v492 = vmax.f32 %v435, %v468
      %v493 = vmax.f32 %v436, %v471
      %v494 = vmax.f32 %v437, %v474
      %v495 = vmax.f32 %v438, %v477
      %v496 = vmax.f32 %v439, %v480
      %v497 = vmax.f32 %v489, %v383
      %v498 = vmax.f32 %v490, %v387
      %v499 = vmax.f32 %v491, %v391
      %v500 = vmax.f32 %v492, %v395
      %v501 = vmax.f32 %v493, %v399
      %v502 = vmax.f32 %v494, %v403
      %v503 = vmax.f32 %v495, %v407
      %v504 = vmax.f32 %v496, %v411
      %v505 = vmax.f32 %v497, %v416
      %v506 = vmax.f32 %v498, %v418
      %v507 = vmax.f32 %v499, %v420
      %v508 = vmax.f32 %v500, %v422
      %v509 = vmax.f32 %v501, %v424
      %v510 = vmax.f32 %v502, %v426
      %v511 = vmax.f32 %v503, %v428
      %v512 = vmax.f32 %v504, %v430
      %v529 = vrot.slane %v383, 1
      %v530 = vrot.slane %v384, 1
      %v531 = vsel %vm456, %v529, %v530
      %v532 = vrot.slane %v387, 1
      %v533 = vrot.slane %v388, 1
      %v534 = vsel %vm456, %v532, %v533
      %v535 = vrot.slane %v391, 1
      %v536 = vrot.slane %v392, 1
      %v537 = vsel %vm456, %v535, %v536
      %v538 = vrot.slane %v395, 1
      %v539 = vrot.slane %v396, 1
      %v540 = vsel %vm456, %v538, %v539
      %v541 = vrot.slane %v399, 1
      %v542 = vrot.slane %v400, 1
      %v543 = vsel %vm456, %v541, %v542
      %v544 = vrot.slane %v403, 1
      %v545 = vrot.slane %v404, 1
      %v546 = vsel %vm456, %v544, %v545
      %v547 = vrot.slane %v407, 1
      %v548 = vrot.slane %v408, 1
      %v549 = vsel %vm456, %v547, %v548
      %v550 = vrot.slane %v411, 1
      %v551 = vrot.slane %v412, 1
      %v552 = vsel %vm456, %v550, %v551
      %v561 = vmax.f32 %v505, %v531
      %v562 = vmax.f32 %v506, %v534
      %v563 = vmax.f32 %v507, %v537
      %v564 = vmax.f32 %v508, %v540
      %v565 = vmax.f32 %v509, %v543
      %v566 = vmax.f32 %v510, %v546
      %v567 = vmax.f32 %v511, %v549
      %v568 = vmax.f32 %v512, %v552
      %v569 = vmax.f32 %v561, %v385
      %v570 = vmax.f32 %v562, %v389
      %v571 = vmax.f32 %v563, %v393
      %v572 = vmax.f32 %v564, %v397
      %v573 = vmax.f32 %v565, %v401
      %v574 = vmax.f32 %v566, %v405
      %v575 = vmax.f32 %v567, %v409
      %v576 = vmax.f32 %v568, %v413
      %v577 = vmax.f32 %v569, %v417
      %v578 = vmax.f32 %v570, %v419
      %v579 = vmax.f32 %v571, %v421
      %v580 = vmax.f32 %v572, %v423
      %v581 = vmax.f32 %v573, %v425
      %v582 = vmax.f32 %v574, %v427
      %v583 = vmax.f32 %v575, %v429
      %v584 = vmax.f32 %v576, %v431
      %v587 = vrot.slane %v413, 1
      %v588 = vrot.slane %v414, 1
      %v589 = vsel %vm456, %v587, %v588
      %v591 = vmax.f32 %v577, %v462
      %v592 = vmax.f32 %v578, %v465
      %v593 = vmax.f32 %v579, %v468
      %v594 = vmax.f32 %v580, %v471
      %v595 = vmax.f32 %v581, %v474
      %v596 = vmax.f32 %v582, %v477
      %v597 = vmax.f32 %v583, %v480
      %v598 = vmax.f32 %v584, %v589
      %v599 = vpack.c.bf16 %v462, %v531
      %v600 = vpack.c.bf16 %v465, %v534
      %v601 = vpack.c.bf16 %v468, %v537
      %v602 = vpack.c.bf16 %v471, %v540
      %v603 = vpack.c.bf16 %v474, %v543
      %v604 = vpack.c.bf16 %v477, %v546
      %v605 = vpack.c.bf16 %v480, %v549
      %v606 = vpack.c.bf16 %v589, %v552
      %v607 = vpack.c.bf16 %v417, %v416
      %v608 = vpack.c.bf16 %v419, %v418
      %v609 = vpack.c.bf16 %v421, %v420
      %v610 = vpack.c.bf16 %v423, %v422
      %v611 = vpack.c.bf16 %v425, %v424
      %v612 = vpack.c.bf16 %v427, %v426
      %v613 = vpack.c.bf16 %v429, %v428
      %v614 = vpack.c.bf16 %v431, %v430
      %v615 = vld [vmem:[%s2] sm:$0x3]
      %v616 = vld [vmem:[%s3] sm:$0x1]
      %v618 = vlaneseq
      %v619 = vshrl.u32 %v618, 7
      %v620 = vsub.s32 0, %v619
      %v621 = vrot.slane %v616, %v620
      %vm623 = vcmask 31744
      %v625 = vsel %vm623, %v599, 0
      %v628 = vsel %vm623, %v600, 0
      %v631 = vsel %vm623, %v601, 0
      %v634 = vsel %vm623, %v602, 0
      %v637 = vsel %vm623, %v603, 0
      %v640 = vsel %vm623, %v604, 0
      %v643 = vsel %vm623, %v605, 0
      %v646 = vsel %vm623, %v606, 0
      %v649 = vsel %vm623, %v607, 0
      %v652 = vsel %vm623, %v608, 0
      %v655 = vsel %vm623, %v609, 0
      %v658 = vsel %vm623, %v610, 0
      %v661 = vsel %vm623, %v611, 0
      %v664 = vsel %vm623, %v612, 0
      %v667 = vsel %vm623, %v613, 0
      %v670 = vsel %vm623, %v614, 0
      %vm672 = vcmask 1041408
      %v674 = vsel %vm672, %v615, 0
      %676 = vmatprep.subr.bf16.mxu0 0
      %677 = vmatpush1.bf16.msra.mxu0 %v674
      %678 = vmatprep.subr.bf16.mxu0 0
      %679 = vmatpush1.bf16.msra.mxu0 0
      %680 = vmatprep.subr.bf16.mxu0 0
      %681 = vmatpush1.bf16.msra.mxu0 0
      %682 = vmatprep.subr.bf16.mxu0 0
      %683 = vmatpush1.bf16.msra.mxu0 0
      %684 = vmatprep.subr.bf16.mxu0 0
      %685 = vmatpush1.bf16.msra.mxu0 0
      %686 = vmatprep.subr.bf16.mxu0 0
      %687 = vmatpush1.bf16.msra.mxu0 0
      %688 = vmatprep.subr.bf16.mxu0 0
      %689 = vmatpush1.bf16.msra.mxu0 0
      %690 = vmatprep.subr.bf16.mxu0 0
      %691 = vmatpush1.bf16.msra.mxu0 0
      %692 = vmatprep.subr.bf16.mxu0 0
      %693 = vmatpush1.bf16.msra.mxu0 0
      %694 = vmatprep.subr.bf16.mxu0 0
      %695 = vmatpush1.bf16.msra.mxu0 0
      %696 = vmatprep.subr.bf16.mxu0 0
      %697 = vmatpush1.bf16.msra.mxu0 0
      %698 = vmatprep.subr.bf16.mxu0 0
      %699 = vmatpush1.bf16.msra.mxu0 0
      %700 = vmatprep.subr.bf16.mxu0 0
      %701 = vmatpush1.bf16.msra.mxu0 0
      %702 = vmatprep.subr.bf16.mxu0 0
      %703 = vmatpush1.bf16.msra.mxu0 0
      %704 = vmatprep.subr.bf16.mxu0 0
      %705 = vmatpush1.bf16.msra.mxu0 0
      %706 = vmatprep.subr.bf16.mxu0 0
      %707 = vmatpush1.bf16.msra.mxu0 0
      %708 = vmatprep.mubr.bf16.mxu0 0
      %709 = vmatmul.mubr.bf16.gmra.mrb[0].mxu0 %v625
      %v710 = vpop.f32.mrb[0].mxu0
      %v711 = vadd.f32 %v621, %v710
      %v712 = vpop.f32.mrb[0].mxu0
      %v713 = vpop.f32.mrb[0].mxu0
      %v714 = vadd.f32 %v621, %v713
      %v715 = vpop.f32.mrb[0].mxu0
      %716 = vmatprep.mubr.bf16.mxu0 0
      %717 = vmatmul.mubr.bf16.gmra.mrb[0].mxu0 %v628
      %v718 = vpop.f32.mrb[0].mxu0
      %v719 = vadd.f32 %v621, %v718
      %v720 = vpop.f32.mrb[0].mxu0
      %v721 = vpop.f32.mrb[0].mxu0
      %v722 = vadd.f32 %v621, %v721
      %v723 = vpop.f32.mrb[0].mxu0
      %724 = vmatprep.mubr.bf16.mxu0 0
      %725 = vmatmul.mubr.bf16.gmra.mrb[0].mxu0 %v631
      %v726 = vpop.f32.mrb[0].mxu0
      %v727 = vadd.f32 %v621, %v726
      %v728 = vpop.f32.mrb[0].mxu0
      %v729 = vpop.f32.mrb[0].mxu0
      %v730 = vadd.f32 %v621, %v729
      %v731 = vpop.f32.mrb[0].mxu0
      %732 = vmatprep.mubr.bf16.mxu0 0
      %733 = vmatmul.mubr.bf16.gmra.mrb[0].mxu0 %v634
      %v734 = vpop.f32.mrb[0].mxu0
      %v735 = vadd.f32 %v621, %v734
      %v736 = vpop.f32.mrb[0].mxu0
      %v737 = vpop.f32.mrb[0].mxu0
      %v738 = vadd.f32 %v621, %v737
      %v739 = vpop.f32.mrb[0].mxu0
      %740 = vmatprep.mubr.bf16.mxu0 0
      %741 = vmatmul.mubr.bf16.gmra.mrb[0].mxu0 %v637
      %v742 = vpop.f32.mrb[0].mxu0
      %v743 = vadd.f32 %v621, %v742
      %v744 = vpop.f32.mrb[0].mxu0
      %v745 = vpop.f32.mrb[0].mxu0
      %v746 = vadd.f32 %v621, %v745
      %v747 = vpop.f32.mrb[0].mxu0
      %748 = vmatprep.mubr.bf16.mxu0 0
      %749 = vmatmul.mubr.bf16.gmra.mrb[0].mxu0 %v640
      %v750 = vpop.f32.mrb[0].mxu0
      %v751 = vadd.f32 %v621, %v750
      %v752 = vpop.f32.mrb[0].mxu0
      %v753 = vpop.f32.mrb[0].mxu0
      %v754 = vadd.f32 %v621, %v753
      %v755 = vpop.f32.mrb[0].mxu0
      %756 = vmatprep.mubr.bf16.mxu0 0
      %757 = vmatmul.mubr.bf16.gmra.mrb[0].mxu0 %v643
      %v758 = vpop.f32.mrb[0].mxu0
      %v759 = vadd.f32 %v621, %v758
      %v760 = vpop.f32.mrb[0].mxu0
      %v761 = vpop.f32.mrb[0].mxu0
      %v762 = vadd.f32 %v621, %v761
      %v763 = vpop.f32.mrb[0].mxu0
      %764 = vmatprep.mubr.bf16.mxu0 0
      %765 = vmatmul.mubr.bf16.gmra.mrb[0].mxu0 %v646
      %v766 = vpop.f32.mrb[0].mxu0
      %v767 = vadd.f32 %v621, %v766
      %v768 = vpop.f32.mrb[0].mxu0
      %v769 = vpop.f32.mrb[0].mxu0
      %v770 = vadd.f32 %v621, %v769
      %v771 = vpop.f32.mrb[0].mxu0
      %772 = vmatprep.mubr.bf16.mxu0 0
      %773 = vmatmul.mubr.bf16.gmra.mrb[0].mxu0 %v649
      %v774 = vpop.f32.mrb[0].mxu0
      %v775 = vadd.f32 %v621, %v774
      %v776 = vpop.f32.mrb[0].mxu0
      %v777 = vpop.f32.mrb[0].mxu0
      %v778 = vadd.f32 %v621, %v777
      %v779 = vpop.f32.mrb[0].mxu0
      %780 = vmatprep.mubr.bf16.mxu0 0
      %781 = vmatmul.mubr.bf16.gmra.mrb[0].mxu0 %v652
      %v782 = vpop.f32.mrb[0].mxu0
      %v783 = vadd.f32 %v621, %v782
      %v784 = vpop.f32.mrb[0].mxu0
      %v785 = vpop.f32.mrb[0].mxu0
      %v786 = vadd.f32 %v621, %v785
      %v787 = vpop.f32.mrb[0].mxu0
      %788 = vmatprep.mubr.bf16.mxu0 0
      %789 = vmatmul.mubr.bf16.gmra.mrb[0].mxu0 %v655
      %v790 = vpop.f32.mrb[0].mxu0
      %v791 = vadd.f32 %v621, %v790
      %v792 = vpop.f32.mrb[0].mxu0
      %v793 = vpop.f32.mrb[0].mxu0
      %v794 = vadd.f32 %v621, %v793
      %v795 = vpop.f32.mrb[0].mxu0
      %796 = vmatprep.mubr.bf16.mxu0 0
      %797 = vmatmul.mubr.bf16.gmra.mrb[0].mxu0 %v658
      %v798 = vpop.f32.mrb[0].mxu0
      %v799 = vadd.f32 %v621, %v798
      %v800 = vpop.f32.mrb[0].mxu0
      %v801 = vpop.f32.mrb[0].mxu0
      %v802 = vadd.f32 %v621, %v801
      %v803 = vpop.f32.mrb[0].mxu0
      %804 = vmatprep.mubr.bf16.mxu0 0
      %805 = vmatmul.mubr.bf16.gmra.mrb[0].mxu0 %v661
      %v806 = vpop.f32.mrb[0].mxu0
      %v807 = vadd.f32 %v621, %v806
      %v808 = vpop.f32.mrb[0].mxu0
      %v809 = vpop.f32.mrb[0].mxu0
      %v810 = vadd.f32 %v621, %v809
      %v811 = vpop.f32.mrb[0].mxu0
      %812 = vmatprep.mubr.bf16.mxu0 0
      %813 = vmatmul.mubr.bf16.gmra.mrb[0].mxu0 %v664
      %v814 = vpop.f32.mrb[0].mxu0
      %v815 = vadd.f32 %v621, %v814
      %v816 = vpop.f32.mrb[0].mxu0
      %v817 = vpop.f32.mrb[0].mxu0
      %v818 = vadd.f32 %v621, %v817
      %v819 = vpop.f32.mrb[0].mxu0
      %820 = vmatprep.mubr.bf16.mxu0 0
      %821 = vmatmul.mubr.bf16.gmra.mrb[0].mxu0 %v667
      %v822 = vpop.f32.mrb[0].mxu0
      %v823 = vadd.f32 %v621, %v822
      %v824 = vpop.f32.mrb[0].mxu0
      %v825 = vpop.f32.mrb[0].mxu0
      %v826 = vadd.f32 %v621, %v825
      %v827 = vpop.f32.mrb[0].mxu0
      %828 = vmatprep.mubr.bf16.mxu0 0
      %829 = vmatmul.mubr.bf16.gmra.mrb[0].mxu0 %v670
      %v830 = vpop.f32.mrb[0].mxu0
      %v831 = vadd.f32 %v621, %v830
      %v832 = vpop.f32.mrb[0].mxu0
      %v833 = vpop.f32.mrb[0].mxu0
      %v834 = vadd.f32 %v621, %v833
      %v835 = vpop.f32.mrb[0].mxu0
      %836 = vdwg.mxu0
      %v837 = vmax.f32 %v711, 0.0
      %v838 = vmax.f32 %v714, 0.0
      %v839 = vmax.f32 %v719, 0.0
      %v840 = vmax.f32 %v722, 0.0
      %v841 = vmax.f32 %v727, 0.0
      %v842 = vmax.f32 %v730, 0.0
      %v843 = vmax.f32 %v735, 0.0
      %v844 = vmax.f32 %v738, 0.0
      %v845 = vmax.f32 %v743, 0.0
      %v846 = vmax.f32 %v746, 0.0
      %v847 = vmax.f32 %v751, 0.0
      %v848 = vmax.f32 %v754, 0.0
      %v849 = vmax.f32 %v759, 0.0
      %v850 = vmax.f32 %v762, 0.0
      %v851 = vmax.f32 %v767, 0.0
      %v852 = vmax.f32 %v770, 0.0
      %v853 = vmax.f32 %v775, 0.0
      %v854 = vmax.f32 %v778, 0.0
      %v855 = vmax.f32 %v783, 0.0
      %v856 = vmax.f32 %v786, 0.0
      %v857 = vmax.f32 %v791, 0.0
      %v858 = vmax.f32 %v794, 0.0
      %v859 = vmax.f32 %v799, 0.0
      %v860 = vmax.f32 %v802, 0.0
      %v861 = vmax.f32 %v807, 0.0
      %v862 = vmax.f32 %v810, 0.0
      %v863 = vmax.f32 %v815, 0.0
      %v864 = vmax.f32 %v818, 0.0
      %v865 = vmax.f32 %v823, 0.0
      %v866 = vmax.f32 %v826, 0.0
      %v867 = vmax.f32 %v831, 0.0
      %v868 = vmax.f32 %v834, 0.0
      %v869 = vmin.f32 %v837, 6.0
      %v870 = vmin.f32 %v838, 6.0
      %v871 = vmin.f32 %v839, 6.0
      %v872 = vmin.f32 %v840, 6.0
      %v873 = vmin.f32 %v841, 6.0
      %v874 = vmin.f32 %v842, 6.0
      %v875 = vmin.f32 %v843, 6.0
      %v876 = vmin.f32 %v844, 6.0
      %v877 = vmin.f32 %v845, 6.0
      %v878 = vmin.f32 %v846, 6.0
      %v879 = vmin.f32 %v847, 6.0
      %v880 = vmin.f32 %v848, 6.0
      %v881 = vmin.f32 %v849, 6.0
      %v882 = vmin.f32 %v850, 6.0
      %v883 = vmin.f32 %v851, 6.0
      %v884 = vmin.f32 %v852, 6.0
      %v885 = vmin.f32 %v853, 6.0
      %v886 = vmin.f32 %v854, 6.0
      %v887 = vmin.f32 %v855, 6.0
      %v888 = vmin.f32 %v856, 6.0
      %v889 = vmin.f32 %v857, 6.0
      %v890 = vmin.f32 %v858, 6.0
      %v891 = vmin.f32 %v859, 6.0
      %v892 = vmin.f32 %v860, 6.0
      %v893 = vmin.f32 %v861, 6.0
      %v894 = vmin.f32 %v862, 6.0
      %v895 = vmin.f32 %v863, 6.0
      %v896 = vmin.f32 %v864, 6.0
      %v897 = vmin.f32 %v865, 6.0
      %v898 = vmin.f32 %v866, 6.0
      %v899 = vmin.f32 %v867, 6.0
      %v900 = vmin.f32 %v868, 6.0
      %vm901 = vcmask 130048
      %902 = vst.msk [vmem:[#allocation2] sm:$0xff] %vm901, 0.0
      %vm903 = vcmask 122880
      %904 = vst.msk [vmem:[#allocation2 + $0x8] sm:$0x1] %vm903, 0.0
      %905 = vst.msk [vmem:[#allocation2 + $0x10] sm:$0xff] %vm901, 0.0
      %906 = vst.msk [vmem:[#allocation2 + $0x18] sm:$0x1] %vm903, 0.0
      %907 = vst.msk [vmem:[#allocation2 + $0x20] sm:$0xff] %vm901, 0.0
      %908 = vst.msk [vmem:[#allocation2 + $0x28] sm:$0x1] %vm903, 0.0
      %909 = vst.msk [vmem:[#allocation2 + $0x30] sm:$0xff] %vm901, 0.0
      %910 = vst.msk [vmem:[#allocation2 + $0x38] sm:$0x1] %vm903, 0.0
      %911 = vst.msk [vmem:[#allocation2 + $0x40] sm:$0xff] %vm901, 0.0
      %912 = vst.msk [vmem:[#allocation2 + $0x48] sm:$0x1] %vm903, 0.0
      %913 = vst.msk [vmem:[#allocation2 + $0x50] sm:$0xff] %vm901, 0.0
      %914 = vst.msk [vmem:[#allocation2 + $0x58] sm:$0x1] %vm903, 0.0
      %915 = vst.msk [vmem:[#allocation2 + $0x60] sm:$0xff] %vm901, 0.0
      %916 = vst.msk [vmem:[#allocation2 + $0x68] sm:$0x1] %vm903, 0.0
      %917 = vst.msk [vmem:[#allocation2 + $0x70] sm:$0xff] %vm901, 0.0
      %918 = vst.msk [vmem:[#allocation2 + $0x78] sm:$0x1] %vm903, 0.0
      %919 = vst.msk [vmem:[#allocation2 + $0x80] sm:$0xff] %vm901, 0.0
      %920 = vst.msk [vmem:[#allocation2 + $0x88] sm:$0x1] %vm903, 0.0
      %921 = vst.msk [vmem:[#allocation2 + $0x90] sm:$0xff] %vm901, 0.0
      %922 = vst.msk [vmem:[#allocation2 + $0x98] sm:$0x1] %vm903, 0.0
      %923 = vst.msk [vmem:[#allocation2 + $0xa0] sm:$0xff] %vm901, 0.0
      %924 = vst.msk [vmem:[#allocation2 + $0xa8] sm:$0x1] %vm903, 0.0
      %925 = vst.msk [vmem:[#allocation2 + $0xb0] sm:$0xff] %vm901, 0.0
      %926 = vst.msk [vmem:[#allocation2 + $0xb8] sm:$0x1] %vm903, 0.0
      %927 = vst.msk [vmem:[#allocation2 + $0xc0] sm:$0xff] %vm901, 0.0
      %928 = vst.msk [vmem:[#allocation2 + $0xc8] sm:$0x1] %vm903, 0.0
      %929 = vst.msk [vmem:[#allocation2 + $0xd0] sm:$0xff] %vm901, 0.0
      %930 = vst.msk [vmem:[#allocation2 + $0xd8] sm:$0x1] %vm903, 0.0
      %931 = vst.msk [vmem:[#allocation2 + $0xe0] sm:$0xff] %vm901, 0.0
      %932 = vst.msk [vmem:[#allocation2 + $0xe8] sm:$0x1] %vm903, 0.0
      %933 = vst.msk [vmem:[#allocation2 + $0xf0] sm:$0xff] %vm901, 0.0
      %934 = vst.msk [vmem:[#allocation2 + $0xf8] sm:$0x1] %vm903, 0.0
      %935 = vst.msk [vmem:[#allocation2 + $0x100] sm:$0xff] %vm901, 0.0
      %936 = vst.msk [vmem:[#allocation2 + $0x108] sm:$0x1] %vm903, 0.0
      %937 = vst.msk [vmem:[#allocation2 + $0x110] sm:$0xff] %vm901, 0.0
      %938 = vst.msk [vmem:[#allocation2 + $0x118] sm:$0x1] %vm903, 0.0
      %939 = vst.msk [vmem:[#allocation3] sm:$0xff] %vm901, 0.0
      %940 = vst.msk [vmem:[#allocation3 + $0x8] sm:$0x1] %vm903, 0.0
      %941 = vst.msk [vmem:[#allocation3 + $0x10] sm:$0xff] %vm901, 0.0
      %942 = vst.msk [vmem:[#allocation3 + $0x18] sm:$0x1] %vm903, 0.0
      %943 = vst.msk [vmem:[#allocation3 + $0x20] sm:$0xff] %vm901, 0.0
      %944 = vst.msk [vmem:[#allocation3 + $0x28] sm:$0x1] %vm903, 0.0
      %945 = vst.msk [vmem:[#allocation3 + $0x30] sm:$0xff] %vm901, 0.0
      %946 = vst.msk [vmem:[#allocation3 + $0x38] sm:$0x1] %vm903, 0.0
      %947 = vst.msk [vmem:[#allocation3 + $0x40] sm:$0xff] %vm901, 0.0
      %948 = vst.msk [vmem:[#allocation3 + $0x48] sm:$0x1] %vm903, 0.0
      %949 = vst.msk [vmem:[#allocation3 + $0x50] sm:$0xff] %vm901, 0.0
      %950 = vst.msk [vmem:[#allocation3 + $0x58] sm:$0x1] %vm903, 0.0
      %951 = vst.msk [vmem:[#allocation3 + $0x60] sm:$0xff] %vm901, 0.0
      %952 = vst.msk [vmem:[#allocation3 + $0x68] sm:$0x1] %vm903, 0.0
      %953 = vst.msk [vmem:[#allocation3 + $0x70] sm:$0xff] %vm901, 0.0
      %954 = vst.msk [vmem:[#allocation3 + $0x78] sm:$0x1] %vm903, 0.0
      %955 = vst.msk [vmem:[#allocation3 + $0x80] sm:$0xff] %vm901, 0.0
      %956 = vst.msk [vmem:[#allocation3 + $0x88] sm:$0x1] %vm903, 0.0
      %957 = vst.msk [vmem:[#allocation3 + $0x90] sm:$0xff] %vm901, 0.0
      %958 = vst.msk [vmem:[#allocation3 + $0x98] sm:$0x1] %vm903, 0.0
      %959 = vst.msk [vmem:[#allocation3 + $0xa0] sm:$0xff] %vm901, 0.0
      %960 = vst.msk [vmem:[#allocation3 + $0xa8] sm:$0x1] %vm903, 0.0
      %961 = vst.msk [vmem:[#allocation3 + $0xb0] sm:$0xff] %vm901, 0.0
      %962 = vst.msk [vmem:[#allocation3 + $0xb8] sm:$0x1] %vm903, 0.0
      %963 = vst.msk [vmem:[#allocation3 + $0xc0] sm:$0xff] %vm901, 0.0
      %964 = vst.msk [vmem:[#allocation3 + $0xc8] sm:$0x1] %vm903, 0.0
      %965 = vst.msk [vmem:[#allocation3 + $0xd0] sm:$0xff] %vm901, 0.0
      %966 = vst.msk [vmem:[#allocation3 + $0xd8] sm:$0x1] %vm903, 0.0
      %967 = vst.msk [vmem:[#allocation3 + $0xe0] sm:$0xff] %vm901, 0.0
      %968 = vst.msk [vmem:[#allocation3 + $0xe8] sm:$0x1] %vm903, 0.0
      %969 = vst.msk [vmem:[#allocation3 + $0xf0] sm:$0xff] %vm901, 0.0
      %970 = vst.msk [vmem:[#allocation3 + $0xf8] sm:$0x1] %vm903, 0.0
      %971 = vst.msk [vmem:[#allocation3 + $0x100] sm:$0xff] %vm901, 0.0
      %972 = vst.msk [vmem:[#allocation3 + $0x108] sm:$0x1] %vm903, 0.0
      %973 = vst.msk [vmem:[#allocation3 + $0x110] sm:$0xff] %vm901, 0.0
      %974 = vst.msk [vmem:[#allocation3 + $0x118] sm:$0x1] %vm903, 0.0
      %s975 = scalar_lea.vmem [#allocation2], 16
      %976 = vst.msk [vmem:[%s975 + $0x1] sm:$0xff] %vm901, %v869
      %977 = vst.msk [vmem:[%s975 + $0x11] sm:$0xff] %vm901, %v870
      %978 = vst.msk [vmem:[%s975 + $0x21] sm:$0xff] %vm901, %v871
      %979 = vst.msk [vmem:[%s975 + $0x31] sm:$0xff] %vm901, %v872
      %980 = vst.msk [vmem:[%s975 + $0x41] sm:$0xff] %vm901, %v873
      %981 = vst.msk [vmem:[%s975 + $0x51] sm:$0xff] %vm901, %v874
      %982 = vst.msk [vmem:[%s975 + $0x61] sm:$0xff] %vm901, %v875
      %983 = vst.msk [vmem:[%s975 + $0x71] sm:$0xff] %vm901, %v876
      %984 = vst.msk [vmem:[%s975 + $0x81] sm:$0xff] %vm901, %v877
      %985 = vst.msk [vmem:[%s975 + $0x91] sm:$0xff] %vm901, %v878
      %986 = vst.msk [vmem:[%s975 + $0xa1] sm:$0xff] %vm901, %v879
      %987 = vst.msk [vmem:[%s975 + $0xb1] sm:$0xff] %vm901, %v880
      %988 = vst.msk [vmem:[%s975 + $0xc1] sm:$0xff] %vm901, %v881
      %989 = vst.msk [vmem:[%s975 + $0xd1] sm:$0xff] %vm901, %v882
      %990 = vst.msk [vmem:[%s975 + $0xe1] sm:$0xff] %vm901, %v883
      %991 = vst.msk [vmem:[%s975 + $0xf1] sm:$0xff] %vm901, %v884
      %s992 = scalar_lea.vmem [#allocation3], 16
      %993 = vst.msk [vmem:[%s992] sm:$0xff] %vm901, %v885
      %994 = vst.msk [vmem:[%s992 + $0x10] sm:$0xff] %vm901, %v886
      %995 = vst.msk [vmem:[%s992 + $0x20] sm:$0xff] %vm901, %v887
      %996 = vst.msk [vmem:[%s992 + $0x30] sm:$0xff] %vm901, %v888
      %997 = vst.msk [vmem:[%s992 + $0x40] sm:$0xff] %vm901, %v889
      %998 = vst.msk [vmem:[%s992 + $0x50] sm:$0xff] %vm901, %v890
      %999 = vst.msk [vmem:[%s992 + $0x60] sm:$0xff] %vm901, %v891
      %1000 = vst.msk [vmem:[%s992 + $0x70] sm:$0xff] %vm901, %v892
      %1001 = vst.msk [vmem:[%s992 + $0x80] sm:$0xff] %vm901, %v893
      %1002 = vst.msk [vmem:[%s992 + $0x90] sm:$0xff] %vm901, %v894
      %1003 = vst.msk [vmem:[%s992 + $0xa0] sm:$0xff] %vm901, %v895
      %1004 = vst.msk [vmem:[%s992 + $0xb0] sm:$0xff] %vm901, %v896
      %1005 = vst.msk [vmem:[%s992 + $0xc0] sm:$0xff] %vm901, %v897
      %1006 = vst.msk [vmem:[%s992 + $0xd0] sm:$0xff] %vm901, %v898
      %1007 = vst.msk [vmem:[%s992 + $0xe0] sm:$0xff] %vm901, %v899
      %1008 = vst.msk [vmem:[%s992 + $0xf0] sm:$0xff] %vm901, %v900
      %v1009 = vld [vmem:[#allocation2] sm:$0xff]
      %v1010 = vld [vmem:[#allocation2 + $0x8] sm:$0x1]
      %v1011 = vld [vmem:[#allocation2 + $0x10] sm:$0xff]
      %v1012 = vld [vmem:[#allocation2 + $0x18] sm:$0x1]
      %v1013 = vld [vmem:[#allocation2 + $0x20] sm:$0xff]
      %v1014 = vld [vmem:[#allocation2 + $0x28] sm:$0x1]
      %v1015 = vld [vmem:[#allocation2 + $0x30] sm:$0xff]
      %v1016 = vld [vmem:[#allocation2 + $0x38] sm:$0x1]
      %v1017 = vld [vmem:[#allocation2 + $0x40] sm:$0xff]
      %v1018 = vld [vmem:[#allocation2 + $0x48] sm:$0x1]
      %v1019 = vld [vmem:[#allocation2 + $0x50] sm:$0xff]
      %v1020 = vld [vmem:[#allocation2 + $0x58] sm:$0x1]
      %v1021 = vld [vmem:[#allocation2 + $0x60] sm:$0xff]
      %v1022 = vld [vmem:[#allocation2 + $0x68] sm:$0x1]
      %v1023 = vld [vmem:[#allocation2 + $0x70] sm:$0xff]
      %v1024 = vld [vmem:[#allocation2 + $0x78] sm:$0x1]
      %v1025 = vld [vmem:[#allocation2 + $0x80] sm:$0xff]
      %v1026 = vld [vmem:[#allocation2 + $0x88] sm:$0x1]
      %v1027 = vld [vmem:[#allocation2 + $0x90] sm:$0xff]
      %v1028 = vld [vmem:[#allocation2 + $0x98] sm:$0x1]
      %v1029 = vld [vmem:[#allocation2 + $0xa0] sm:$0xff]
      %v1030 = vld [vmem:[#allocation2 + $0xa8] sm:$0x1]
      %v1031 = vld [vmem:[#allocation2 + $0xb0] sm:$0xff]
      %v1032 = vld [vmem:[#allocation2 + $0xb8] sm:$0x1]
      %v1033 = vld [vmem:[#allocation2 + $0xc0] sm:$0xff]
      %v1034 = vld [vmem:[#allocation2 + $0xc8] sm:$0x1]
      %v1035 = vld [vmem:[#allocation2 + $0xd0] sm:$0xff]
      %v1036 = vld [vmem:[#allocation2 + $0xd8] sm:$0x1]
      %v1037 = vld [vmem:[#allocation2 + $0xe0] sm:$0xff]
      %v1038 = vld [vmem:[#allocation2 + $0xe8] sm:$0x1]
      %v1039 = vld [vmem:[#allocation2 + $0xf0] sm:$0xff]
      %v1040 = vld [vmem:[#allocation2 + $0xf8] sm:$0x1]
      %v1041 = vld [vmem:[#allocation2 + $0x100] sm:$0xff]
      %v1042 = vld [vmem:[#allocation2 + $0x108] sm:$0x1]
      %v1043 = vld [vmem:[#allocation2 + $0x110] sm:$0xff]
      %v1044 = vld [vmem:[#allocation2 + $0x118] sm:$0x1]
      %v1045 = vld [vmem:[#allocation3] sm:$0xff]
      %v1046 = vld [vmem:[#allocation3 + $0x8] sm:$0x1]
      %v1047 = vld [vmem:[#allocation3 + $0x10] sm:$0xff]
      %v1048 = vld [vmem:[#allocation3 + $0x18] sm:$0x1]
      %v1049 = vld [vmem:[#allocation3 + $0x20] sm:$0xff]
      %v1050 = vld [vmem:[#allocation3 + $0x28] sm:$0x1]
      %v1051 = vld [vmem:[#allocation3 + $0x30] sm:$0xff]
      %v1052 = vld [vmem:[#allocation3 + $0x38] sm:$0x1]
      %v1053 = vld [vmem:[#allocation3 + $0x40] sm:$0xff]
      %v1054 = vld [vmem:[#allocation3 + $0x48] sm:$0x1]
      %v1055 = vld [vmem:[#allocation3 + $0x50] sm:$0xff]
      %v1056 = vld [vmem:[#allocation3 + $0x58] sm:$0x1]
      %v1057 = vld [vmem:[#allocation3 + $0x60] sm:$0xff]
      %v1058 = vld [vmem:[#allocation3 + $0x68] sm:$0x1]
      %v1059 = vld [vmem:[#allocation3 + $0x70] sm:$0xff]
      %v1060 = vld [vmem:[#allocation3 + $0x78] sm:$0x1]
      %v1061 = vld [vmem:[#allocation3 + $0x80] sm:$0xff]
      %v1062 = vld [vmem:[#allocation3 + $0x88] sm:$0x1]
      %v1063 = vld [vmem:[#allocation3 + $0x90] sm:$0xff]
      %v1064 = vld [vmem:[#allocation3 + $0x98] sm:$0x1]
      %v1065 = vld [vmem:[#allocation3 + $0xa0] sm:$0xff]
      %v1066 = vld [vmem:[#allocation3 + $0xa8] sm:$0x1]
      %v1067 = vld [vmem:[#allocation3 + $0xb0] sm:$0xff]
      %v1068 = vld [vmem:[#allocation3 + $0xb8] sm:$0x1]
      %v1069 = vld [vmem:[#allocation3 + $0xc0] sm:$0xff]
      %v1070 = vld [vmem:[#allocation3 + $0xc8] sm:$0x1]
      %v1071 = vld [vmem:[#allocation3 + $0xd0] sm:$0xff]
      %v1072 = vld [vmem:[#allocation3 + $0xd8] sm:$0x1]
      %v1073 = vld [vmem:[#allocation3 + $0xe0] sm:$0xff]
      %v1074 = vld [vmem:[#allocation3 + $0xe8] sm:$0x1]
      %v1075 = vld [vmem:[#allocation3 + $0xf0] sm:$0xff]
      %v1076 = vld [vmem:[#allocation3 + $0xf8] sm:$0x1]
      %v1077 = vld [vmem:[#allocation3 + $0x100] sm:$0xff]
      %v1078 = vld [vmem:[#allocation3 + $0x108] sm:$0x1]
      %v1079 = vld [vmem:[#allocation3 + $0x110] sm:$0xff]
      %v1080 = vld [vmem:[#allocation3 + $0x118] sm:$0x1]
      %1089 = vrot.lane.b32.xlu0 %v1045, 8
      %v1090 = vpop.permute.xlu0 %1089
      %1091 = vrot.lane.b32.xlu0 %v1049, 8
      %v1092 = vpop.permute.xlu0 %1091
      %1093 = vrot.lane.b32.xlu0 %v1053, 8
      %v1094 = vpop.permute.xlu0 %1093
      %1095 = vrot.lane.b32.xlu0 %v1057, 8
      %v1096 = vpop.permute.xlu0 %1095
      %1097 = vrot.lane.b32.xlu0 %v1061, 8
      %v1098 = vpop.permute.xlu0 %1097
      %1099 = vrot.lane.b32.xlu0 %v1065, 8
      %v1100 = vpop.permute.xlu0 %1099
      %1101 = vrot.lane.b32.xlu0 %v1069, 8
      %v1102 = vpop.permute.xlu0 %1101
      %1103 = vrot.lane.b32.xlu0 %v1073, 8
      %v1104 = vpop.permute.xlu0 %1103
      %v1129 = vrot.slane %v1009, 1
      %v1130 = vrot.slane %v1010, 1
      %v1131 = vsel %vm456, %v1129, %v1130
      %v1132 = vrot.slane %v1013, 1
      %v1133 = vrot.slane %v1014, 1
      %v1134 = vsel %vm456, %v1132, %v1133
      %v1135 = vrot.slane %v1017, 1
      %v1136 = vrot.slane %v1018, 1
      %v1137 = vsel %vm456, %v1135, %v1136
      %v1138 = vrot.slane %v1021, 1
      %v1139 = vrot.slane %v1022, 1
      %v1140 = vsel %vm456, %v1138, %v1139
      %v1141 = vrot.slane %v1025, 1
      %v1142 = vrot.slane %v1026, 1
      %v1143 = vsel %vm456, %v1141, %v1142
      %v1144 = vrot.slane %v1029, 1
      %v1145 = vrot.slane %v1030, 1
      %v1146 = vsel %vm456, %v1144, %v1145
      %v1147 = vrot.slane %v1033, 1
      %v1148 = vrot.slane %v1034, 1
      %v1149 = vsel %vm456, %v1147, %v1148
      %v1150 = vrot.slane %v1037, 1
      %v1151 = vrot.slane %v1038, 1
      %v1152 = vsel %vm456, %v1150, %v1151
      %1153 = vrot.lane.b32.xlu0 %v1131, 16
      %v1154 = vpop.permute.xlu0 %1153
      %1155 = vrot.lane.b32.xlu0 %v1134, 16
      %v1156 = vpop.permute.xlu0 %1155
      %1157 = vrot.lane.b32.xlu0 %v1137, 16
      %v1158 = vpop.permute.xlu0 %1157
      %1159 = vrot.lane.b32.xlu0 %v1140, 16
      %v1160 = vpop.permute.xlu0 %1159
      %1161 = vrot.lane.b32.xlu0 %v1143, 16
      %v1162 = vpop.permute.xlu0 %1161
      %1163 = vrot.lane.b32.xlu0 %v1146, 16
      %v1164 = vpop.permute.xlu0 %1163
      %1165 = vrot.lane.b32.xlu0 %v1149, 16
      %v1166 = vpop.permute.xlu0 %1165
      %1167 = vrot.lane.b32.xlu0 %v1152, 16
      %v1168 = vpop.permute.xlu0 %1167
      %1185 = vrot.lane.b32.xlu0 %v1011, 24
      %v1186 = vpop.permute.xlu0 %1185
      %1187 = vrot.lane.b32.xlu0 %v1015, 24
      %v1188 = vpop.permute.xlu0 %1187
      %1189 = vrot.lane.b32.xlu0 %v1019, 24
      %v1190 = vpop.permute.xlu0 %1189
      %1191 = vrot.lane.b32.xlu0 %v1023, 24
      %v1192 = vpop.permute.xlu0 %1191
      %1193 = vrot.lane.b32.xlu0 %v1027, 24
      %v1194 = vpop.permute.xlu0 %1193
      %1195 = vrot.lane.b32.xlu0 %v1031, 24
      %v1196 = vpop.permute.xlu0 %1195
      %1197 = vrot.lane.b32.xlu0 %v1035, 24
      %v1198 = vpop.permute.xlu0 %1197
      %1199 = vrot.lane.b32.xlu0 %v1039, 24
      %v1200 = vpop.permute.xlu0 %1199
      %1217 = vrot.lane.b32.xlu0 %v1047, 32
      %v1218 = vpop.permute.xlu0 %1217
      %1219 = vrot.lane.b32.xlu0 %v1051, 32
      %v1220 = vpop.permute.xlu0 %1219
      %1221 = vrot.lane.b32.xlu0 %v1055, 32
      %v1222 = vpop.permute.xlu0 %1221
      %1223 = vrot.lane.b32.xlu0 %v1059, 32
      %v1224 = vpop.permute.xlu0 %1223
      %1225 = vrot.lane.b32.xlu0 %v1063, 32
      %v1226 = vpop.permute.xlu0 %1225
      %1227 = vrot.lane.b32.xlu0 %v1067, 32
      %v1228 = vpop.permute.xlu0 %1227
      %1229 = vrot.lane.b32.xlu0 %v1071, 32
      %v1230 = vpop.permute.xlu0 %1229
      %1231 = vrot.lane.b32.xlu0 %v1075, 32
      %v1232 = vpop.permute.xlu0 %1231
      %v1249 = vrot.slane %v1011, 1
      %v1250 = vrot.slane %v1012, 1
      %v1251 = vsel %vm456, %v1249, %v1250
      %v1252 = vrot.slane %v1015, 1
      %v1253 = vrot.slane %v1016, 1
      %v1254 = vsel %vm456, %v1252, %v1253
      %v1255 = vrot.slane %v1019, 1
      %v1256 = vrot.slane %v1020, 1
      %v1257 = vsel %vm456, %v1255, %v1256
      %v1258 = vrot.slane %v1023, 1
      %v1259 = vrot.slane %v1024, 1
      %v1260 = vsel %vm456, %v1258, %v1259
      %v1261 = vrot.slane %v1027, 1
      %v1262 = vrot.slane %v1028, 1
      %v1263 = vsel %vm456, %v1261, %v1262
      %v1264 = vrot.slane %v1031, 1
      %v1265 = vrot.slane %v1032, 1
      %v1266 = vsel %vm456, %v1264, %v1265
      %v1267 = vrot.slane %v1035, 1
      %v1268 = vrot.slane %v1036, 1
      %v1269 = vsel %vm456, %v1267, %v1268
      %v1270 = vrot.slane %v1039, 1
      %v1271 = vrot.slane %v1040, 1
      %v1272 = vsel %vm456, %v1270, %v1271
      %1273 = vrot.lane.b32.xlu0 %v1251, 40
      %v1274 = vpop.permute.xlu0 %1273
      %1275 = vrot.lane.b32.xlu0 %v1254, 40
      %v1276 = vpop.permute.xlu0 %1275
      %1277 = vrot.lane.b32.xlu0 %v1257, 40
      %v1278 = vpop.permute.xlu0 %1277
      %1279 = vrot.lane.b32.xlu0 %v1260, 40
      %v1280 = vpop.permute.xlu0 %1279
      %1281 = vrot.lane.b32.xlu0 %v1263, 40
      %v1282 = vpop.permute.xlu0 %1281
      %1283 = vrot.lane.b32.xlu0 %v1266, 40
      %v1284 = vpop.permute.xlu0 %1283
      %1285 = vrot.lane.b32.xlu0 %v1269, 40
      %v1286 = vpop.permute.xlu0 %1285
      %1287 = vrot.lane.b32.xlu0 %v1272, 40
      %v1288 = vpop.permute.xlu0 %1287
      %1298 = vrot.lane.b32.xlu0 %v1013, 48
      %v1299 = vpop.permute.xlu0 %1298
      %1300 = vrot.lane.b32.xlu0 %v1017, 48
      %v1301 = vpop.permute.xlu0 %1300
      %1302 = vrot.lane.b32.xlu0 %v1021, 48
      %v1303 = vpop.permute.xlu0 %1302
      %1304 = vrot.lane.b32.xlu0 %v1025, 48
      %v1305 = vpop.permute.xlu0 %1304
      %1306 = vrot.lane.b32.xlu0 %v1029, 48
      %v1307 = vpop.permute.xlu0 %1306
      %1308 = vrot.lane.b32.xlu0 %v1033, 48
      %v1309 = vpop.permute.xlu0 %1308
      %1310 = vrot.lane.b32.xlu0 %v1037, 48
      %v1311 = vpop.permute.xlu0 %1310
      %1312 = vrot.lane.b32.xlu0 %v1041, 48
      %v1313 = vpop.permute.xlu0 %1312
      %1323 = vrot.lane.b32.xlu0 %v1049, 56
      %v1324 = vpop.permute.xlu0 %1323
      %1325 = vrot.lane.b32.xlu0 %v1053, 56
      %v1326 = vpop.permute.xlu0 %1325
      %1327 = vrot.lane.b32.xlu0 %v1057, 56
      %v1328 = vpop.permute.xlu0 %1327
      %1329 = vrot.lane.b32.xlu0 %v1061, 56
      %v1330 = vpop.permute.xlu0 %1329
      %1331 = vrot.lane.b32.xlu0 %v1065, 56
      %v1332 = vpop.permute.xlu0 %1331
      %1333 = vrot.lane.b32.xlu0 %v1069, 56
      %v1334 = vpop.permute.xlu0 %1333
      %1335 = vrot.lane.b32.xlu0 %v1073, 56
      %v1336 = vpop.permute.xlu0 %1335
      %1337 = vrot.lane.b32.xlu0 %v1077, 56
      %v1338 = vpop.permute.xlu0 %1337
      %v1348 = vrot.slane %v1041, 1
      %v1349 = vrot.slane %v1042, 1
      %v1350 = vsel %vm456, %v1348, %v1349
      %1351 = vrot.lane.b32.xlu0 %v1134, 64
      %v1352 = vpop.permute.xlu0 %1351
      %1353 = vrot.lane.b32.xlu0 %v1137, 64
      %v1354 = vpop.permute.xlu0 %1353
      %1355 = vrot.lane.b32.xlu0 %v1140, 64
      %v1356 = vpop.permute.xlu0 %1355
      %1357 = vrot.lane.b32.xlu0 %v1143, 64
      %v1358 = vpop.permute.xlu0 %1357
      %1359 = vrot.lane.b32.xlu0 %v1146, 64
      %v1360 = vpop.permute.xlu0 %1359
      %1361 = vrot.lane.b32.xlu0 %v1149, 64
      %v1362 = vpop.permute.xlu0 %1361
      %1363 = vrot.lane.b32.xlu0 %v1152, 64
      %v1364 = vpop.permute.xlu0 %1363
      %1365 = vrot.lane.b32.xlu0 %v1350, 64
      %v1366 = vpop.permute.xlu0 %1365
      %vm1375 = vcmask 64512
      %v1376 = vsel %vm1375, %v1009, %v1090
      %v1377 = vsel %vm1375, %v1013, %v1092
      %v1378 = vsel %vm1375, %v1017, %v1094
      %v1379 = vsel %vm1375, %v1021, %v1096
      %v1380 = vsel %vm1375, %v1025, %v1098
      %v1381 = vsel %vm1375, %v1029, %v1100
      %v1382 = vsel %vm1375, %v1033, %v1102
      %v1383 = vsel %vm1375, %v1037, %v1104
      %v1384 = vsel %vm901, %v1376, %v1154
      %v1385 = vsel %vm901, %v1377, %v1156
      %v1386 = vsel %vm901, %v1378, %v1158
      %v1387 = vsel %vm901, %v1379, %v1160
      %v1388 = vsel %vm901, %v1380, %v1162
      %v1389 = vsel %vm901, %v1381, %v1164
      %v1390 = vsel %vm901, %v1382, %v1166
      %v1391 = vsel %vm901, %v1383, %v1168
      %vm1392 = vcmask 195584
      %v1393 = vsel %vm1392, %v1384, %v1186
      %v1394 = vsel %vm1392, %v1385, %v1188
      %v1395 = vsel %vm1392, %v1386, %v1190
      %v1396 = vsel %vm1392, %v1387, %v1192
      %v1397 = vsel %vm1392, %v1388, %v1194
      %v1398 = vsel %vm1392, %v1389, %v1196
      %v1399 = vsel %vm1392, %v1390, %v1198
      %v1400 = vsel %vm1392, %v1391, %v1200
      %vm1401 = vcmask 261120
      %v1402 = vsel %vm1401, %v1393, %v1218
      %v1403 = vsel %vm1401, %v1394, %v1220
      %v1404 = vsel %vm1401, %v1395, %v1222
      %v1405 = vsel %vm1401, %v1396, %v1224
      %v1406 = vsel %vm1401, %v1397, %v1226
      %v1407 = vsel %vm1401, %v1398, %v1228
      %v1408 = vsel %vm1401, %v1399, %v1230
      %v1409 = vsel %vm1401, %v1400, %v1232
      %vm1410 = vcmask 326656
      %v1411 = vsel %vm1410, %v1402, %v1274
      %v1412 = vsel %vm1410, %v1403, %v1276
      %v1413 = vsel %vm1410, %v1404, %v1278
      %v1414 = vsel %vm1410, %v1405, %v1280
      %v1415 = vsel %vm1410, %v1406, %v1282
      %v1416 = vsel %vm1410, %v1407, %v1284
      %v1417 = vsel %vm1410, %v1408, %v1286
      %v1418 = vsel %vm1410, %v1409, %v1288
      %vm1419 = vcmask 392192
      %v1420 = vsel %vm1419, %v1411, %v1299
      %v1421 = vsel %vm1419, %v1412, %v1301
      %v1422 = vsel %vm1419, %v1413, %v1303
      %v1423 = vsel %vm1419, %v1414, %v1305
      %v1424 = vsel %vm1419, %v1415, %v1307
      %v1425 = vsel %vm1419, %v1416, %v1309
      %v1426 = vsel %vm1419, %v1417, %v1311
      %v1427 = vsel %vm1419, %v1418, %v1313
      %vm1428 = vcmask 457728
      %v1429 = vsel %vm1428, %v1420, %v1324
      %v1430 = vsel %vm1428, %v1421, %v1326
      %v1431 = vsel %vm1428, %v1422, %v1328
      %v1432 = vsel %vm1428, %v1423, %v1330
      %v1433 = vsel %vm1428, %v1424, %v1332
      %v1434 = vsel %vm1428, %v1425, %v1334
      %v1435 = vsel %vm1428, %v1426, %v1336
      %v1436 = vsel %vm1428, %v1427, %v1338
      %vm1437 = vcmask 523264
      %v1438 = vsel %vm1437, %v1429, %v1352
      %v1439 = vsel %vm1437, %v1430, %v1354
      %v1440 = vsel %vm1437, %v1431, %v1356
      %v1441 = vsel %vm1437, %v1432, %v1358
      %v1442 = vsel %vm1437, %v1433, %v1360
      %v1443 = vsel %vm1437, %v1434, %v1362
      %v1444 = vsel %vm1437, %v1435, %v1364
      %v1445 = vsel %vm1437, %v1436, %v1366
      %v1446 = vpack.c.bf16 %v1439, %v1438
      %v1447 = vpack.c.bf16 %v1441, %v1440
      %v1448 = vpack.c.bf16 %v1443, %v1442
      %v1449 = vpack.c.bf16 %v1445, %v1444
      %v1450 = vld [vmem:[%s4] sm:$0xf]
      %v1451 = vld [vmem:[%s4 + $0x4] sm:$0xf]
      %v1452 = vld [vmem:[%s4 + $0x8] sm:$0xf]
      %v1453 = vld [vmem:[%s4 + $0xc] sm:$0xf]
      %v1454 = vld [vmem:[%s4 + $0x10] sm:$0xf]
      %v1455 = vld [vmem:[%s4 + $0x14] sm:$0xf]
      %v1456 = vld [vmem:[%s4 + $0x18] sm:$0xf]
      %v1457 = vld [vmem:[%s4 + $0x1c] sm:$0xf]
      %v1458 = vld [vmem:[%s4 + $0x20] sm:$0xf]
      %v1459 = vld [vmem:[%s5] sm:$0x1]
      %v1461 = vlaneseq
      %v1462 = vshrl.u32 %v1461, 7
      %v1463 = vsub.s32 0, %v1462
      %v1464 = vrot.slane %v1459, %v1463
      %v1475 = vunpack.c.l.b16 %v1450
      %v1476 = vunpack.c.l.b16 %v1451
      %v1477 = vunpack.c.l.b16 %v1452
      %v1478 = vunpack.c.l.b16 %v1453
      %v1479 = vunpack.c.l.b16 %v1454
      %v1480 = vunpack.c.l.b16 %v1455
      %v1481 = vunpack.c.l.b16 %v1456
      %v1482 = vunpack.c.l.b16 %v1457
      %v1483 = vunpack.c.l.b16 %v1458
      %v1484 = vpack.c.b16 %v1476, %v1475
      %v1485 = vpack.c.b16 %v1478, %v1477
      %v1486 = vpack.c.b16 %v1480, %v1479
      %v1487 = vpack.c.b16 %v1482, %v1481
      %v1488 = vpack.c.b16 %v1483, %v1483
      %vm1493 = vcmask 588800
      %v1495 = vsel %vm1493, %v1446, 0
      %v1498 = vsel %vm1493, %v1447, 0
      %v1501 = vsel %vm1493, %v1448, 0
      %v1504 = vsel %vm1493, %v1449, 0
      %vm1506 = vcmask 1043456
      %v1508 = vsel %vm1506, %v1488, 0
      %1510 = vmatprep.subr.bf16.mxu0 0
      %1511 = vmatpush1.bf16.msra.mxu0 %v1484
      %1512 = vmatprep.subr.bf16.mxu0 0
      %1513 = vmatpush1.bf16.msra.mxu0 %v1485
      %1514 = vmatprep.subr.bf16.mxu0 0
      %1515 = vmatpush1.bf16.msra.mxu0 %v1486
      %1516 = vmatprep.subr.bf16.mxu0 0
      %1517 = vmatpush1.bf16.msra.mxu0 %v1487
      %1518 = vmatprep.subr.bf16.mxu0 0
      %1519 = vmatpush1.bf16.msra.mxu0 %v1508
      %1520 = vmatprep.subr.bf16.mxu0 0
      %1521 = vmatpush1.bf16.msra.mxu0 0
      %1522 = vmatprep.subr.bf16.mxu0 0
      %1523 = vmatpush1.bf16.msra.mxu0 0
      %1524 = vmatprep.subr.bf16.mxu0 0
      %1525 = vmatpush1.bf16.msra.mxu0 0
      %1526 = vmatprep.subr.bf16.mxu0 0
      %1527 = vmatpush1.bf16.msra.mxu0 0
      %1528 = vmatprep.subr.bf16.mxu0 0
      %1529 = vmatpush1.bf16.msra.mxu0 0
      %1530 = vmatprep.subr.bf16.mxu0 0
      %1531 = vmatpush1.bf16.msra.mxu0 0
      %1532 = vmatprep.subr.bf16.mxu0 0
      %1533 = vmatpush1.bf16.msra.mxu0 0
      %1534 = vmatprep.subr.bf16.mxu0 0
      %1535 = vmatpush1.bf16.msra.mxu0 0
      %1536 = vmatprep.subr.bf16.mxu0 0
      %1537 = vmatpush1.bf16.msra.mxu0 0
      %1538 = vmatprep.subr.bf16.mxu0 0
      %1539 = vmatpush1.bf16.msra.mxu0 0
      %1540 = vmatprep.subr.bf16.mxu0 0
      %1541 = vmatpush1.bf16.msra.mxu0 0
      %1542 = vmatprep.mubr.bf16.mxu0 0
      %1543 = vmatmul.mubr.bf16.gmra.mrb[0].mxu0 %v1495
      %v1544 = vpop.f32.mrb[0].mxu0
      %v1545 = vadd.f32 %v1464, %v1544
      %v1546 = vpop.f32.mrb[0].mxu0
      %v1547 = vpop.f32.mrb[0].mxu0
      %v1548 = vadd.f32 %v1464, %v1547
      %v1549 = vpop.f32.mrb[0].mxu0
      %1550 = vmatprep.mubr.bf16.mxu0 0
      %1551 = vmatmul.mubr.bf16.gmra.mrb[0].mxu0 %v1498
      %v1552 = vpop.f32.mrb[0].mxu0
      %v1553 = vadd.f32 %v1464, %v1552
      %v1554 = vpop.f32.mrb[0].mxu0
      %v1555 = vpop.f32.mrb[0].mxu0
      %v1556 = vadd.f32 %v1464, %v1555
      %v1557 = vpop.f32.mrb[0].mxu0
      %1558 = vmatprep.mubr.bf16.mxu0 0
      %1559 = vmatmul.mubr.bf16.gmra.mrb[0].mxu0 %v1501
      %v1560 = vpop.f32.mrb[0].mxu0
      %v1561 = vadd.f32 %v1464, %v1560
      %v1562 = vpop.f32.mrb[0].mxu0
      %v1563 = vpop.f32.mrb[0].mxu0
      %v1564 = vadd.f32 %v1464, %v1563
      %v1565 = vpop.f32.mrb[0].mxu0
      %1566 = vmatprep.mubr.bf16.mxu0 0
      %1567 = vmatmul.mubr.bf16.gmra.mrb[0].mxu0 %v1504
      %v1568 = vpop.f32.mrb[0].mxu0
      %v1569 = vadd.f32 %v1464, %v1568
      %v1570 = vpop.f32.mrb[0].mxu0
      %v1571 = vpop.f32.mrb[0].mxu0
      %v1572 = vadd.f32 %v1464, %v1571
      %v1573 = vpop.f32.mrb[0].mxu0
      %1574 = vdwg.mxu0
      %v1575 = vmax.f32 %v1545, 0.0
      %v1576 = vmax.f32 %v1548, 0.0
      %v1577 = vmax.f32 %v1553, 0.0
      %v1578 = vmax.f32 %v1556, 0.0
      %v1579 = vmax.f32 %v1561, 0.0
      %v1580 = vmax.f32 %v1564, 0.0
      %v1581 = vmax.f32 %v1569, 0.0
      %v1582 = vmax.f32 %v1572, 0.0
      %v1583 = vmin.f32 %v1575, 6.0
      %v1584 = vmin.f32 %v1576, 6.0
      %v1585 = vmin.f32 %v1577, 6.0
      %v1586 = vmin.f32 %v1578, 6.0
      %v1587 = vmin.f32 %v1579, 6.0
      %v1588 = vmin.f32 %v1580, 6.0
      %v1589 = vmin.f32 %v1581, 6.0
      %v1590 = vmin.f32 %v1582, 6.0
      %1591 = vrot.lane.b32.xlu0 %v1009, 120
      %v1592 = vpop.permute.xlu0 %1591
      %1593 = vrot.lane.b32.xlu0 %v1011, 120
      %v1594 = vpop.permute.xlu0 %1593
      %1595 = vrot.lane.b32.xlu0 %v1013, 120
      %v1596 = vpop.permute.xlu0 %1595
      %1597 = vrot.lane.b32.xlu0 %v1015, 120
      %v1598 = vpop.permute.xlu0 %1597
      %1599 = vrot.lane.b32.xlu0 %v1017, 120
      %v1600 = vpop.permute.xlu0 %1599
      %1601 = vrot.lane.b32.xlu0 %v1019, 120
      %v1602 = vpop.permute.xlu0 %1601
      %1603 = vrot.lane.b32.xlu0 %v1021, 120
      %v1604 = vpop.permute.xlu0 %1603
      %1605 = vrot.lane.b32.xlu0 %v1023, 120
      %v1606 = vpop.permute.xlu0 %1605
      %1607 = vrot.lane.b32.xlu0 %v1025, 120
      %v1608 = vpop.permute.xlu0 %1607
      %1609 = vrot.lane.b32.xlu0 %v1027, 120
      %v1610 = vpop.permute.xlu0 %1609
      %1611 = vrot.lane.b32.xlu0 %v1029, 120
      %v1612 = vpop.permute.xlu0 %1611
      %1613 = vrot.lane.b32.xlu0 %v1031, 120
      %v1614 = vpop.permute.xlu0 %1613
      %1615 = vrot.lane.b32.xlu0 %v1033, 120
      %v1616 = vpop.permute.xlu0 %1615
      %1617 = vrot.lane.b32.xlu0 %v1035, 120
      %v1618 = vpop.permute.xlu0 %1617
      %1619 = vrot.lane.b32.xlu0 %v1037, 120
      %v1620 = vpop.permute.xlu0 %1619
      %1621 = vrot.lane.b32.xlu0 %v1039, 120
      %v1622 = vpop.permute.xlu0 %1621
      %1639 = vrot.lane.b32.xlu0 %v1131, 8
      %v1640 = vpop.permute.xlu0 %1639
      %1641 = vrot.lane.b32.xlu0 %v1251, 8
      %v1642 = vpop.permute.xlu0 %1641
      %1643 = vrot.lane.b32.xlu0 %v1134, 8
      %v1644 = vpop.permute.xlu0 %1643
      %1645 = vrot.lane.b32.xlu0 %v1254, 8
      %v1646 = vpop.permute.xlu0 %1645
      %1647 = vrot.lane.b32.xlu0 %v1137, 8
      %v1648 = vpop.permute.xlu0 %1647
      %1649 = vrot.lane.b32.xlu0 %v1257, 8
      %v1650 = vpop.permute.xlu0 %1649
      %1651 = vrot.lane.b32.xlu0 %v1140, 8
      %v1652 = vpop.permute.xlu0 %1651
      %1653 = vrot.lane.b32.xlu0 %v1260, 8
      %v1654 = vpop.permute.xlu0 %1653
      %1655 = vrot.lane.b32.xlu0 %v1143, 8
      %v1656 = vpop.permute.xlu0 %1655
      %1657 = vrot.lane.b32.xlu0 %v1263, 8
      %v1658 = vpop.permute.xlu0 %1657
      %1659 = vrot.lane.b32.xlu0 %v1146, 8
      %v1660 = vpop.permute.xlu0 %1659
      %1661 = vrot.lane.b32.xlu0 %v1266, 8
      %v1662 = vpop.permute.xlu0 %1661
      %1663 = vrot.lane.b32.xlu0 %v1149, 8
      %v1664 = vpop.permute.xlu0 %1663
      %1665 = vrot.lane.b32.xlu0 %v1269, 8
      %v1666 = vpop.permute.xlu0 %1665
      %1667 = vrot.lane.b32.xlu0 %v1152, 8
      %v1668 = vpop.permute.xlu0 %1667
      %1669 = vrot.lane.b32.xlu0 %v1272, 8
      %v1670 = vpop.permute.xlu0 %1669
      %1687 = vrot.lane.b32.xlu0 %v1011, 16
      %v1688 = vpop.permute.xlu0 %1687
      %1689 = vrot.lane.b32.xlu0 %v1013, 16
      %v1690 = vpop.permute.xlu0 %1689
      %1691 = vrot.lane.b32.xlu0 %v1015, 16
      %v1692 = vpop.permute.xlu0 %1691
      %1693 = vrot.lane.b32.xlu0 %v1017, 16
      %v1694 = vpop.permute.xlu0 %1693
      %1695 = vrot.lane.b32.xlu0 %v1019, 16
      %v1696 = vpop.permute.xlu0 %1695
      %1697 = vrot.lane.b32.xlu0 %v1021, 16
      %v1698 = vpop.permute.xlu0 %1697
      %1699 = vrot.lane.b32.xlu0 %v1023, 16
      %v1700 = vpop.permute.xlu0 %1699
      %1701 = vrot.lane.b32.xlu0 %v1025, 16
      %v1702 = vpop.permute.xlu0 %1701
      %1703 = vrot.lane.b32.xlu0 %v1027, 16
      %v1704 = vpop.permute.xlu0 %1703
      %1705 = vrot.lane.b32.xlu0 %v1029, 16
      %v1706 = vpop.permute.xlu0 %1705
      %1707 = vrot.lane.b32.xlu0 %v1031, 16
      %v1708 = vpop.permute.xlu0 %1707
      %1709 = vrot.lane.b32.xlu0 %v1033, 16
      %v1710 = vpop.permute.xlu0 %1709
      %1711 = vrot.lane.b32.xlu0 %v1035, 16
      %v1712 = vpop.permute.xlu0 %1711
      %1713 = vrot.lane.b32.xlu0 %v1037, 16
      %v1714 = vpop.permute.xlu0 %1713
      %1715 = vrot.lane.b32.xlu0 %v1039, 16
      %v1716 = vpop.permute.xlu0 %1715
      %1717 = vrot.lane.b32.xlu0 %v1041, 16
      %v1718 = vpop.permute.xlu0 %1717
      %1735 = vrot.lane.b32.xlu0 %v1047, 24
      %v1736 = vpop.permute.xlu0 %1735
      %1737 = vrot.lane.b32.xlu0 %v1049, 24
      %v1738 = vpop.permute.xlu0 %1737
      %1739 = vrot.lane.b32.xlu0 %v1051, 24
      %v1740 = vpop.permute.xlu0 %1739
      %1741 = vrot.lane.b32.xlu0 %v1053, 24
      %v1742 = vpop.permute.xlu0 %1741
      %1743 = vrot.lane.b32.xlu0 %v1055, 24
      %v1744 = vpop.permute.xlu0 %1743
      %1745 = vrot.lane.b32.xlu0 %v1057, 24
      %v1746 = vpop.permute.xlu0 %1745
      %1747 = vrot.lane.b32.xlu0 %v1059, 24
      %v1748 = vpop.permute.xlu0 %1747
      %1749 = vrot.lane.b32.xlu0 %v1061, 24
      %v1750 = vpop.permute.xlu0 %1749
      %1751 = vrot.lane.b32.xlu0 %v1063, 24
      %v1752 = vpop.permute.xlu0 %1751
      %1753 = vrot.lane.b32.xlu0 %v1065, 24
      %v1754 = vpop.permute.xlu0 %1753
      %1755 = vrot.lane.b32.xlu0 %v1067, 24
      %v1756 = vpop.permute.xlu0 %1755
      %1757 = vrot.lane.b32.xlu0 %v1069, 24
      %v1758 = vpop.permute.xlu0 %1757
      %1759 = vrot.lane.b32.xlu0 %v1071, 24
      %v1760 = vpop.permute.xlu0 %1759
      %1761 = vrot.lane.b32.xlu0 %v1073, 24
      %v1762 = vpop.permute.xlu0 %1761
      %1763 = vrot.lane.b32.xlu0 %v1075, 24
      %v1764 = vpop.permute.xlu0 %1763
      %1765 = vrot.lane.b32.xlu0 %v1077, 24
      %v1766 = vpop.permute.xlu0 %1765
      %1783 = vrot.lane.b32.xlu0 %v1251, 32
      %v1784 = vpop.permute.xlu0 %1783
      %1785 = vrot.lane.b32.xlu0 %v1134, 32
      %v1786 = vpop.permute.xlu0 %1785
      %1787 = vrot.lane.b32.xlu0 %v1254, 32
      %v1788 = vpop.permute.xlu0 %1787
      %1789 = vrot.lane.b32.xlu0 %v1137, 32
      %v1790 = vpop.permute.xlu0 %1789
      %1791 = vrot.lane.b32.xlu0 %v1257, 32
      %v1792 = vpop.permute.xlu0 %1791
      %1793 = vrot.lane.b32.xlu0 %v1140, 32
      %v1794 = vpop.permute.xlu0 %1793
      %1795 = vrot.lane.b32.xlu0 %v1260, 32
      %v1796 = vpop.permute.xlu0 %1795
      %1797 = vrot.lane.b32.xlu0 %v1143, 32
      %v1798 = vpop.permute.xlu0 %1797
      %1799 = vrot.lane.b32.xlu0 %v1263, 32
      %v1800 = vpop.permute.xlu0 %1799
      %1801 = vrot.lane.b32.xlu0 %v1146, 32
      %v1802 = vpop.permute.xlu0 %1801
      %1803 = vrot.lane.b32.xlu0 %v1266, 32
      %v1804 = vpop.permute.xlu0 %1803
      %1805 = vrot.lane.b32.xlu0 %v1149, 32
      %v1806 = vpop.permute.xlu0 %1805
      %1807 = vrot.lane.b32.xlu0 %v1269, 32
      %v1808 = vpop.permute.xlu0 %1807
      %1809 = vrot.lane.b32.xlu0 %v1152, 32
      %v1810 = vpop.permute.xlu0 %1809
      %1811 = vrot.lane.b32.xlu0 %v1272, 32
      %v1812 = vpop.permute.xlu0 %1811
      %1813 = vrot.lane.b32.xlu0 %v1350, 32
      %v1814 = vpop.permute.xlu0 %1813
      %1832 = vrot.lane.b32.xlu0 %v1013, 40
      %v1833 = vpop.permute.xlu0 %1832
      %1834 = vrot.lane.b32.xlu0 %v1015, 40
      %v1835 = vpop.permute.xlu0 %1834
      %1836 = vrot.lane.b32.xlu0 %v1017, 40
      %v1837 = vpop.permute.xlu0 %1836
      %1838 = vrot.lane.b32.xlu0 %v1019, 40
      %v1839 = vpop.permute.xlu0 %1838
      %1840 = vrot.lane.b32.xlu0 %v1021, 40
      %v1841 = vpop.permute.xlu0 %1840
      %1842 = vrot.lane.b32.xlu0 %v1023, 40
      %v1843 = vpop.permute.xlu0 %1842
      %1844 = vrot.lane.b32.xlu0 %v1025, 40
      %v1845 = vpop.permute.xlu0 %1844
      %1846 = vrot.lane.b32.xlu0 %v1027, 40
      %v1847 = vpop.permute.xlu0 %1846
      %1848 = vrot.lane.b32.xlu0 %v1029, 40
      %v1849 = vpop.permute.xlu0 %1848
      %1850 = vrot.lane.b32.xlu0 %v1031, 40
      %v1851 = vpop.permute.xlu0 %1850
      %1852 = vrot.lane.b32.xlu0 %v1033, 40
      %v1853 = vpop.permute.xlu0 %1852
      %1854 = vrot.lane.b32.xlu0 %v1035, 40
      %v1855 = vpop.permute.xlu0 %1854
      %1856 = vrot.lane.b32.xlu0 %v1037, 40
      %v1857 = vpop.permute.xlu0 %1856
      %1858 = vrot.lane.b32.xlu0 %v1039, 40
      %v1859 = vpop.permute.xlu0 %1858
      %1860 = vrot.lane.b32.xlu0 %v1041, 40
      %v1861 = vpop.permute.xlu0 %1860
      %1862 = vrot.lane.b32.xlu0 %v1043, 40
      %v1863 = vpop.permute.xlu0 %1862
      %1881 = vrot.lane.b32.xlu0 %v1049, 48
      %v1882 = vpop.permute.xlu0 %1881
      %1883 = vrot.lane.b32.xlu0 %v1051, 48
      %v1884 = vpop.permute.xlu0 %1883
      %1885 = vrot.lane.b32.xlu0 %v1053, 48
      %v1886 = vpop.permute.xlu0 %1885
      %1887 = vrot.lane.b32.xlu0 %v1055, 48
      %v1888 = vpop.permute.xlu0 %1887
      %1889 = vrot.lane.b32.xlu0 %v1057, 48
      %v1890 = vpop.permute.xlu0 %1889
      %1891 = vrot.lane.b32.xlu0 %v1059, 48
      %v1892 = vpop.permute.xlu0 %1891
      %1893 = vrot.lane.b32.xlu0 %v1061, 48
      %v1894 = vpop.permute.xlu0 %1893
      %1895 = vrot.lane.b32.xlu0 %v1063, 48
      %v1896 = vpop.permute.xlu0 %1895
      %1897 = vrot.lane.b32.xlu0 %v1065, 48
      %v1898 = vpop.permute.xlu0 %1897
      %1899 = vrot.lane.b32.xlu0 %v1067, 48
      %v1900 = vpop.permute.xlu0 %1899
      %1901 = vrot.lane.b32.xlu0 %v1069, 48
      %v1902 = vpop.permute.xlu0 %1901
      %1903 = vrot.lane.b32.xlu0 %v1071, 48
      %v1904 = vpop.permute.xlu0 %1903
      %1905 = vrot.lane.b32.xlu0 %v1073, 48
      %v1906 = vpop.permute.xlu0 %1905
      %1907 = vrot.lane.b32.xlu0 %v1075, 48
      %v1908 = vpop.permute.xlu0 %1907
      %1909 = vrot.lane.b32.xlu0 %v1077, 48
      %v1910 = vpop.permute.xlu0 %1909
      %1911 = vrot.lane.b32.xlu0 %v1079, 48
      %v1912 = vpop.permute.xlu0 %1911
      %v1930 = vrot.slane %v1043, 1
      %v1931 = vrot.slane %v1044, 1
      %v1932 = vsel %vm456, %v1930, %v1931
      %1933 = vrot.lane.b32.xlu0 %v1134, 56
      %v1934 = vpop.permute.xlu0 %1933
      %1935 = vrot.lane.b32.xlu0 %v1254, 56
      %v1936 = vpop.permute.xlu0 %1935
      %1937 = vrot.lane.b32.xlu0 %v1137, 56
      %v1938 = vpop.permute.xlu0 %1937
      %1939 = vrot.lane.b32.xlu0 %v1257, 56
      %v1940 = vpop.permute.xlu0 %1939
      %1941 = vrot.lane.b32.xlu0 %v1140, 56
      %v1942 = vpop.permute.xlu0 %1941
      %1943 = vrot.lane.b32.xlu0 %v1260, 56
      %v1944 = vpop.permute.xlu0 %1943
      %1945 = vrot.lane.b32.xlu0 %v1143, 56
      %v1946 = vpop.permute.xlu0 %1945
      %1947 = vrot.lane.b32.xlu0 %v1263, 56
      %v1948 = vpop.permute.xlu0 %1947
      %1949 = vrot.lane.b32.xlu0 %v1146, 56
      %v1950 = vpop.permute.xlu0 %1949
      %1951 = vrot.lane.b32.xlu0 %v1266, 56
      %v1952 = vpop.permute.xlu0 %1951
      %1953 = vrot.lane.b32.xlu0 %v1149, 56
      %v1954 = vpop.permute.xlu0 %1953
      %1955 = vrot.lane.b32.xlu0 %v1269, 56
      %v1956 = vpop.permute.xlu0 %1955
      %1957 = vrot.lane.b32.xlu0 %v1152, 56
      %v1958 = vpop.permute.xlu0 %1957
      %1959 = vrot.lane.b32.xlu0 %v1272, 56
      %v1960 = vpop.permute.xlu0 %1959
      %1961 = vrot.lane.b32.xlu0 %v1350, 56
      %v1962 = vpop.permute.xlu0 %1961
      %1963 = vrot.lane.b32.xlu0 %v1932, 56
      %v1964 = vpop.permute.xlu0 %1963
      %v1981 = vsel %vm1375, %v1592, %v1045
      %v1982 = vsel %vm1375, %v1594, %v1047
      %v1983 = vsel %vm1375, %v1596, %v1049
      %v1984 = vsel %vm1375, %v1598, %v1051
      %v1985 = vsel %vm1375, %v1600, %v1053
      %v1986 = vsel %vm1375, %v1602, %v1055
      %v1987 = vsel %vm1375, %v1604, %v1057
      %v1988 = vsel %vm1375, %v1606, %v1059
      %v1989 = vsel %vm1375, %v1608, %v1061
      %v1990 = vsel %vm1375, %v1610, %v1063
      %v1991 = vsel %vm1375, %v1612, %v1065
      %v1992 = vsel %vm1375, %v1614, %v1067
      %v1993 = vsel %vm1375, %v1616, %v1069
      %v1994 = vsel %vm1375, %v1618, %v1071
      %v1995 = vsel %vm1375, %v1620, %v1073
      %v1996 = vsel %vm1375, %v1622, %v1075
      %v1997 = vsel %vm901, %v1981, %v1640
      %v1998 = vsel %vm901, %v1982, %v1642
      %v1999 = vsel %vm901, %v1983, %v1644
      %v2000 = vsel %vm901, %v1984, %v1646
      %v2001 = vsel %vm901, %v1985, %v1648
      %v2002 = vsel %vm901, %v1986, %v1650
      %v2003 = vsel %vm901, %v1987, %v1652
      %v2004 = vsel %vm901, %v1988, %v1654
      %v2005 = vsel %vm901, %v1989, %v1656
      %v2006 = vsel %vm901, %v1990, %v1658
      %v2007 = vsel %vm901, %v1991, %v1660
      %v2008 = vsel %vm901, %v1992, %v1662
      %v2009 = vsel %vm901, %v1993, %v1664
      %v2010 = vsel %vm901, %v1994, %v1666
      %v2011 = vsel %vm901, %v1995, %v1668
      %v2012 = vsel %vm901, %v1996, %v1670
      %v2013 = vsel %vm1392, %v1997, %v1688
      %v2014 = vsel %vm1392, %v1998, %v1690
      %v2015 = vsel %vm1392, %v1999, %v1692
      %v2016 = vsel %vm1392, %v2000, %v1694
      %v2017 = vsel %vm1392, %v2001, %v1696
      %v2018 = vsel %vm1392, %v2002, %v1698
      %v2019 = vsel %vm1392, %v2003, %v1700
      %v2020 = vsel %vm1392, %v2004, %v1702
      %v2021 = vsel %vm1392, %v2005, %v1704
      %v2022 = vsel %vm1392, %v2006, %v1706
      %v2023 = vsel %vm1392, %v2007, %v1708
      %v2024 = vsel %vm1392, %v2008, %v1710
      %v2025 = vsel %vm1392, %v2009, %v1712
      %v2026 = vsel %vm1392, %v2010, %v1714
      %v2027 = vsel %vm1392, %v2011, %v1716
      %v2028 = vsel %vm1392, %v2012, %v1718
      %v2029 = vsel %vm1401, %v2013, %v1736
      %v2030 = vsel %vm1401, %v2014, %v1738
      %v2031 = vsel %vm1401, %v2015, %v1740
      %v2032 = vsel %vm1401, %v2016, %v1742
      %v2033 = vsel %vm1401, %v2017, %v1744
      %v2034 = vsel %vm1401, %v2018, %v1746
      %v2035 = vsel %vm1401, %v2019, %v1748
      %v2036 = vsel %vm1401, %v2020, %v1750
      %v2037 = vsel %vm1401, %v2021, %v1752
      %v2038 = vsel %vm1401, %v2022, %v1754
      %v2039 = vsel %vm1401, %v2023, %v1756
      %v2040 = vsel %vm1401, %v2024, %v1758
      %v2041 = vsel %vm1401, %v2025, %v1760
      %v2042 = vsel %vm1401, %v2026, %v1762
      %v2043 = vsel %vm1401, %v2027, %v1764
      %v2044 = vsel %vm1401, %v2028, %v1766
      %v2045 = vsel %vm1410, %v2029, %v1784
      %v2046 = vsel %vm1410, %v2030, %v1786
      %v2047 = vsel %vm1410, %v2031, %v1788
      %v2048 = vsel %vm1410, %v2032, %v1790
      %v2049 = vsel %vm1410, %v2033, %v1792
      %v2050 = vsel %vm1410, %v2034, %v1794
      %v2051 = vsel %vm1410, %v2035, %v1796
      %v2052 = vsel %vm1410, %v2036, %v1798
      %v2053 = vsel %vm1410, %v2037, %v1800
      %v2054 = vsel %vm1410, %v2038, %v1802
      %v2055 = vsel %vm1410, %v2039, %v1804
      %v2056 = vsel %vm1410, %v2040, %v1806
      %v2057 = vsel %vm1410, %v2041, %v1808
      %v2058 = vsel %vm1410, %v2042, %v1810
      %v2059 = vsel %vm1410, %v2043, %v1812
      %v2060 = vsel %vm1410, %v2044, %v1814
      %v2061 = vsel %vm1419, %v2045, %v1833
      %v2062 = vsel %vm1419, %v2046, %v1835
      %v2063 = vsel %vm1419, %v2047, %v1837
      %v2064 = vsel %vm1419, %v2048, %v1839
      %v2065 = vsel %vm1419, %v2049, %v1841
      %v2066 = vsel %vm1419, %v2050, %v1843
      %v2067 = vsel %vm1419, %v2051, %v1845
      %v2068 = vsel %vm1419, %v2052, %v1847
      %v2069 = vsel %vm1419, %v2053, %v1849
      %v2070 = vsel %vm1419, %v2054, %v1851
      %v2071 = vsel %vm1419, %v2055, %v1853
      %v2072 = vsel %vm1419, %v2056, %v1855
      %v2073 = vsel %vm1419, %v2057, %v1857
      %v2074 = vsel %vm1419, %v2058, %v1859
      %v2075 = vsel %vm1419, %v2059, %v1861
      %v2076 = vsel %vm1419, %v2060, %v1863
      %v2077 = vsel %vm1428, %v2061, %v1882
      %v2078 = vsel %vm1428, %v2062, %v1884
      %v2079 = vsel %vm1428, %v2063, %v1886
      %v2080 = vsel %vm1428, %v2064, %v1888
      %v2081 = vsel %vm1428, %v2065, %v1890
      %v2082 = vsel %vm1428, %v2066, %v1892
      %v2083 = vsel %vm1428, %v2067, %v1894
      %v2084 = vsel %vm1428, %v2068, %v1896
      %v2085 = vsel %vm1428, %v2069, %v1898
      %v2086 = vsel %vm1428, %v2070, %v1900
      %v2087 = vsel %vm1428, %v2071, %v1902
      %v2088 = vsel %vm1428, %v2072, %v1904
      %v2089 = vsel %vm1428, %v2073, %v1906
      %v2090 = vsel %vm1428, %v2074, %v1908
      %v2091 = vsel %vm1428, %v2075, %v1910
      %v2092 = vsel %vm1428, %v2076, %v1912
      %v2093 = vsel %vm1437, %v2077, %v1934
      %v2094 = vsel %vm1437, %v2078, %v1936
      %v2095 = vsel %vm1437, %v2079, %v1938
      %v2096 = vsel %vm1437, %v2080, %v1940
      %v2097 = vsel %vm1437, %v2081, %v1942
      %v2098 = vsel %vm1437, %v2082, %v1944
      %v2099 = vsel %vm1437, %v2083, %v1946
      %v2100 = vsel %vm1437, %v2084, %v1948
      %v2101 = vsel %vm1437, %v2085, %v1950
      %v2102 = vsel %vm1437, %v2086, %v1952
      %v2103 = vsel %vm1437, %v2087, %v1954
      %v2104 = vsel %vm1437, %v2088, %v1956
      %v2105 = vsel %vm1437, %v2089, %v1958
      %v2106 = vsel %vm1437, %v2090, %v1960
      %v2107 = vsel %vm1437, %v2091, %v1962
      %v2108 = vsel %vm1437, %v2092, %v1964
      %v2109 = vpack.c.bf16 %v2094, %v2093
      %v2110 = vpack.c.bf16 %v2096, %v2095
      %v2111 = vpack.c.bf16 %v2098, %v2097
      %v2112 = vpack.c.bf16 %v2100, %v2099
      %v2113 = vpack.c.bf16 %v2102, %v2101
      %v2114 = vpack.c.bf16 %v2104, %v2103
      %v2115 = vpack.c.bf16 %v2106, %v2105
      %v2116 = vpack.c.bf16 %v2108, %v2107
      %2117 = vrot.lane.b32.xlu0 %v1045, 120
      %v2118 = vpop.permute.xlu0 %2117
      %2119 = vrot.lane.b32.xlu0 %v1047, 120
      %v2120 = vpop.permute.xlu0 %2119
      %2121 = vrot.lane.b32.xlu0 %v1049, 120
      %v2122 = vpop.permute.xlu0 %2121
      %2123 = vrot.lane.b32.xlu0 %v1051, 120
      %v2124 = vpop.permute.xlu0 %2123
      %2125 = vrot.lane.b32.xlu0 %v1053, 120
      %v2126 = vpop.permute.xlu0 %2125
      %2127 = vrot.lane.b32.xlu0 %v1055, 120
      %v2128 = vpop.permute.xlu0 %2127
      %2129 = vrot.lane.b32.xlu0 %v1057, 120
      %v2130 = vpop.permute.xlu0 %2129
      %2131 = vrot.lane.b32.xlu0 %v1059, 120
      %v2132 = vpop.permute.xlu0 %2131
      %2133 = vrot.lane.b32.xlu0 %v1061, 120
      %v2134 = vpop.permute.xlu0 %2133
      %2135 = vrot.lane.b32.xlu0 %v1063, 120
      %v2136 = vpop.permute.xlu0 %2135
      %2137 = vrot.lane.b32.xlu0 %v1065, 120
      %v2138 = vpop.permute.xlu0 %2137
      %2139 = vrot.lane.b32.xlu0 %v1067, 120
      %v2140 = vpop.permute.xlu0 %2139
      %2141 = vrot.lane.b32.xlu0 %v1069, 120
      %v2142 = vpop.permute.xlu0 %2141
      %2143 = vrot.lane.b32.xlu0 %v1071, 120
      %v2144 = vpop.permute.xlu0 %2143
      %2145 = vrot.lane.b32.xlu0 %v1073, 120
      %v2146 = vpop.permute.xlu0 %2145
      %2147 = vrot.lane.b32.xlu0 %v1075, 120
      %v2148 = vpop.permute.xlu0 %2147
      %v2197 = vrot.slane %v1045, 1
      %v2198 = vrot.slane %v1046, 1
      %v2199 = vsel %vm456, %v2197, %v2198
      %v2200 = vrot.slane %v1047, 1
      %v2201 = vrot.slane %v1048, 1
      %v2202 = vsel %vm456, %v2200, %v2201
      %v2203 = vrot.slane %v1049, 1
      %v2204 = vrot.slane %v1050, 1
      %v2205 = vsel %vm456, %v2203, %v2204
      %v2206 = vrot.slane %v1051, 1
      %v2207 = vrot.slane %v1052, 1
      %v2208 = vsel %vm456, %v2206, %v2207
      %v2209 = vrot.slane %v1053, 1
      %v2210 = vrot.slane %v1054, 1
      %v2211 = vsel %vm456, %v2209, %v2210
      %v2212 = vrot.slane %v1055, 1
      %v2213 = vrot.slane %v1056, 1
      %v2214 = vsel %vm456, %v2212, %v2213
      %v2215 = vrot.slane %v1057, 1
      %v2216 = vrot.slane %v1058, 1
      %v2217 = vsel %vm456, %v2215, %v2216
      %v2218 = vrot.slane %v1059, 1
      %v2219 = vrot.slane %v1060, 1
      %v2220 = vsel %vm456, %v2218, %v2219
      %v2221 = vrot.slane %v1061, 1
      %v2222 = vrot.slane %v1062, 1
      %v2223 = vsel %vm456, %v2221, %v2222
      %v2224 = vrot.slane %v1063, 1
      %v2225 = vrot.slane %v1064, 1
      %v2226 = vsel %vm456, %v2224, %v2225
      %v2227 = vrot.slane %v1065, 1
      %v2228 = vrot.slane %v1066, 1
      %v2229 = vsel %vm456, %v2227, %v2228
      %v2230 = vrot.slane %v1067, 1
      %v2231 = vrot.slane %v1068, 1
      %v2232 = vsel %vm456, %v2230, %v2231
      %v2233 = vrot.slane %v1069, 1
      %v2234 = vrot.slane %v1070, 1
      %v2235 = vsel %vm456, %v2233, %v2234
      %v2236 = vrot.slane %v1071, 1
      %v2237 = vrot.slane %v1072, 1
      %v2238 = vsel %vm456, %v2236, %v2237
      %v2239 = vrot.slane %v1073, 1
      %v2240 = vrot.slane %v1074, 1
      %v2241 = vsel %vm456, %v2239, %v2240
      %v2242 = vrot.slane %v1075, 1
      %v2243 = vrot.slane %v1076, 1
      %v2244 = vsel %vm456, %v2242, %v2243
      %2245 = vrot.lane.b32.xlu0 %v2199, 8
      %v2246 = vpop.permute.xlu0 %2245
      %2247 = vrot.lane.b32.xlu0 %v2202, 8
      %v2248 = vpop.permute.xlu0 %2247
      %2249 = vrot.lane.b32.xlu0 %v2205, 8
      %v2250 = vpop.permute.xlu0 %2249
      %2251 = vrot.lane.b32.xlu0 %v2208, 8
      %v2252 = vpop.permute.xlu0 %2251
      %2253 = vrot.lane.b32.xlu0 %v2211, 8
      %v2254 = vpop.permute.xlu0 %2253
      %2255 = vrot.lane.b32.xlu0 %v2214, 8
      %v2256 = vpop.permute.xlu0 %2255
      %2257 = vrot.lane.b32.xlu0 %v2217, 8
      %v2258 = vpop.permute.xlu0 %2257
      %2259 = vrot.lane.b32.xlu0 %v2220, 8
      %v2260 = vpop.permute.xlu0 %2259
      %2261 = vrot.lane.b32.xlu0 %v2223, 8
      %v2262 = vpop.permute.xlu0 %2261
      %2263 = vrot.lane.b32.xlu0 %v2226, 8
      %v2264 = vpop.permute.xlu0 %2263
      %2265 = vrot.lane.b32.xlu0 %v2229, 8
      %v2266 = vpop.permute.xlu0 %2265
      %2267 = vrot.lane.b32.xlu0 %v2232, 8
      %v2268 = vpop.permute.xlu0 %2267
      %2269 = vrot.lane.b32.xlu0 %v2235, 8
      %v2270 = vpop.permute.xlu0 %2269
      %2271 = vrot.lane.b32.xlu0 %v2238, 8
      %v2272 = vpop.permute.xlu0 %2271
      %2273 = vrot.lane.b32.xlu0 %v2241, 8
      %v2274 = vpop.permute.xlu0 %2273
      %2275 = vrot.lane.b32.xlu0 %v2244, 8
      %v2276 = vpop.permute.xlu0 %2275
      %2293 = vrot.lane.b32.xlu0 %v1047, 16
      %v2294 = vpop.permute.xlu0 %2293
      %2295 = vrot.lane.b32.xlu0 %v1049, 16
      %v2296 = vpop.permute.xlu0 %2295
      %2297 = vrot.lane.b32.xlu0 %v1051, 16
      %v2298 = vpop.permute.xlu0 %2297
      %2299 = vrot.lane.b32.xlu0 %v1053, 16
      %v2300 = vpop.permute.xlu0 %2299
      %2301 = vrot.lane.b32.xlu0 %v1055, 16
      %v2302 = vpop.permute.xlu0 %2301
      %2303 = vrot.lane.b32.xlu0 %v1057, 16
      %v2304 = vpop.permute.xlu0 %2303
      %2305 = vrot.lane.b32.xlu0 %v1059, 16
      %v2306 = vpop.permute.xlu0 %2305
      %2307 = vrot.lane.b32.xlu0 %v1061, 16
      %v2308 = vpop.permute.xlu0 %2307
      %2309 = vrot.lane.b32.xlu0 %v1063, 16
      %v2310 = vpop.permute.xlu0 %2309
      %2311 = vrot.lane.b32.xlu0 %v1065, 16
      %v2312 = vpop.permute.xlu0 %2311
      %2313 = vrot.lane.b32.xlu0 %v1067, 16
      %v2314 = vpop.permute.xlu0 %2313
      %2315 = vrot.lane.b32.xlu0 %v1069, 16
      %v2316 = vpop.permute.xlu0 %2315
      %2317 = vrot.lane.b32.xlu0 %v1071, 16
      %v2318 = vpop.permute.xlu0 %2317
      %2319 = vrot.lane.b32.xlu0 %v1073, 16
      %v2320 = vpop.permute.xlu0 %2319
      %2321 = vrot.lane.b32.xlu0 %v1075, 16
      %v2322 = vpop.permute.xlu0 %2321
      %2323 = vrot.lane.b32.xlu0 %v1077, 16
      %v2324 = vpop.permute.xlu0 %2323
      %2341 = vrot.lane.b32.xlu0 %v1251, 24
      %v2342 = vpop.permute.xlu0 %2341
      %2343 = vrot.lane.b32.xlu0 %v1134, 24
      %v2344 = vpop.permute.xlu0 %2343
      %2345 = vrot.lane.b32.xlu0 %v1254, 24
      %v2346 = vpop.permute.xlu0 %2345
      %2347 = vrot.lane.b32.xlu0 %v1137, 24
      %v2348 = vpop.permute.xlu0 %2347
      %2349 = vrot.lane.b32.xlu0 %v1257, 24
      %v2350 = vpop.permute.xlu0 %2349
      %2351 = vrot.lane.b32.xlu0 %v1140, 24
      %v2352 = vpop.permute.xlu0 %2351
      %2353 = vrot.lane.b32.xlu0 %v1260, 24
      %v2354 = vpop.permute.xlu0 %2353
      %2355 = vrot.lane.b32.xlu0 %v1143, 24
      %v2356 = vpop.permute.xlu0 %2355
      %2357 = vrot.lane.b32.xlu0 %v1263, 24
      %v2358 = vpop.permute.xlu0 %2357
      %2359 = vrot.lane.b32.xlu0 %v1146, 24
      %v2360 = vpop.permute.xlu0 %2359
      %2361 = vrot.lane.b32.xlu0 %v1266, 24
      %v2362 = vpop.permute.xlu0 %2361
      %2363 = vrot.lane.b32.xlu0 %v1149, 24
      %v2364 = vpop.permute.xlu0 %2363
      %2365 = vrot.lane.b32.xlu0 %v1269, 24
      %v2366 = vpop.permute.xlu0 %2365
      %2367 = vrot.lane.b32.xlu0 %v1152, 24
      %v2368 = vpop.permute.xlu0 %2367
      %2369 = vrot.lane.b32.xlu0 %v1272, 24
      %v2370 = vpop.permute.xlu0 %2369
      %2371 = vrot.lane.b32.xlu0 %v1350, 24
      %v2372 = vpop.permute.xlu0 %2371
      %v2390 = vrot.slane %v1077, 1
      %v2391 = vrot.slane %v1078, 1
      %v2392 = vsel %vm456, %v2390, %v2391
      %2393 = vrot.lane.b32.xlu0 %v2202, 32
      %v2394 = vpop.permute.xlu0 %2393
      %2395 = vrot.lane.b32.xlu0 %v2205, 32
      %v2396 = vpop.permute.xlu0 %2395
      %2397 = vrot.lane.b32.xlu0 %v2208, 32
      %v2398 = vpop.permute.xlu0 %2397
      %2399 = vrot.lane.b32.xlu0 %v2211, 32
      %v2400 = vpop.permute.xlu0 %2399
      %2401 = vrot.lane.b32.xlu0 %v2214, 32
      %v2402 = vpop.permute.xlu0 %2401
      %2403 = vrot.lane.b32.xlu0 %v2217, 32
      %v2404 = vpop.permute.xlu0 %2403
      %2405 = vrot.lane.b32.xlu0 %v2220, 32
      %v2406 = vpop.permute.xlu0 %2405
      %2407 = vrot.lane.b32.xlu0 %v2223, 32
      %v2408 = vpop.permute.xlu0 %2407
      %2409 = vrot.lane.b32.xlu0 %v2226, 32
      %v2410 = vpop.permute.xlu0 %2409
      %2411 = vrot.lane.b32.xlu0 %v2229, 32
      %v2412 = vpop.permute.xlu0 %2411
      %2413 = vrot.lane.b32.xlu0 %v2232, 32
      %v2414 = vpop.permute.xlu0 %2413
      %2415 = vrot.lane.b32.xlu0 %v2235, 32
      %v2416 = vpop.permute.xlu0 %2415
      %2417 = vrot.lane.b32.xlu0 %v2238, 32
      %v2418 = vpop.permute.xlu0 %2417
      %2419 = vrot.lane.b32.xlu0 %v2241, 32
      %v2420 = vpop.permute.xlu0 %2419
      %2421 = vrot.lane.b32.xlu0 %v2244, 32
      %v2422 = vpop.permute.xlu0 %2421
      %2423 = vrot.lane.b32.xlu0 %v2392, 32
      %v2424 = vpop.permute.xlu0 %2423
      %2441 = vrot.lane.b32.xlu0 %v1049, 40
      %v2442 = vpop.permute.xlu0 %2441
      %2443 = vrot.lane.b32.xlu0 %v1051, 40
      %v2444 = vpop.permute.xlu0 %2443
      %2445 = vrot.lane.b32.xlu0 %v1053, 40
      %v2446 = vpop.permute.xlu0 %2445
      %2447 = vrot.lane.b32.xlu0 %v1055, 40
      %v2448 = vpop.permute.xlu0 %2447
      %2449 = vrot.lane.b32.xlu0 %v1057, 40
      %v2450 = vpop.permute.xlu0 %2449
      %2451 = vrot.lane.b32.xlu0 %v1059, 40
      %v2452 = vpop.permute.xlu0 %2451
      %2453 = vrot.lane.b32.xlu0 %v1061, 40
      %v2454 = vpop.permute.xlu0 %2453
      %2455 = vrot.lane.b32.xlu0 %v1063, 40
      %v2456 = vpop.permute.xlu0 %2455
      %2457 = vrot.lane.b32.xlu0 %v1065, 40
      %v2458 = vpop.permute.xlu0 %2457
      %2459 = vrot.lane.b32.xlu0 %v1067, 40
      %v2460 = vpop.permute.xlu0 %2459
      %2461 = vrot.lane.b32.xlu0 %v1069, 40
      %v2462 = vpop.permute.xlu0 %2461
      %2463 = vrot.lane.b32.xlu0 %v1071, 40
      %v2464 = vpop.permute.xlu0 %2463
      %2465 = vrot.lane.b32.xlu0 %v1073, 40
      %v2466 = vpop.permute.xlu0 %2465
      %2467 = vrot.lane.b32.xlu0 %v1075, 40
      %v2468 = vpop.permute.xlu0 %2467
      %2469 = vrot.lane.b32.xlu0 %v1077, 40
      %v2470 = vpop.permute.xlu0 %2469
      %2471 = vrot.lane.b32.xlu0 %v1079, 40
      %v2472 = vpop.permute.xlu0 %2471
      %2489 = vrot.lane.b32.xlu0 %v1134, 48
      %v2490 = vpop.permute.xlu0 %2489
      %2491 = vrot.lane.b32.xlu0 %v1254, 48
      %v2492 = vpop.permute.xlu0 %2491
      %2493 = vrot.lane.b32.xlu0 %v1137, 48
      %v2494 = vpop.permute.xlu0 %2493
      %2495 = vrot.lane.b32.xlu0 %v1257, 48
      %v2496 = vpop.permute.xlu0 %2495
      %2497 = vrot.lane.b32.xlu0 %v1140, 48
      %v2498 = vpop.permute.xlu0 %2497
      %2499 = vrot.lane.b32.xlu0 %v1260, 48
      %v2500 = vpop.permute.xlu0 %2499
      %2501 = vrot.lane.b32.xlu0 %v1143, 48
      %v2502 = vpop.permute.xlu0 %2501
      %2503 = vrot.lane.b32.xlu0 %v1263, 48
      %v2504 = vpop.permute.xlu0 %2503
      %2505 = vrot.lane.b32.xlu0 %v1146, 48
      %v2506 = vpop.permute.xlu0 %2505
      %2507 = vrot.lane.b32.xlu0 %v1266, 48
      %v2508 = vpop.permute.xlu0 %2507
      %2509 = vrot.lane.b32.xlu0 %v1149, 48
      %v2510 = vpop.permute.xlu0 %2509
      %2511 = vrot.lane.b32.xlu0 %v1269, 48
      %v2512 = vpop.permute.xlu0 %2511
      %2513 = vrot.lane.b32.xlu0 %v1152, 48
      %v2514 = vpop.permute.xlu0 %2513
      %2515 = vrot.lane.b32.xlu0 %v1272, 48
      %v2516 = vpop.permute.xlu0 %2515
      %2517 = vrot.lane.b32.xlu0 %v1350, 48
      %v2518 = vpop.permute.xlu0 %2517
      %2519 = vrot.lane.b32.xlu0 %v1932, 48
      %v2520 = vpop.permute.xlu0 %2519
      %v2538 = vrot.slane %v1079, 1
      %v2539 = vrot.slane %v1080, 1
      %v2540 = vsel %vm456, %v2538, %v2539
      %2541 = vrot.lane.b32.xlu0 %v2205, 56
      %v2542 = vpop.permute.xlu0 %2541
      %2543 = vrot.lane.b32.xlu0 %v2208, 56
      %v2544 = vpop.permute.xlu0 %2543
      %2545 = vrot.lane.b32.xlu0 %v2211, 56
      %v2546 = vpop.permute.xlu0 %2545
      %2547 = vrot.lane.b32.xlu0 %v2214, 56
      %v2548 = vpop.permute.xlu0 %2547
      %2549 = vrot.lane.b32.xlu0 %v2217, 56
      %v2550 = vpop.permute.xlu0 %2549
      %2551 = vrot.lane.b32.xlu0 %v2220, 56
      %v2552 = vpop.permute.xlu0 %2551
      %2553 = vrot.lane.b32.xlu0 %v2223, 56
      %v2554 = vpop.permute.xlu0 %2553
      %2555 = vrot.lane.b32.xlu0 %v2226, 56
      %v2556 = vpop.permute.xlu0 %2555
      %2557 = vrot.lane.b32.xlu0 %v2229, 56
      %v2558 = vpop.permute.xlu0 %2557
      %2559 = vrot.lane.b32.xlu0 %v2232, 56
      %v2560 = vpop.permute.xlu0 %2559
      %2561 = vrot.lane.b32.xlu0 %v2235, 56
      %v2562 = vpop.permute.xlu0 %2561
      %2563 = vrot.lane.b32.xlu0 %v2238, 56
      %v2564 = vpop.permute.xlu0 %2563
      %2565 = vrot.lane.b32.xlu0 %v2241, 56
      %v2566 = vpop.permute.xlu0 %2565
      %2567 = vrot.lane.b32.xlu0 %v2244, 56
      %v2568 = vpop.permute.xlu0 %2567
      %2569 = vrot.lane.b32.xlu0 %v2392, 56
      %v2570 = vpop.permute.xlu0 %2569
      %2571 = vrot.lane.b32.xlu0 %v2540, 56
      %v2572 = vpop.permute.xlu0 %2571
      %v2589 = vsel %vm1375, %v2118, %v1131
      %v2590 = vsel %vm1375, %v2120, %v1251
      %v2591 = vsel %vm1375, %v2122, %v1134
      %v2592 = vsel %vm1375, %v2124, %v1254
      %v2593 = vsel %vm1375, %v2126, %v1137
      %v2594 = vsel %vm1375, %v2128, %v1257
      %v2595 = vsel %vm1375, %v2130, %v1140
      %v2596 = vsel %vm1375, %v2132, %v1260
      %v2597 = vsel %vm1375, %v2134, %v1143
      %v2598 = vsel %vm1375, %v2136, %v1263
      %v2599 = vsel %vm1375, %v2138, %v1146
      %v2600 = vsel %vm1375, %v2140, %v1266
      %v2601 = vsel %vm1375, %v2142, %v1149
      %v2602 = vsel %vm1375, %v2144, %v1269
      %v2603 = vsel %vm1375, %v2146, %v1152
      %v2604 = vsel %vm1375, %v2148, %v1272
      %v2605 = vsel %vm901, %v2589, %v2246
      %v2606 = vsel %vm901, %v2590, %v2248
      %v2607 = vsel %vm901, %v2591, %v2250
      %v2608 = vsel %vm901, %v2592, %v2252
      %v2609 = vsel %vm901, %v2593, %v2254
      %v2610 = vsel %vm901, %v2594, %v2256
      %v2611 = vsel %vm901, %v2595, %v2258
      %v2612 = vsel %vm901, %v2596, %v2260
      %v2613 = vsel %vm901, %v2597, %v2262
      %v2614 = vsel %vm901, %v2598, %v2264
      %v2615 = vsel %vm901, %v2599, %v2266
      %v2616 = vsel %vm901, %v2600, %v2268
      %v2617 = vsel %vm901, %v2601, %v2270
      %v2618 = vsel %vm901, %v2602, %v2272
      %v2619 = vsel %vm901, %v2603, %v2274
      %v2620 = vsel %vm901, %v2604, %v2276
      %v2621 = vsel %vm1392, %v2605, %v2294
      %v2622 = vsel %vm1392, %v2606, %v2296
      %v2623 = vsel %vm1392, %v2607, %v2298
      %v2624 = vsel %vm1392, %v2608, %v2300
      %v2625 = vsel %vm1392, %v2609, %v2302
      %v2626 = vsel %vm1392, %v2610, %v2304
      %v2627 = vsel %vm1392, %v2611, %v2306
      %v2628 = vsel %vm1392, %v2612, %v2308
      %v2629 = vsel %vm1392, %v2613, %v2310
      %v2630 = vsel %vm1392, %v2614, %v2312
      %v2631 = vsel %vm1392, %v2615, %v2314
      %v2632 = vsel %vm1392, %v2616, %v2316
      %v2633 = vsel %vm1392, %v2617, %v2318
      %v2634 = vsel %vm1392, %v2618, %v2320
      %v2635 = vsel %vm1392, %v2619, %v2322
      %v2636 = vsel %vm1392, %v2620, %v2324
      %v2637 = vsel %vm1401, %v2621, %v2342
      %v2638 = vsel %vm1401, %v2622, %v2344
      %v2639 = vsel %vm1401, %v2623, %v2346
      %v2640 = vsel %vm1401, %v2624, %v2348
      %v2641 = vsel %vm1401, %v2625, %v2350
      %v2642 = vsel %vm1401, %v2626, %v2352
      %v2643 = vsel %vm1401, %v2627, %v2354
      %v2644 = vsel %vm1401, %v2628, %v2356
      %v2645 = vsel %vm1401, %v2629, %v2358
      %v2646 = vsel %vm1401, %v2630, %v2360
      %v2647 = vsel %vm1401, %v2631, %v2362
      %v2648 = vsel %vm1401, %v2632, %v2364
      %v2649 = vsel %vm1401, %v2633, %v2366
      %v2650 = vsel %vm1401, %v2634, %v2368
      %v2651 = vsel %vm1401, %v2635, %v2370
      %v2652 = vsel %vm1401, %v2636, %v2372
      %v2653 = vsel %vm1410, %v2637, %v2394
      %v2654 = vsel %vm1410, %v2638, %v2396
      %v2655 = vsel %vm1410, %v2639, %v2398
      %v2656 = vsel %vm1410, %v2640, %v2400
      %v2657 = vsel %vm1410, %v2641, %v2402
      %v2658 = vsel %vm1410, %v2642, %v2404
      %v2659 = vsel %vm1410, %v2643, %v2406
      %v2660 = vsel %vm1410, %v2644, %v2408
      %v2661 = vsel %vm1410, %v2645, %v2410
      %v2662 = vsel %vm1410, %v2646, %v2412
      %v2663 = vsel %vm1410, %v2647, %v2414
      %v2664 = vsel %vm1410, %v2648, %v2416
      %v2665 = vsel %vm1410, %v2649, %v2418
      %v2666 = vsel %vm1410, %v2650, %v2420
      %v2667 = vsel %vm1410, %v2651, %v2422
      %v2668 = vsel %vm1410, %v2652, %v2424
      %v2669 = vsel %vm1419, %v2653, %v2442
      %v2670 = vsel %vm1419, %v2654, %v2444
      %v2671 = vsel %vm1419, %v2655, %v2446
      %v2672 = vsel %vm1419, %v2656, %v2448
      %v2673 = vsel %vm1419, %v2657, %v2450
      %v2674 = vsel %vm1419, %v2658, %v2452
      %v2675 = vsel %vm1419, %v2659, %v2454
      %v2676 = vsel %vm1419, %v2660, %v2456
      %v2677 = vsel %vm1419, %v2661, %v2458
      %v2678 = vsel %vm1419, %v2662, %v2460
      %v2679 = vsel %vm1419, %v2663, %v2462
      %v2680 = vsel %vm1419, %v2664, %v2464
      %v2681 = vsel %vm1419, %v2665, %v2466
      %v2682 = vsel %vm1419, %v2666, %v2468
      %v2683 = vsel %vm1419, %v2667, %v2470
      %v2684 = vsel %vm1419, %v2668, %v2472
      %v2685 = vsel %vm1428, %v2669, %v2490
      %v2686 = vsel %vm1428, %v2670, %v2492
      %v2687 = vsel %vm1428, %v2671, %v2494
      %v2688 = vsel %vm1428, %v2672, %v2496
      %v2689 = vsel %vm1428, %v2673, %v2498
      %v2690 = vsel %vm1428, %v2674, %v2500
      %v2691 = vsel %vm1428, %v2675, %v2502
      %v2692 = vsel %vm1428, %v2676, %v2504
      %v2693 = vsel %vm1428, %v2677, %v2506
      %v2694 = vsel %vm1428, %v2678, %v2508
      %v2695 = vsel %vm1428, %v2679, %v2510
      %v2696 = vsel %vm1428, %v2680, %v2512
      %v2697 = vsel %vm1428, %v2681, %v2514
      %v2698 = vsel %vm1428, %v2682, %v2516
      %v2699 = vsel %vm1428, %v2683, %v2518
      %v2700 = vsel %vm1428, %v2684, %v2520
      %v2701 = vsel %vm1437, %v2685, %v2542
      %v2702 = vsel %vm1437, %v2686, %v2544
      %v2703 = vsel %vm1437, %v2687, %v2546
      %v2704 = vsel %vm1437, %v2688, %v2548
      %v2705 = vsel %vm1437, %v2689, %v2550
      %v2706 = vsel %vm1437, %v2690, %v2552
      %v2707 = vsel %vm1437, %v2691, %v2554
      %v2708 = vsel %vm1437, %v2692, %v2556
      %v2709 = vsel %vm1437, %v2693, %v2558
      %v2710 = vsel %vm1437, %v2694, %v2560
      %v2711 = vsel %vm1437, %v2695, %v2562
      %v2712 = vsel %vm1437, %v2696, %v2564
      %v2713 = vsel %vm1437, %v2697, %v2566
      %v2714 = vsel %vm1437, %v2698, %v2568
      %v2715 = vsel %vm1437, %v2699, %v2570
      %v2716 = vsel %vm1437, %v2700, %v2572
      %v2717 = vpack.c.bf16 %v2702, %v2701
      %v2718 = vpack.c.bf16 %v2704, %v2703
      %v2719 = vpack.c.bf16 %v2706, %v2705
      %v2720 = vpack.c.bf16 %v2708, %v2707
      %v2721 = vpack.c.bf16 %v2710, %v2709
      %v2722 = vpack.c.bf16 %v2712, %v2711
      %v2723 = vpack.c.bf16 %v2714, %v2713
      %v2724 = vpack.c.bf16 %v2716, %v2715
      %v2725 = vld [vmem:[%s6] sm:$0xf]
      %v2726 = vld [vmem:[%s6 + $0x4] sm:$0xf]
      %v2727 = vld [vmem:[%s6 + $0x8] sm:$0xf]
      %v2728 = vld [vmem:[%s6 + $0xc] sm:$0xf]
      %v2729 = vld [vmem:[%s6 + $0x10] sm:$0xf]
      %v2730 = vld [vmem:[%s6 + $0x14] sm:$0xf]
      %v2731 = vld [vmem:[%s6 + $0x18] sm:$0xf]
      %v2732 = vld [vmem:[%s6 + $0x1c] sm:$0xf]
      %v2733 = vld [vmem:[%s6 + $0x20] sm:$0xf]
      %v2734 = vld [vmem:[%s7] sm:$0x1]
      %v2736 = vlaneseq
      %v2737 = vshrl.u32 %v2736, 7
      %v2738 = vsub.s32 0, %v2737
      %v2739 = vrot.slane %v2734, %v2738
      %v2750 = vunpack.c.l.b16 %v2725
      %v2751 = vunpack.c.l.b16 %v2726
      %v2752 = vunpack.c.l.b16 %v2727
      %v2753 = vunpack.c.l.b16 %v2728
      %v2754 = vunpack.c.l.b16 %v2729
      %v2755 = vunpack.c.l.b16 %v2730
      %v2756 = vunpack.c.l.b16 %v2731
      %v2757 = vunpack.c.l.b16 %v2732
      %v2758 = vunpack.c.l.b16 %v2733
      %v2759 = vpack.c.b16 %v2751, %v2750
      %v2760 = vpack.c.b16 %v2753, %v2752
      %v2761 = vpack.c.b16 %v2755, %v2754
      %v2762 = vpack.c.b16 %v2757, %v2756
      %v2763 = vpack.c.b16 %v2758, %v2758
      %v2769 = vsel %vm1493, %v2109, 0
      %v2772 = vsel %vm1493, %v2110, 0
      %v2775 = vsel %vm1493, %v2111, 0
      %v2778 = vsel %vm1493, %v2112, 0
      %v2781 = vsel %vm1493, %v2113, 0
      %v2784 = vsel %vm1493, %v2114, 0
      %v2787 = vsel %vm1493, %v2115, 0
      %v2790 = vsel %vm1493, %v2116, 0
      %v2793 = vsel %vm1493, %v2717, 0
      %v2796 = vsel %vm1493, %v2718, 0
      %v2799 = vsel %vm1493, %v2719, 0
      %v2802 = vsel %vm1493, %v2720, 0
      %v2805 = vsel %vm1493, %v2721, 0
      %v2808 = vsel %vm1493, %v2722, 0
      %v2811 = vsel %vm1493, %v2723, 0
      %v2814 = vsel %vm1493, %v2724, 0
      %v2817 = vsel %vm1506, %v2763, 0
      %2819 = vmatprep.subr.bf16.mxu0 0
      %2820 = vmatpush1.bf16.msra.mxu0 %v2759
      %2821 = vmatprep.subr.bf16.mxu0 0
      %2822 = vmatpush1.bf16.msra.mxu0 %v2760
      %2823 = vmatprep.subr.bf16.mxu0 0
      %2824 = vmatpush1.bf16.msra.mxu0 %v2761
      %2825 = vmatprep.subr.bf16.mxu0 0
      %2826 = vmatpush1.bf16.msra.mxu0 %v2762
      %2827 = vmatprep.subr.bf16.mxu0 0
      %2828 = vmatpush1.bf16.msra.mxu0 %v2817
      %2829 = vmatprep.subr.bf16.mxu0 0
      %2830 = vmatpush1.bf16.msra.mxu0 0
      %2831 = vmatprep.subr.bf16.mxu0 0
      %2832 = vmatpush1.bf16.msra.mxu0 0
      %2833 = vmatprep.subr.bf16.mxu0 0
      %2834 = vmatpush1.bf16.msra.mxu0 0
      %2835 = vmatprep.subr.bf16.mxu0 0
      %2836 = vmatpush1.bf16.msra.mxu0 0
      %2837 = vmatprep.subr.bf16.mxu0 0
      %2838 = vmatpush1.bf16.msra.mxu0 0
      %2839 = vmatprep.subr.bf16.mxu0 0
      %2840 = vmatpush1.bf16.msra.mxu0 0
      %2841 = vmatprep.subr.bf16.mxu0 0
      %2842 = vmatpush1.bf16.msra.mxu0 0
      %2843 = vmatprep.subr.bf16.mxu0 0
      %2844 = vmatpush1.bf16.msra.mxu0 0
      %2845 = vmatprep.subr.bf16.mxu0 0
      %2846 = vmatpush1.bf16.msra.mxu0 0
      %2847 = vmatprep.subr.bf16.mxu0 0
      %2848 = vmatpush1.bf16.msra.mxu0 0
      %2849 = vmatprep.subr.bf16.mxu0 0
      %2850 = vmatpush1.bf16.msra.mxu0 0
      %2851 = vmatprep.mubr.bf16.mxu0 0
      %2852 = vmatmul.mubr.bf16.gmra.mrb[0].mxu0 %v2769
      %v2853 = vpop.f32.mrb[0].mxu0
      %v2854 = vadd.f32 %v2739, %v2853
      %v2855 = vpop.f32.mrb[0].mxu0
      %v2856 = vpop.f32.mrb[0].mxu0
      %v2857 = vadd.f32 %v2739, %v2856
      %v2858 = vpop.f32.mrb[0].mxu0
      %2859 = vmatprep.mubr.bf16.mxu0 0
      %2860 = vmatmul.mubr.bf16.gmra.mrb[0].mxu0 %v2772
      %v2861 = vpop.f32.mrb[0].mxu0
      %v2862 = vadd.f32 %v2739, %v2861
      %v2863 = vpop.f32.mrb[0].mxu0
      %v2864 = vpop.f32.mrb[0].mxu0
      %v2865 = vadd.f32 %v2739, %v2864
      %v2866 = vpop.f32.mrb[0].mxu0
      %2867 = vmatprep.mubr.bf16.mxu0 0
      %2868 = vmatmul.mubr.bf16.gmra.mrb[0].mxu0 %v2775
      %v2869 = vpop.f32.mrb[0].mxu0
      %v2870 = vadd.f32 %v2739, %v2869
      %v2871 = vpop.f32.mrb[0].mxu0
      %v2872 = vpop.f32.mrb[0].mxu0
      %v2873 = vadd.f32 %v2739, %v2872
      %v2874 = vpop.f32.mrb[0].mxu0
      %2875 = vmatprep.mubr.bf16.mxu0 0
      %2876 = vmatmul.mubr.bf16.gmra.mrb[0].mxu0 %v2778
      %v2877 = vpop.f32.mrb[0].mxu0
      %v2878 = vadd.f32 %v2739, %v2877
      %v2879 = vpop.f32.mrb[0].mxu0
      %v2880 = vpop.f32.mrb[0].mxu0
      %v2881 = vadd.f32 %v2739, %v2880
      %v2882 = vpop.f32.mrb[0].mxu0
      %2883 = vmatprep.mubr.bf16.mxu0 0
      %2884 = vmatmul.mubr.bf16.gmra.mrb[0].mxu0 %v2781
      %v2885 = vpop.f32.mrb[0].mxu0
      %v2886 = vadd.f32 %v2739, %v2885
      %v2887 = vpop.f32.mrb[0].mxu0
      %v2888 = vpop.f32.mrb[0].mxu0
      %v2889 = vadd.f32 %v2739, %v2888
      %v2890 = vpop.f32.mrb[0].mxu0
      %2891 = vmatprep.mubr.bf16.mxu0 0
      %2892 = vmatmul.mubr.bf16.gmra.mrb[0].mxu0 %v2784
      %v2893 = vpop.f32.mrb[0].mxu0
      %v2894 = vadd.f32 %v2739, %v2893
      %v2895 = vpop.f32.mrb[0].mxu0
      %v2896 = vpop.f32.mrb[0].mxu0
      %v2897 = vadd.f32 %v2739, %v2896
      %v2898 = vpop.f32.mrb[0].mxu0
      %2899 = vmatprep.mubr.bf16.mxu0 0
      %2900 = vmatmul.mubr.bf16.gmra.mrb[0].mxu0 %v2787
      %v2901 = vpop.f32.mrb[0].mxu0
      %v2902 = vadd.f32 %v2739, %v2901
      %v2903 = vpop.f32.mrb[0].mxu0
      %v2904 = vpop.f32.mrb[0].mxu0
      %v2905 = vadd.f32 %v2739, %v2904
      %v2906 = vpop.f32.mrb[0].mxu0
      %2907 = vmatprep.mubr.bf16.mxu0 0
      %2908 = vmatmul.mubr.bf16.gmra.mrb[0].mxu0 %v2790
      %v2909 = vpop.f32.mrb[0].mxu0
      %v2910 = vadd.f32 %v2739, %v2909
      %v2911 = vpop.f32.mrb[0].mxu0
      %v2912 = vpop.f32.mrb[0].mxu0
      %v2913 = vadd.f32 %v2739, %v2912
      %v2914 = vpop.f32.mrb[0].mxu0
      %2915 = vmatprep.mubr.bf16.mxu0 0
      %2916 = vmatmul.mubr.bf16.gmra.mrb[0].mxu0 %v2793
      %v2917 = vpop.f32.mrb[0].mxu0
      %v2918 = vadd.f32 %v2739, %v2917
      %v2919 = vpop.f32.mrb[0].mxu0
      %v2920 = vpop.f32.mrb[0].mxu0
      %v2921 = vadd.f32 %v2739, %v2920
      %v2922 = vpop.f32.mrb[0].mxu0
      %2923 = vmatprep.mubr.bf16.mxu0 0
      %2924 = vmatmul.mubr.bf16.gmra.mrb[0].mxu0 %v2796
      %v2925 = vpop.f32.mrb[0].mxu0
      %v2926 = vadd.f32 %v2739, %v2925
      %v2927 = vpop.f32.mrb[0].mxu0
      %v2928 = vpop.f32.mrb[0].mxu0
      %v2929 = vadd.f32 %v2739, %v2928
      %v2930 = vpop.f32.mrb[0].mxu0
      %2931 = vmatprep.mubr.bf16.mxu0 0
      %2932 = vmatmul.mubr.bf16.gmra.mrb[0].mxu0 %v2799
      %v2933 = vpop.f32.mrb[0].mxu0
      %v2934 = vadd.f32 %v2739, %v2933
      %v2935 = vpop.f32.mrb[0].mxu0
      %v2936 = vpop.f32.mrb[0].mxu0
      %v2937 = vadd.f32 %v2739, %v2936
      %v2938 = vpop.f32.mrb[0].mxu0
      %2939 = vmatprep.mubr.bf16.mxu0 0
      %2940 = vmatmul.mubr.bf16.gmra.mrb[0].mxu0 %v2802
      %v2941 = vpop.f32.mrb[0].mxu0
      %v2942 = vadd.f32 %v2739, %v2941
      %v2943 = vpop.f32.mrb[0].mxu0
      %v2944 = vpop.f32.mrb[0].mxu0
      %v2945 = vadd.f32 %v2739, %v2944
      %v2946 = vpop.f32.mrb[0].mxu0
      %2947 = vmatprep.mubr.bf16.mxu0 0
      %2948 = vmatmul.mubr.bf16.gmra.mrb[0].mxu0 %v2805
      %v2949 = vpop.f32.mrb[0].mxu0
      %v2950 = vadd.f32 %v2739, %v2949
      %v2951 = vpop.f32.mrb[0].mxu0
      %v2952 = vpop.f32.mrb[0].mxu0
      %v2953 = vadd.f32 %v2739, %v2952
      %v2954 = vpop.f32.mrb[0].mxu0
      %2955 = vmatprep.mubr.bf16.mxu0 0
      %2956 = vmatmul.mubr.bf16.gmra.mrb[0].mxu0 %v2808
      %v2957 = vpop.f32.mrb[0].mxu0
      %v2958 = vadd.f32 %v2739, %v2957
      %v2959 = vpop.f32.mrb[0].mxu0
      %v2960 = vpop.f32.mrb[0].mxu0
      %v2961 = vadd.f32 %v2739, %v2960
      %v2962 = vpop.f32.mrb[0].mxu0
      %2963 = vmatprep.mubr.bf16.mxu0 0
      %2964 = vmatmul.mubr.bf16.gmra.mrb[0].mxu0 %v2811
      %v2965 = vpop.f32.mrb[0].mxu0
      %v2966 = vadd.f32 %v2739, %v2965
      %v2967 = vpop.f32.mrb[0].mxu0
      %v2968 = vpop.f32.mrb[0].mxu0
      %v2969 = vadd.f32 %v2739, %v2968
      %v2970 = vpop.f32.mrb[0].mxu0
      %2971 = vmatprep.mubr.bf16.mxu0 0
      %2972 = vmatmul.mubr.bf16.gmra.mrb[0].mxu0 %v2814
      %v2973 = vpop.f32.mrb[0].mxu0
      %v2974 = vadd.f32 %v2739, %v2973
      %v2975 = vpop.f32.mrb[0].mxu0
      %v2976 = vpop.f32.mrb[0].mxu0
      %v2977 = vadd.f32 %v2739, %v2976
      %v2978 = vpop.f32.mrb[0].mxu0
      %2979 = vdwg.mxu0
      %v2980 = vmax.f32 %v2854, 0.0
      %v2981 = vmax.f32 %v2857, 0.0
      %v2982 = vmax.f32 %v2862, 0.0
      %v2983 = vmax.f32 %v2865, 0.0
      %v2984 = vmax.f32 %v2870, 0.0
      %v2985 = vmax.f32 %v2873, 0.0
      %v2986 = vmax.f32 %v2878, 0.0
      %v2987 = vmax.f32 %v2881, 0.0
      %v2988 = vmax.f32 %v2886, 0.0
      %v2989 = vmax.f32 %v2889, 0.0
      %v2990 = vmax.f32 %v2894, 0.0
      %v2991 = vmax.f32 %v2897, 0.0
      %v2992 = vmax.f32 %v2902, 0.0
      %v2993 = vmax.f32 %v2905, 0.0
      %v2994 = vmax.f32 %v2910, 0.0
      %v2995 = vmax.f32 %v2913, 0.0
      %v2996 = vmax.f32 %v2918, 0.0
      %v2997 = vmax.f32 %v2921, 0.0
      %v2998 = vmax.f32 %v2926, 0.0
      %v2999 = vmax.f32 %v2929, 0.0
      %v3000 = vmax.f32 %v2934, 0.0
      %v3001 = vmax.f32 %v2937, 0.0
      %v3002 = vmax.f32 %v2942, 0.0
      %v3003 = vmax.f32 %v2945, 0.0
      %v3004 = vmax.f32 %v2950, 0.0
      %v3005 = vmax.f32 %v2953, 0.0
      %v3006 = vmax.f32 %v2958, 0.0
      %v3007 = vmax.f32 %v2961, 0.0
      %v3008 = vmax.f32 %v2966, 0.0
      %v3009 = vmax.f32 %v2969, 0.0
      %v3010 = vmax.f32 %v2974, 0.0
      %v3011 = vmax.f32 %v2977, 0.0
      %v3012 = vmin.f32 %v2980, 6.0
      %v3013 = vmin.f32 %v2981, 6.0
      %v3014 = vmin.f32 %v2982, 6.0
      %v3015 = vmin.f32 %v2983, 6.0
      %v3016 = vmin.f32 %v2984, 6.0
      %v3017 = vmin.f32 %v2985, 6.0
      %v3018 = vmin.f32 %v2986, 6.0
      %v3019 = vmin.f32 %v2987, 6.0
      %v3020 = vmin.f32 %v2988, 6.0
      %v3021 = vmin.f32 %v2989, 6.0
      %v3022 = vmin.f32 %v2990, 6.0
      %v3023 = vmin.f32 %v2991, 6.0
      %v3024 = vmin.f32 %v2992, 6.0
      %v3025 = vmin.f32 %v2993, 6.0
      %v3026 = vmin.f32 %v2994, 6.0
      %v3027 = vmin.f32 %v2995, 6.0
      %v3028 = vmin.f32 %v2996, 6.0
      %v3029 = vmin.f32 %v2997, 6.0
      %v3030 = vmin.f32 %v2998, 6.0
      %v3031 = vmin.f32 %v2999, 6.0
      %v3032 = vmin.f32 %v3000, 6.0
      %v3033 = vmin.f32 %v3001, 6.0
      %v3034 = vmin.f32 %v3002, 6.0
      %v3035 = vmin.f32 %v3003, 6.0
      %v3036 = vmin.f32 %v3004, 6.0
      %v3037 = vmin.f32 %v3005, 6.0
      %v3038 = vmin.f32 %v3006, 6.0
      %v3039 = vmin.f32 %v3007, 6.0
      %v3040 = vmin.f32 %v3008, 6.0
      %v3041 = vmin.f32 %v3009, 6.0
      %v3042 = vmin.f32 %v3010, 6.0
      %v3043 = vmin.f32 %v3011, 6.0
      %3044 = vst.msk [vmem:[#allocation4] sm:$0xff] %vm1375, 0.0
      %vm3045 = vcmask 57344
      %3046 = vst.msk [vmem:[#allocation4 + $0x8] sm:$0x1] %vm3045, 0.0
      %3047 = vst.msk [vmem:[#allocation4 + $0x10] sm:$0xff] %vm1375, 0.0
      %3048 = vst.msk [vmem:[#allocation4 + $0x18] sm:$0x1] %vm3045, 0.0
      %3049 = vst.msk [vmem:[#allocation4 + $0x20] sm:$0xff] %vm1375, 0.0
      %3050 = vst.msk [vmem:[#allocation4 + $0x28] sm:$0x1] %vm3045, 0.0
      %3051 = vst.msk [vmem:[#allocation4 + $0x30] sm:$0xff] %vm1375, 0.0
      %3052 = vst.msk [vmem:[#allocation4 + $0x38] sm:$0x1] %vm3045, 0.0
      %3053 = vst.msk [vmem:[#allocation4 + $0x40] sm:$0xff] %vm1375, 0.0
      %3054 = vst.msk [vmem:[#allocation4 + $0x48] sm:$0x1] %vm3045, 0.0
      %3055 = vst.msk [vmem:[#allocation4 + $0x50] sm:$0xff] %vm1375, 0.0
      %3056 = vst.msk [vmem:[#allocation4 + $0x58] sm:$0x1] %vm3045, 0.0
      %3057 = vst.msk [vmem:[#allocation4 + $0x60] sm:$0xff] %vm1375, 0.0
      %3058 = vst.msk [vmem:[#allocation4 + $0x68] sm:$0x1] %vm3045, 0.0
      %3059 = vst.msk [vmem:[#allocation4 + $0x70] sm:$0xff] %vm1375, 0.0
      %3060 = vst.msk [vmem:[#allocation4 + $0x78] sm:$0x1] %vm3045, 0.0
      %3061 = vst.msk [vmem:[#allocation4 + $0x80] sm:$0xff] %vm1375, 0.0
      %3062 = vst.msk [vmem:[#allocation4 + $0x88] sm:$0x1] %vm3045, 0.0
      %3063 = vst.msk [vmem:[#allocation4 + $0x90] sm:$0xff] %vm1375, 0.0
      %3064 = vst.msk [vmem:[#allocation4 + $0x98] sm:$0x1] %vm3045, 0.0
      %3065 = vst.msk [vmem:[#allocation4 + $0xa0] sm:$0xff] %vm1375, 0.0
      %3066 = vst.msk [vmem:[#allocation4 + $0xa8] sm:$0x1] %vm3045, 0.0
      %3067 = vst.msk [vmem:[#allocation4 + $0xb0] sm:$0xff] %vm1375, 0.0
      %3068 = vst.msk [vmem:[#allocation4 + $0xb8] sm:$0x1] %vm3045, 0.0
      %3069 = vst.msk [vmem:[#allocation4 + $0xc0] sm:$0xff] %vm1375, 0.0
      %3070 = vst.msk [vmem:[#allocation4 + $0xc8] sm:$0x1] %vm3045, 0.0
      %3071 = vst.msk [vmem:[#allocation4 + $0xd0] sm:$0xff] %vm1375, 0.0
      %3072 = vst.msk [vmem:[#allocation4 + $0xd8] sm:$0x1] %vm3045, 0.0
      %3073 = vst.msk [vmem:[#allocation4 + $0xe0] sm:$0xff] %vm1375, 0.0
      %3074 = vst.msk [vmem:[#allocation4 + $0xe8] sm:$0x1] %vm3045, 0.0
      %3075 = vst.msk [vmem:[#allocation4 + $0xf0] sm:$0xff] %vm1375, 0.0
      %3076 = vst.msk [vmem:[#allocation4 + $0xf8] sm:$0x1] %vm3045, 0.0
      %3077 = vst.msk [vmem:[#allocation4 + $0x100] sm:$0xff] %vm1375, 0.0
      %3078 = vst.msk [vmem:[#allocation4 + $0x108] sm:$0x1] %vm3045, 0.0
      %3079 = vst.msk [vmem:[#allocation4 + $0x110] sm:$0xff] %vm1375, 0.0
      %3080 = vst.msk [vmem:[#allocation4 + $0x118] sm:$0x1] %vm3045, 0.0
      %3081 = vst.msk [vmem:[#allocation5] sm:$0xff] %vm1375, 0.0
      %3082 = vst.msk [vmem:[#allocation5 + $0x8] sm:$0x1] %vm3045, 0.0
      %3083 = vst.msk [vmem:[#allocation5 + $0x10] sm:$0xff] %vm1375, 0.0
      %3084 = vst.msk [vmem:[#allocation5 + $0x18] sm:$0x1] %vm3045, 0.0
      %3085 = vst.msk [vmem:[#allocation5 + $0x20] sm:$0xff] %vm1375, 0.0
      %3086 = vst.msk [vmem:[#allocation5 + $0x28] sm:$0x1] %vm3045, 0.0
      %3087 = vst.msk [vmem:[#allocation5 + $0x30] sm:$0xff] %vm1375, 0.0
      %3088 = vst.msk [vmem:[#allocation5 + $0x38] sm:$0x1] %vm3045, 0.0
      %3089 = vst.msk [vmem:[#allocation5 + $0x40] sm:$0xff] %vm1375, 0.0
      %3090 = vst.msk [vmem:[#allocation5 + $0x48] sm:$0x1] %vm3045, 0.0
      %3091 = vst.msk [vmem:[#allocation5 + $0x50] sm:$0xff] %vm1375, 0.0
      %3092 = vst.msk [vmem:[#allocation5 + $0x58] sm:$0x1] %vm3045, 0.0
      %3093 = vst.msk [vmem:[#allocation5 + $0x60] sm:$0xff] %vm1375, 0.0
      %3094 = vst.msk [vmem:[#allocation5 + $0x68] sm:$0x1] %vm3045, 0.0
      %3095 = vst.msk [vmem:[#allocation5 + $0x70] sm:$0xff] %vm1375, 0.0
      %3096 = vst.msk [vmem:[#allocation5 + $0x78] sm:$0x1] %vm3045, 0.0
      %3097 = vst.msk [vmem:[#allocation5 + $0x80] sm:$0xff] %vm1375, 0.0
      %3098 = vst.msk [vmem:[#allocation5 + $0x88] sm:$0x1] %vm3045, 0.0
      %3099 = vst.msk [vmem:[#allocation5 + $0x90] sm:$0xff] %vm1375, 0.0
      %3100 = vst.msk [vmem:[#allocation5 + $0x98] sm:$0x1] %vm3045, 0.0
      %3101 = vst.msk [vmem:[#allocation5 + $0xa0] sm:$0xff] %vm1375, 0.0
      %3102 = vst.msk [vmem:[#allocation5 + $0xa8] sm:$0x1] %vm3045, 0.0
      %3103 = vst.msk [vmem:[#allocation5 + $0xb0] sm:$0xff] %vm1375, 0.0
      %3104 = vst.msk [vmem:[#allocation5 + $0xb8] sm:$0x1] %vm3045, 0.0
      %3105 = vst.msk [vmem:[#allocation5 + $0xc0] sm:$0xff] %vm1375, 0.0
      %3106 = vst.msk [vmem:[#allocation5 + $0xc8] sm:$0x1] %vm3045, 0.0
      %3107 = vst.msk [vmem:[#allocation5 + $0xd0] sm:$0xff] %vm1375, 0.0
      %3108 = vst.msk [vmem:[#allocation5 + $0xd8] sm:$0x1] %vm3045, 0.0
      %3109 = vst.msk [vmem:[#allocation5 + $0xe0] sm:$0xff] %vm1375, 0.0
      %3110 = vst.msk [vmem:[#allocation5 + $0xe8] sm:$0x1] %vm3045, 0.0
      %3111 = vst.msk [vmem:[#allocation5 + $0xf0] sm:$0xff] %vm1375, 0.0
      %3112 = vst.msk [vmem:[#allocation5 + $0xf8] sm:$0x1] %vm3045, 0.0
      %3113 = vst.msk [vmem:[#allocation5 + $0x100] sm:$0xff] %vm1375, 0.0
      %3114 = vst.msk [vmem:[#allocation5 + $0x108] sm:$0x1] %vm3045, 0.0
      %3115 = vst.msk [vmem:[#allocation5 + $0x110] sm:$0xff] %vm1375, 0.0
      %3116 = vst.msk [vmem:[#allocation5 + $0x118] sm:$0x1] %vm3045, 0.0
      %s3117 = scalar_lea.vmem [#allocation5], 16
      %3118 = vst.msk [vmem:[%s3117] sm:$0xff] %vm1375, %v3012
      %3119 = vst.msk [vmem:[%s3117 + $0x10] sm:$0xff] %vm1375, %v3013
      %3120 = vst.msk [vmem:[%s3117 + $0x20] sm:$0xff] %vm1375, %v3014
      %3121 = vst.msk [vmem:[%s3117 + $0x30] sm:$0xff] %vm1375, %v3015
      %3122 = vst.msk [vmem:[%s3117 + $0x40] sm:$0xff] %vm1375, %v3016
      %3123 = vst.msk [vmem:[%s3117 + $0x50] sm:$0xff] %vm1375, %v3017
      %3124 = vst.msk [vmem:[%s3117 + $0x60] sm:$0xff] %vm1375, %v3018
      %3125 = vst.msk [vmem:[%s3117 + $0x70] sm:$0xff] %vm1375, %v3019
      %3126 = vst.msk [vmem:[%s3117 + $0x80] sm:$0xff] %vm1375, %v3020
      %3127 = vst.msk [vmem:[%s3117 + $0x90] sm:$0xff] %vm1375, %v3021
      %3128 = vst.msk [vmem:[%s3117 + $0xa0] sm:$0xff] %vm1375, %v3022
      %3129 = vst.msk [vmem:[%s3117 + $0xb0] sm:$0xff] %vm1375, %v3023
      %3130 = vst.msk [vmem:[%s3117 + $0xc0] sm:$0xff] %vm1375, %v3024
      %3131 = vst.msk [vmem:[%s3117 + $0xd0] sm:$0xff] %vm1375, %v3025
      %3132 = vst.msk [vmem:[%s3117 + $0xe0] sm:$0xff] %vm1375, %v3026
      %3133 = vst.msk [vmem:[%s3117 + $0xf0] sm:$0xff] %vm1375, %v3027
      %s3134 = scalar_lea.vmem [#allocation4], 16
      %3135 = vst.msk [vmem:[%s3134 + $0x1] sm:$0xff] %vm1375, %v3028
      %3136 = vst.msk [vmem:[%s3134 + $0x11] sm:$0xff] %vm1375, %v3029
      %3137 = vst.msk [vmem:[%s3134 + $0x21] sm:$0xff] %vm1375, %v3030
      %3138 = vst.msk [vmem:[%s3134 + $0x31] sm:$0xff] %vm1375, %v3031
      %3139 = vst.msk [vmem:[%s3134 + $0x41] sm:$0xff] %vm1375, %v3032
      %3140 = vst.msk [vmem:[%s3134 + $0x51] sm:$0xff] %vm1375, %v3033
      %3141 = vst.msk [vmem:[%s3134 + $0x61] sm:$0xff] %vm1375, %v3034
      %3142 = vst.msk [vmem:[%s3134 + $0x71] sm:$0xff] %vm1375, %v3035
      %3143 = vst.msk [vmem:[%s3134 + $0x81] sm:$0xff] %vm1375, %v3036
      %3144 = vst.msk [vmem:[%s3134 + $0x91] sm:$0xff] %vm1375, %v3037
      %3145 = vst.msk [vmem:[%s3134 + $0xa1] sm:$0xff] %vm1375, %v3038
      %3146 = vst.msk [vmem:[%s3134 + $0xb1] sm:$0xff] %vm1375, %v3039
      %3147 = vst.msk [vmem:[%s3134 + $0xc1] sm:$0xff] %vm1375, %v3040
      %3148 = vst.msk [vmem:[%s3134 + $0xd1] sm:$0xff] %vm1375, %v3041
      %3149 = vst.msk [vmem:[%s3134 + $0xe1] sm:$0xff] %vm1375, %v3042
      %3150 = vst.msk [vmem:[%s3134 + $0xf1] sm:$0xff] %vm1375, %v3043
      %v3151 = vld [vmem:[#allocation4] sm:$0xff]
      %v3152 = vld [vmem:[#allocation4 + $0x8] sm:$0x1]
      %v3153 = vld [vmem:[#allocation4 + $0x10] sm:$0xff]
      %v3154 = vld [vmem:[#allocation4 + $0x18] sm:$0x1]
      %v3155 = vld [vmem:[#allocation4 + $0x20] sm:$0xff]
      %v3156 = vld [vmem:[#allocation4 + $0x28] sm:$0x1]
      %v3157 = vld [vmem:[#allocation4 + $0x30] sm:$0xff]
      %v3158 = vld [vmem:[#allocation4 + $0x38] sm:$0x1]
      %v3159 = vld [vmem:[#allocation4 + $0x40] sm:$0xff]
      %v3160 = vld [vmem:[#allocation4 + $0x48] sm:$0x1]
      %v3161 = vld [vmem:[#allocation4 + $0x50] sm:$0xff]
      %v3162 = vld [vmem:[#allocation4 + $0x58] sm:$0x1]
      %v3163 = vld [vmem:[#allocation4 + $0x60] sm:$0xff]
      %v3164 = vld [vmem:[#allocation4 + $0x68] sm:$0x1]
      %v3165 = vld [vmem:[#allocation4 + $0x70] sm:$0xff]
      %v3166 = vld [vmem:[#allocation4 + $0x78] sm:$0x1]
      %v3167 = vld [vmem:[#allocation4 + $0x80] sm:$0xff]
      %v3168 = vld [vmem:[#allocation4 + $0x88] sm:$0x1]
      %v3169 = vld [vmem:[#allocation4 + $0x90] sm:$0xff]
      %v3170 = vld [vmem:[#allocation4 + $0x98] sm:$0x1]
      %v3171 = vld [vmem:[#allocation4 + $0xa0] sm:$0xff]
      %v3172 = vld [vmem:[#allocation4 + $0xa8] sm:$0x1]
      %v3173 = vld [vmem:[#allocation4 + $0xb0] sm:$0xff]
      %v3174 = vld [vmem:[#allocation4 + $0xb8] sm:$0x1]
      %v3175 = vld [vmem:[#allocation4 + $0xc0] sm:$0xff]
      %v3176 = vld [vmem:[#allocation4 + $0xc8] sm:$0x1]
      %v3177 = vld [vmem:[#allocation4 + $0xd0] sm:$0xff]
      %v3178 = vld [vmem:[#allocation4 + $0xd8] sm:$0x1]
      %v3179 = vld [vmem:[#allocation4 + $0xe0] sm:$0xff]
      %v3180 = vld [vmem:[#allocation4 + $0xe8] sm:$0x1]
      %v3181 = vld [vmem:[#allocation4 + $0xf0] sm:$0xff]
      %v3182 = vld [vmem:[#allocation4 + $0xf8] sm:$0x1]
      %v3183 = vld [vmem:[#allocation4 + $0x100] sm:$0xff]
      %v3184 = vld [vmem:[#allocation4 + $0x108] sm:$0x1]
      %v3185 = vld [vmem:[#allocation5] sm:$0xff]
      %v3186 = vld [vmem:[#allocation5 + $0x10] sm:$0xff]
      %v3187 = vld [vmem:[#allocation5 + $0x20] sm:$0xff]
      %v3188 = vld [vmem:[#allocation5 + $0x30] sm:$0xff]
      %v3189 = vld [vmem:[#allocation5 + $0x40] sm:$0xff]
      %v3190 = vld [vmem:[#allocation5 + $0x50] sm:$0xff]
      %v3191 = vld [vmem:[#allocation5 + $0x60] sm:$0xff]
      %v3192 = vld [vmem:[#allocation5 + $0x70] sm:$0xff]
      %v3193 = vld [vmem:[#allocation5 + $0x80] sm:$0xff]
      %v3194 = vld [vmem:[#allocation5 + $0x90] sm:$0xff]
      %v3195 = vld [vmem:[#allocation5 + $0xa0] sm:$0xff]
      %v3196 = vld [vmem:[#allocation5 + $0xb0] sm:$0xff]
      %v3197 = vld [vmem:[#allocation5 + $0xc0] sm:$0xff]
      %v3198 = vld [vmem:[#allocation5 + $0xd0] sm:$0xff]
      %v3199 = vld [vmem:[#allocation5 + $0xe0] sm:$0xff]
      %v3200 = vld [vmem:[#allocation5 + $0xf0] sm:$0xff]
      %v3201 = vld [vmem:[#allocation5 + $0x100] sm:$0xff]
      %3210 = vrot.lane.b32.xlu0 %v3185, 8
      %v3211 = vpop.permute.xlu0 %3210
      %3212 = vrot.lane.b32.xlu0 %v3187, 8
      %v3213 = vpop.permute.xlu0 %3212
      %3214 = vrot.lane.b32.xlu0 %v3189, 8
      %v3215 = vpop.permute.xlu0 %3214
      %3216 = vrot.lane.b32.xlu0 %v3191, 8
      %v3217 = vpop.permute.xlu0 %3216
      %3218 = vrot.lane.b32.xlu0 %v3193, 8
      %v3219 = vpop.permute.xlu0 %3218
      %3220 = vrot.lane.b32.xlu0 %v3195, 8
      %v3221 = vpop.permute.xlu0 %3220
      %3222 = vrot.lane.b32.xlu0 %v3197, 8
      %v3223 = vpop.permute.xlu0 %3222
      %3224 = vrot.lane.b32.xlu0 %v3199, 8
      %v3225 = vpop.permute.xlu0 %3224
      %v3250 = vrot.slane %v3151, 1
      %v3251 = vrot.slane %v3152, 1
      %v3252 = vsel %vm456, %v3250, %v3251
      %v3253 = vrot.slane %v3155, 1
      %v3254 = vrot.slane %v3156, 1
      %v3255 = vsel %vm456, %v3253, %v3254
      %v3256 = vrot.slane %v3159, 1
      %v3257 = vrot.slane %v3160, 1
      %v3258 = vsel %vm456, %v3256, %v3257
      %v3259 = vrot.slane %v3163, 1
      %v3260 = vrot.slane %v3164, 1
      %v3261 = vsel %vm456, %v3259, %v3260
      %v3262 = vrot.slane %v3167, 1
      %v3263 = vrot.slane %v3168, 1
      %v3264 = vsel %vm456, %v3262, %v3263
      %v3265 = vrot.slane %v3171, 1
      %v3266 = vrot.slane %v3172, 1
      %v3267 = vsel %vm456, %v3265, %v3266
      %v3268 = vrot.slane %v3175, 1
      %v3269 = vrot.slane %v3176, 1
      %v3270 = vsel %vm456, %v3268, %v3269
      %v3271 = vrot.slane %v3179, 1
      %v3272 = vrot.slane %v3180, 1
      %v3273 = vsel %vm456, %v3271, %v3272
      %3274 = vrot.lane.b32.xlu0 %v3252, 16
      %v3275 = vpop.permute.xlu0 %3274
      %3276 = vrot.lane.b32.xlu0 %v3255, 16
      %v3277 = vpop.permute.xlu0 %3276
      %3278 = vrot.lane.b32.xlu0 %v3258, 16
      %v3279 = vpop.permute.xlu0 %3278
      %3280 = vrot.lane.b32.xlu0 %v3261, 16
      %v3281 = vpop.permute.xlu0 %3280
      %3282 = vrot.lane.b32.xlu0 %v3264, 16
      %v3283 = vpop.permute.xlu0 %3282
      %3284 = vrot.lane.b32.xlu0 %v3267, 16
      %v3285 = vpop.permute.xlu0 %3284
      %3286 = vrot.lane.b32.xlu0 %v3270, 16
      %v3287 = vpop.permute.xlu0 %3286
      %3288 = vrot.lane.b32.xlu0 %v3273, 16
      %v3289 = vpop.permute.xlu0 %3288
      %3306 = vrot.lane.b32.xlu0 %v3153, 24
      %v3307 = vpop.permute.xlu0 %3306
      %3308 = vrot.lane.b32.xlu0 %v3157, 24
      %v3309 = vpop.permute.xlu0 %3308
      %3310 = vrot.lane.b32.xlu0 %v3161, 24
      %v3311 = vpop.permute.xlu0 %3310
      %3312 = vrot.lane.b32.xlu0 %v3165, 24
      %v3313 = vpop.permute.xlu0 %3312
      %3314 = vrot.lane.b32.xlu0 %v3169, 24
      %v3315 = vpop.permute.xlu0 %3314
      %3316 = vrot.lane.b32.xlu0 %v3173, 24
      %v3317 = vpop.permute.xlu0 %3316
      %3318 = vrot.lane.b32.xlu0 %v3177, 24
      %v3319 = vpop.permute.xlu0 %3318
      %3320 = vrot.lane.b32.xlu0 %v3181, 24
      %v3321 = vpop.permute.xlu0 %3320
      %3338 = vrot.lane.b32.xlu0 %v3186, 32
      %v3339 = vpop.permute.xlu0 %3338
      %3340 = vrot.lane.b32.xlu0 %v3188, 32
      %v3341 = vpop.permute.xlu0 %3340
      %3342 = vrot.lane.b32.xlu0 %v3190, 32
      %v3343 = vpop.permute.xlu0 %3342
      %3344 = vrot.lane.b32.xlu0 %v3192, 32
      %v3345 = vpop.permute.xlu0 %3344
      %3346 = vrot.lane.b32.xlu0 %v3194, 32
      %v3347 = vpop.permute.xlu0 %3346
      %3348 = vrot.lane.b32.xlu0 %v3196, 32
      %v3349 = vpop.permute.xlu0 %3348
      %3350 = vrot.lane.b32.xlu0 %v3198, 32
      %v3351 = vpop.permute.xlu0 %3350
      %3352 = vrot.lane.b32.xlu0 %v3200, 32
      %v3353 = vpop.permute.xlu0 %3352
      %v3370 = vrot.slane %v3153, 1
      %v3371 = vrot.slane %v3154, 1
      %v3372 = vsel %vm456, %v3370, %v3371
      %v3373 = vrot.slane %v3157, 1
      %v3374 = vrot.slane %v3158, 1
      %v3375 = vsel %vm456, %v3373, %v3374
      %v3376 = vrot.slane %v3161, 1
      %v3377 = vrot.slane %v3162, 1
      %v3378 = vsel %vm456, %v3376, %v3377
      %v3379 = vrot.slane %v3165, 1
      %v3380 = vrot.slane %v3166, 1
      %v3381 = vsel %vm456, %v3379, %v3380
      %v3382 = vrot.slane %v3169, 1
      %v3383 = vrot.slane %v3170, 1
      %v3384 = vsel %vm456, %v3382, %v3383
      %v3385 = vrot.slane %v3173, 1
      %v3386 = vrot.slane %v3174, 1
      %v3387 = vsel %vm456, %v3385, %v3386
      %v3388 = vrot.slane %v3177, 1
      %v3389 = vrot.slane %v3178, 1
      %v3390 = vsel %vm456, %v3388, %v3389
      %v3391 = vrot.slane %v3181, 1
      %v3392 = vrot.slane %v3182, 1
      %v3393 = vsel %vm456, %v3391, %v3392
      %3394 = vrot.lane.b32.xlu0 %v3372, 40
      %v3395 = vpop.permute.xlu0 %3394
      %3396 = vrot.lane.b32.xlu0 %v3375, 40
      %v3397 = vpop.permute.xlu0 %3396
      %3398 = vrot.lane.b32.xlu0 %v3378, 40
      %v3399 = vpop.permute.xlu0 %3398
      %3400 = vrot.lane.b32.xlu0 %v3381, 40
      %v3401 = vpop.permute.xlu0 %3400
      %3402 = vrot.lane.b32.xlu0 %v3384, 40
      %v3403 = vpop.permute.xlu0 %3402
      %3404 = vrot.lane.b32.xlu0 %v3387, 40
      %v3405 = vpop.permute.xlu0 %3404
      %3406 = vrot.lane.b32.xlu0 %v3390, 40
      %v3407 = vpop.permute.xlu0 %3406
      %3408 = vrot.lane.b32.xlu0 %v3393, 40
      %v3409 = vpop.permute.xlu0 %3408
      %3419 = vrot.lane.b32.xlu0 %v3155, 48
      %v3420 = vpop.permute.xlu0 %3419
      %3421 = vrot.lane.b32.xlu0 %v3159, 48
      %v3422 = vpop.permute.xlu0 %3421
      %3423 = vrot.lane.b32.xlu0 %v3163, 48
      %v3424 = vpop.permute.xlu0 %3423
      %3425 = vrot.lane.b32.xlu0 %v3167, 48
      %v3426 = vpop.permute.xlu0 %3425
      %3427 = vrot.lane.b32.xlu0 %v3171, 48
      %v3428 = vpop.permute.xlu0 %3427
      %3429 = vrot.lane.b32.xlu0 %v3175, 48
      %v3430 = vpop.permute.xlu0 %3429
      %3431 = vrot.lane.b32.xlu0 %v3179, 48
      %v3432 = vpop.permute.xlu0 %3431
      %3433 = vrot.lane.b32.xlu0 %v3183, 48
      %v3434 = vpop.permute.xlu0 %3433
      %3444 = vrot.lane.b32.xlu0 %v3187, 56
      %v3445 = vpop.permute.xlu0 %3444
      %3446 = vrot.lane.b32.xlu0 %v3189, 56
      %v3447 = vpop.permute.xlu0 %3446
      %3448 = vrot.lane.b32.xlu0 %v3191, 56
      %v3449 = vpop.permute.xlu0 %3448
      %3450 = vrot.lane.b32.xlu0 %v3193, 56
      %v3451 = vpop.permute.xlu0 %3450
      %3452 = vrot.lane.b32.xlu0 %v3195, 56
      %v3453 = vpop.permute.xlu0 %3452
      %3454 = vrot.lane.b32.xlu0 %v3197, 56
      %v3455 = vpop.permute.xlu0 %3454
      %3456 = vrot.lane.b32.xlu0 %v3199, 56
      %v3457 = vpop.permute.xlu0 %3456
      %3458 = vrot.lane.b32.xlu0 %v3201, 56
      %v3459 = vpop.permute.xlu0 %3458
      %v3469 = vrot.slane %v3183, 1
      %v3470 = vrot.slane %v3184, 1
      %v3471 = vsel %vm456, %v3469, %v3470
      %3472 = vrot.lane.b32.xlu0 %v3255, 64
      %v3473 = vpop.permute.xlu0 %3472
      %3474 = vrot.lane.b32.xlu0 %v3258, 64
      %v3475 = vpop.permute.xlu0 %3474
      %3476 = vrot.lane.b32.xlu0 %v3261, 64
      %v3477 = vpop.permute.xlu0 %3476
      %3478 = vrot.lane.b32.xlu0 %v3264, 64
      %v3479 = vpop.permute.xlu0 %3478
      %3480 = vrot.lane.b32.xlu0 %v3267, 64
      %v3481 = vpop.permute.xlu0 %3480
      %3482 = vrot.lane.b32.xlu0 %v3270, 64
      %v3483 = vpop.permute.xlu0 %3482
      %3484 = vrot.lane.b32.xlu0 %v3273, 64
      %v3485 = vpop.permute.xlu0 %3484
      %3486 = vrot.lane.b32.xlu0 %v3471, 64
      %v3487 = vpop.permute.xlu0 %3486
      %v3496 = vsel %vm1375, %v3151, %v3211
      %v3497 = vsel %vm1375, %v3155, %v3213
      %v3498 = vsel %vm1375, %v3159, %v3215
      %v3499 = vsel %vm1375, %v3163, %v3217
      %v3500 = vsel %vm1375, %v3167, %v3219
      %v3501 = vsel %vm1375, %v3171, %v3221
      %v3502 = vsel %vm1375, %v3175, %v3223
      %v3503 = vsel %vm1375, %v3179, %v3225
      %v3504 = vsel %vm901, %v3496, %v3275
      %v3505 = vsel %vm901, %v3497, %v3277
      %v3506 = vsel %vm901, %v3498, %v3279
      %v3507 = vsel %vm901, %v3499, %v3281
      %v3508 = vsel %vm901, %v3500, %v3283
      %v3509 = vsel %vm901, %v3501, %v3285
      %v3510 = vsel %vm901, %v3502, %v3287
      %v3511 = vsel %vm901, %v3503, %v3289
      %v3512 = vsel %vm1392, %v3504, %v3307
      %v3513 = vsel %vm1392, %v3505, %v3309
      %v3514 = vsel %vm1392, %v3506, %v3311
      %v3515 = vsel %vm1392, %v3507, %v3313
      %v3516 = vsel %vm1392, %v3508, %v3315
      %v3517 = vsel %vm1392, %v3509, %v3317
      %v3518 = vsel %vm1392, %v3510, %v3319
      %v3519 = vsel %vm1392, %v3511, %v3321
      %v3520 = vsel %vm1401, %v3512, %v3339
      %v3521 = vsel %vm1401, %v3513, %v3341
      %v3522 = vsel %vm1401, %v3514, %v3343
      %v3523 = vsel %vm1401, %v3515, %v3345
      %v3524 = vsel %vm1401, %v3516, %v3347
      %v3525 = vsel %vm1401, %v3517, %v3349
      %v3526 = vsel %vm1401, %v3518, %v3351
      %v3527 = vsel %vm1401, %v3519, %v3353
      %v3528 = vsel %vm1410, %v3520, %v3395
      %v3529 = vsel %vm1410, %v3521, %v3397
      %v3530 = vsel %vm1410, %v3522, %v3399
      %v3531 = vsel %vm1410, %v3523, %v3401
      %v3532 = vsel %vm1410, %v3524, %v3403
      %v3533 = vsel %vm1410, %v3525, %v3405
      %v3534 = vsel %vm1410, %v3526, %v3407
      %v3535 = vsel %vm1410, %v3527, %v3409
      %v3536 = vsel %vm1419, %v3528, %v3420
      %v3537 = vsel %vm1419, %v3529, %v3422
      %v3538 = vsel %vm1419, %v3530, %v3424
      %v3539 = vsel %vm1419, %v3531, %v3426
      %v3540 = vsel %vm1419, %v3532, %v3428
      %v3541 = vsel %vm1419, %v3533, %v3430
      %v3542 = vsel %vm1419, %v3534, %v3432
      %v3543 = vsel %vm1419, %v3535, %v3434
      %v3544 = vsel %vm1428, %v3536, %v3445
      %v3545 = vsel %vm1428, %v3537, %v3447
      %v3546 = vsel %vm1428, %v3538, %v3449
      %v3547 = vsel %vm1428, %v3539, %v3451
      %v3548 = vsel %vm1428, %v3540, %v3453
      %v3549 = vsel %vm1428, %v3541, %v3455
      %v3550 = vsel %vm1428, %v3542, %v3457
      %v3551 = vsel %vm1428, %v3543, %v3459
      %v3552 = vsel %vm1437, %v3544, %v3473
      %v3553 = vsel %vm1437, %v3545, %v3475
      %v3554 = vsel %vm1437, %v3546, %v3477
      %v3555 = vsel %vm1437, %v3547, %v3479
      %v3556 = vsel %vm1437, %v3548, %v3481
      %v3557 = vsel %vm1437, %v3549, %v3483
      %v3558 = vsel %vm1437, %v3550, %v3485
      %v3559 = vsel %vm1437, %v3551, %v3487
      %v3560 = vpack.c.bf16 %v3553, %v3552
      %v3561 = vpack.c.bf16 %v3555, %v3554
      %v3562 = vpack.c.bf16 %v3557, %v3556
      %v3563 = vpack.c.bf16 %v3559, %v3558
      %v3564 = vld [vmem:[%s8] sm:$0xf]
      %v3565 = vld [vmem:[%s8 + $0x4] sm:$0xf]
      %v3566 = vld [vmem:[%s8 + $0x8] sm:$0xf]
      %v3567 = vld [vmem:[%s8 + $0xc] sm:$0xf]
      %v3568 = vld [vmem:[%s8 + $0x10] sm:$0xf]
      %v3569 = vld [vmem:[%s8 + $0x14] sm:$0xf]
      %v3570 = vld [vmem:[%s8 + $0x18] sm:$0xf]
      %v3571 = vld [vmem:[%s8 + $0x1c] sm:$0xf]
      %v3572 = vld [vmem:[%s8 + $0x20] sm:$0xf]
      %v3573 = vld [vmem:[%s9] sm:$0x1]
      %v3575 = vlaneseq
      %v3576 = vshrl.u32 %v3575, 7
      %v3577 = vsub.s32 0, %v3576
      %v3578 = vrot.slane %v3573, %v3577
      %v3589 = vunpack.c.l.b16 %v3564
      %v3590 = vunpack.c.l.b16 %v3565
      %v3591 = vunpack.c.l.b16 %v3566
      %v3592 = vunpack.c.l.b16 %v3567
      %v3593 = vunpack.c.l.b16 %v3568
      %v3594 = vunpack.c.l.b16 %v3569
      %v3595 = vunpack.c.l.b16 %v3570
      %v3596 = vunpack.c.l.b16 %v3571
      %v3597 = vunpack.c.l.b16 %v3572
      %v3598 = vpack.c.b16 %v3590, %v3589
      %v3599 = vpack.c.b16 %v3592, %v3591
      %v3600 = vpack.c.b16 %v3594, %v3593
      %v3601 = vpack.c.b16 %v3596, %v3595
      %v3602 = vpack.c.b16 %v3597, %v3597
      %v3608 = vsel %vm1493, %v3560, 0
      %v3611 = vsel %vm1493, %v3561, 0
      %v3614 = vsel %vm1493, %v3562, 0
      %v3617 = vsel %vm1493, %v3563, 0
      %v3620 = vsel %vm1506, %v3602, 0
      %3622 = vmatprep.subr.bf16.mxu0 0
      %3623 = vmatpush1.bf16.msra.mxu0 %v3598
      %3624 = vmatprep.subr.bf16.mxu0 0
      %3625 = vmatpush1.bf16.msra.mxu0 %v3599
      %3626 = vmatprep.subr.bf16.mxu0 0
      %3627 = vmatpush1.bf16.msra.mxu0 %v3600
      %3628 = vmatprep.subr.bf16.mxu0 0
      %3629 = vmatpush1.bf16.msra.mxu0 %v3601
      %3630 = vmatprep.subr.bf16.mxu0 0
      %3631 = vmatpush1.bf16.msra.mxu0 %v3620
      %3632 = vmatprep.subr.bf16.mxu0 0
      %3633 = vmatpush1.bf16.msra.mxu0 0
      %3634 = vmatprep.subr.bf16.mxu0 0
      %3635 = vmatpush1.bf16.msra.mxu0 0
      %3636 = vmatprep.subr.bf16.mxu0 0
      %3637 = vmatpush1.bf16.msra.mxu0 0
      %3638 = vmatprep.subr.bf16.mxu0 0
      %3639 = vmatpush1.bf16.msra.mxu0 0
      %3640 = vmatprep.subr.bf16.mxu0 0
      %3641 = vmatpush1.bf16.msra.mxu0 0
      %3642 = vmatprep.subr.bf16.mxu0 0
      %3643 = vmatpush1.bf16.msra.mxu0 0
      %3644 = vmatprep.subr.bf16.mxu0 0
      %3645 = vmatpush1.bf16.msra.mxu0 0
      %3646 = vmatprep.subr.bf16.mxu0 0
      %3647 = vmatpush1.bf16.msra.mxu0 0
      %3648 = vmatprep.subr.bf16.mxu0 0
      %3649 = vmatpush1.bf16.msra.mxu0 0
      %3650 = vmatprep.subr.bf16.mxu0 0
      %3651 = vmatpush1.bf16.msra.mxu0 0
      %3652 = vmatprep.subr.bf16.mxu0 0
      %3653 = vmatpush1.bf16.msra.mxu0 0
      %3654 = vmatprep.mubr.bf16.mxu0 0
      %3655 = vmatmul.mubr.bf16.gmra.mrb[0].mxu0 %v3608
      %v3656 = vpop.f32.mrb[0].mxu0
      %v3657 = vadd.f32 %v3578, %v3656
      %v3658 = vpop.f32.mrb[0].mxu0
      %v3659 = vpop.f32.mrb[0].mxu0
      %v3660 = vadd.f32 %v3578, %v3659
      %v3661 = vpop.f32.mrb[0].mxu0
      %3662 = vmatprep.mubr.bf16.mxu0 0
      %3663 = vmatmul.mubr.bf16.gmra.mrb[0].mxu0 %v3611
      %v3664 = vpop.f32.mrb[0].mxu0
      %v3665 = vadd.f32 %v3578, %v3664
      %v3666 = vpop.f32.mrb[0].mxu0
      %v3667 = vpop.f32.mrb[0].mxu0
      %v3668 = vadd.f32 %v3578, %v3667
      %v3669 = vpop.f32.mrb[0].mxu0
      %3670 = vmatprep.mubr.bf16.mxu0 0
      %3671 = vmatmul.mubr.bf16.gmra.mrb[0].mxu0 %v3614
      %v3672 = vpop.f32.mrb[0].mxu0
      %v3673 = vadd.f32 %v3578, %v3672
      %v3674 = vpop.f32.mrb[0].mxu0
      %v3675 = vpop.f32.mrb[0].mxu0
      %v3676 = vadd.f32 %v3578, %v3675
      %v3677 = vpop.f32.mrb[0].mxu0
      %3678 = vmatprep.mubr.bf16.mxu0 0
      %3679 = vmatmul.mubr.bf16.gmra.mrb[0].mxu0 %v3617
      %v3680 = vpop.f32.mrb[0].mxu0
      %v3681 = vadd.f32 %v3578, %v3680
      %v3682 = vpop.f32.mrb[0].mxu0
      %v3683 = vpop.f32.mrb[0].mxu0
      %v3684 = vadd.f32 %v3578, %v3683
      %v3685 = vpop.f32.mrb[0].mxu0
      %3686 = vdwg.mxu0
      %v3687 = vmax.f32 %v3657, 0.0
      %v3688 = vmax.f32 %v3660, 0.0
      %v3689 = vmax.f32 %v3665, 0.0
      %v3690 = vmax.f32 %v3668, 0.0
      %v3691 = vmax.f32 %v3673, 0.0
      %v3692 = vmax.f32 %v3676, 0.0
      %v3693 = vmax.f32 %v3681, 0.0
      %v3694 = vmax.f32 %v3684, 0.0
      %v3695 = vmin.f32 %v3687, 6.0
      %v3696 = vmin.f32 %v3688, 6.0
      %v3697 = vmin.f32 %v3689, 6.0
      %v3698 = vmin.f32 %v3690, 6.0
      %v3699 = vmin.f32 %v3691, 6.0
      %v3700 = vmin.f32 %v3692, 6.0
      %v3701 = vmin.f32 %v3693, 6.0
      %v3702 = vmin.f32 %v3694, 6.0
      %3711 = vrot.lane.b32.xlu0 %v3695, 8
      %v3712 = vpop.permute.xlu0 %3711
      %3713 = vrot.lane.b32.xlu0 %v3696, 8
      %v3714 = vpop.permute.xlu0 %3713
      %3715 = vrot.lane.b32.xlu0 %v3697, 8
      %v3716 = vpop.permute.xlu0 %3715
      %3717 = vrot.lane.b32.xlu0 %v3698, 8
      %v3718 = vpop.permute.xlu0 %3717
      %3719 = vrot.lane.b32.xlu0 %v3699, 8
      %v3720 = vpop.permute.xlu0 %3719
      %3721 = vrot.lane.b32.xlu0 %v3700, 8
      %v3722 = vpop.permute.xlu0 %3721
      %3723 = vrot.lane.b32.xlu0 %v3701, 8
      %v3724 = vpop.permute.xlu0 %3723
      %3725 = vrot.lane.b32.xlu0 %v3702, 8
      %v3726 = vpop.permute.xlu0 %3725
      %3743 = vrot.lane.b32.xlu0 %v591, 16
      %v3744 = vpop.permute.xlu0 %3743
      %3745 = vrot.lane.b32.xlu0 %v592, 16
      %v3746 = vpop.permute.xlu0 %3745
      %3747 = vrot.lane.b32.xlu0 %v593, 16
      %v3748 = vpop.permute.xlu0 %3747
      %3749 = vrot.lane.b32.xlu0 %v594, 16
      %v3750 = vpop.permute.xlu0 %3749
      %3751 = vrot.lane.b32.xlu0 %v595, 16
      %v3752 = vpop.permute.xlu0 %3751
      %3753 = vrot.lane.b32.xlu0 %v596, 16
      %v3754 = vpop.permute.xlu0 %3753
      %3755 = vrot.lane.b32.xlu0 %v597, 16
      %v3756 = vpop.permute.xlu0 %3755
      %3757 = vrot.lane.b32.xlu0 %v598, 16
      %v3758 = vpop.permute.xlu0 %3757
      %v3767 = vsel %vm1375, %v1583, %v3712
      %v3768 = vsel %vm1375, %v1584, %v3714
      %v3769 = vsel %vm1375, %v1585, %v3716
      %v3770 = vsel %vm1375, %v1586, %v3718
      %v3771 = vsel %vm1375, %v1587, %v3720
      %v3772 = vsel %vm1375, %v1588, %v3722
      %v3773 = vsel %vm1375, %v1589, %v3724
      %v3774 = vsel %vm1375, %v1590, %v3726
      %v3775 = vsel %vm901, %v3767, %v3744
      %v3776 = vsel %vm901, %v3768, %v3746
      %v3777 = vsel %vm901, %v3769, %v3748
      %v3778 = vsel %vm901, %v3770, %v3750
      %v3779 = vsel %vm901, %v3771, %v3752
      %v3780 = vsel %vm901, %v3772, %v3754
      %v3781 = vsel %vm901, %v3773, %v3756
      %v3782 = vsel %vm901, %v3774, %v3758
      %vm3783 = vcmask 162816
      %v3784 = vsel %vm3783, %v3775, 0.0
      %v3785 = vsel %vm3783, %v3776, 0.0
      %v3786 = vsel %vm3783, %v3777, 0.0
      %v3787 = vsel %vm3783, %v3778, 0.0
      %v3788 = vsel %vm3783, %v3779, 0.0
      %v3789 = vsel %vm3783, %v3780, 0.0
      %v3790 = vsel %vm3783, %v3781, 0.0
      %v3791 = vsel %vm3783, %v3782, 0.0
      %3792 = vst [vmem:[%s379] sm:$0xff] %v3784
      %3793 = vst [vmem:[%s379 + $0x8] sm:$0xff] %v3785
      %3794 = vst [vmem:[%s379 + $0x10] sm:$0xff] %v3786
      %3795 = vst [vmem:[%s379 + $0x18] sm:$0xff] %v3787
      %3796 = vst [vmem:[%s379 + $0x20] sm:$0xff] %v3788
      %3797 = vst [vmem:[%s379 + $0x28] sm:$0xff] %v3789
      %3798 = vst [vmem:[%s379 + $0x30] sm:$0xff] %v3790
      %3799 = vst [vmem:[%s379 + $0x38] sm:$0xff] %v3791
      %p3800 = scmp.lt.s32.totalorder %s21, 1
      %s3801 = scalar_select %p3800, %s21, 1
      %s3802 = smul.addr %s3801, 8
      %s3803 = smul.addr %s3802, 8
      %s3804 = scalar_lea.vmem %s10, %s3803
      // Predicated region
      $region61: #{inception_block_module_d.1} parent=59 // pred_check
        %p3805 = pneg %p259
      $region62: #{inception_block_module_d.1} parent=59 // pred_check_branch
        %3807 = sbr.rel (%p3805) target = $region64
      $region63: #{inception_block_module_d.1} parent=59 // pred_region
        _
      $region64: #{inception_block_module_d.1} parent=59 // pred_fallthru
        _
    $region60: #{inception_block_module_d.1} parent=5 // pred_fallthru
      _
    %p3808 = scmp.le.s32.totalorder 2, %s16
    // Predicated region
    $region65: #{inception_block_module_d.1} parent=5 // pred_check
      %p3809 = pneg %p3808
    $region66: #{inception_block_module_d.1} parent=5 // pred_check_branch
      %3811 = sbr.rel (%p3809) target = $region68
    $region67: #{inception_block_module_d.1} parent=5 // pred_region
      %s3812 = ssub.s32 %s16, 2
      // Predicated region
      $region69: #{inception_block_module_d.1} parent=67 // pred_check
        %p3813 = pneg %p265
      $region70: #{inception_block_module_d.1} parent=67 // pred_check_branch
        %3815 = sbr.rel (%p3813) target = $region72
      $region71: #{inception_block_module_d.1} parent=67 // pred_region
        %p3816 = scmp.lt.s32.totalorder %s22, 1
        %s3817 = scalar_select %p3816, %s22, 1
        %s3818 = smul.addr %s3817, 8
        %s3819 = smul.addr %s3818, 8
        %s3820 = scalar_lea.vmem %s10, %s3819
      $region72: #{inception_block_module_d.1} parent=67 // pred_fallthru
        _
    $region68: #{inception_block_module_d.1} parent=5 // pred_fallthru
      _
  $region6: #{inception_block_module_d.1} parent=0 // loop_footer
    %s20 = sadd.s32 1, %s16
  $region7: #{inception_block_module_d.1} parent=0 // loop_footer_branch
    %15 = sbr.rel target = $region3
  $region8: #{inception_block_module_d.1} parent=0 // loop_exit
    _

</llo_original>
